<compile_context>
chip_gen: v7x
topology: tpu7x:2x2x1
jax: 0.10.0
libtpu: 0.0.40
codegen_flags: <defaults>
</compile_context>

<pallas_src>
import jax
import jax.numpy as jnp
from jax.experimental import pallas as pl
from jax.experimental.pallas import tpu as pltpu

EMB_DIM = 512
HID_DIM = 256
OUT_PAD = 128          # lane-dense padded output width (real score lives in column 0)
BN_EPS = 1e-5
L2_EPS = 1e-12


def _round_up(x, m):
    return (x + m - 1) // m * m


def siamese_kernel(x_ref, we_ref, be_ref,
                   w1a_ref, w1b_ref, w1c_ref, w1d_ref, b1_ref,
                   w2_ref, b2_ref,
                   out_ref, acc_ref):
    k = pl.program_id(0)

    @pl.when(k == 0)
    def _init():
        acc_ref[...] = jnp.zeros_like(acc_ref)

    # Encoder matmul: single (2*Bp, TK) @ (TK, 512) MXU pass per K-step (both
    # images share the same RHS weight tile).
    acc_ref[...] += jnp.dot(x_ref[...], we_ref[...],
                            preferred_element_type=jnp.float32)

    @pl.when(k == pl.num_programs(0) - 1)
    def _finalize():
        # Bias is added once, here, rather than every K-step.
        e = acc_ref[...] + be_ref[...]
        inv = jax.lax.rsqrt(jnp.sum(e * e, axis=-1, keepdims=True) + L2_EPS)
        e = e * inv                                  # L2 row-normalize (rsqrt -> EUP)

        half = e.shape[0] // 2                       # Bp (sublane-aligned split)
        e1 = e[:half]
        e2 = e[half:]

        # Siamese fusion; reuse d/s (e1^2 - e2^2 == (e1-e2)*(e1+e2)).
        d = e1 - e2
        s = e1 + e2
        f1 = (d * s).astype(jnp.bfloat16)            # pow(emb1,2) - pow(emb2,2)
        f2 = (d * d).astype(jnp.bfloat16)            # pow(emb1 - emb2, 2)
        f3 = (e1 * e2).astype(jnp.bfloat16)          # emb1 * emb2
        f4 = s.astype(jnp.bfloat16)                  # emb1 + emb2

        # Head Linear(2048,256) with BatchNorm folded in, computed as four
        # accumulating 512-K matmuls (no (B,2048) concat materialized).
        h = (jnp.dot(f1, w1a_ref[...], preferred_element_type=jnp.float32)
             + jnp.dot(f2, w1b_ref[...], preferred_element_type=jnp.float32)
             + jnp.dot(f3, w1c_ref[...], preferred_element_type=jnp.float32)
             + jnp.dot(f4, w1d_ref[...], preferred_element_type=jnp.float32)
             + b1_ref[...])
        h = jnp.maximum(h, 0.0)                      # ReLU

        # Final Linear(256,1) padded to 128 lanes -> unmasked lane-dense stores.
        out = jnp.dot(h.astype(jnp.bfloat16), w2_ref[...],
                      preferred_element_type=jnp.float32) + b2_ref[...]
        out_ref[...] = out.astype(out_ref.dtype)


def siamese_net(input1, input2, params, *, tk=512):
    """input1, input2: (B, C, H, W) float32. Returns (B, 1) float32."""
    B = input1.shape[0]
    x1 = input1.reshape(B, -1)
    x2 = input2.reshape(B, -1)
    K = x1.shape[1]

    Bp = _round_up(B, 8)                 # sublane-aligned batch pad
    Kp = _round_up(K, tk)                # K padded to a whole number of tiles
    nk = Kp // tk

    # Stack both (zero-padded) images into one LHS; e1 = rows [:Bp], e2 = rows [Bp:].
    x1p = jnp.pad(x1.astype(jnp.bfloat16), ((0, Bp - B), (0, Kp - K)))
    x2p = jnp.pad(x2.astype(jnp.bfloat16), ((0, Bp - B), (0, Kp - K)))
    x = jnp.concatenate([x1p, x2p], axis=0)                       # (2*Bp, Kp) bf16

    we = jnp.pad(params["we"].astype(jnp.bfloat16), ((0, Kp - K), (0, 0)))  # (Kp, 512)
    be = params["be"].astype(jnp.float32)                                    # (1, 512)

    # Fold eval-mode BatchNorm1d(256) into the first head Linear.
    scale = params["gamma"] * jax.lax.rsqrt(params["var"] + BN_EPS)          # (1, 256)
    w1f = (params["w1"] * scale).astype(jnp.bfloat16)                        # (2048, 256)
    b1f = ((params["b1"] - params["mean"]) * scale + params["beta"]).astype(jnp.float32)
    w1a = w1f[0 * EMB_DIM:1 * EMB_DIM]
    w1b = w1f[1 * EMB_DIM:2 * EMB_DIM]
    w1c = w1f[2 * EMB_DIM:3 * EMB_DIM]
    w1d = w1f[3 * EMB_DIM:4 * EMB_DIM]

    # Pad the final Linear(256,1) to 128 output lanes (column 0 is the real score).
    w2 = jnp.pad(params["w2"].astype(jnp.bfloat16), ((0, 0), (0, OUT_PAD - 1)))
    b2 = jnp.pad(params["b2"].astype(jnp.float32), ((0, 0), (0, OUT_PAD - 1)))

    def resident(shape):
        return pl.BlockSpec(shape, lambda k: (0, 0))

    out = pl.pallas_call(
        siamese_kernel,
        out_shape=jax.ShapeDtypeStruct((Bp, OUT_PAD), jnp.float32),
        grid_spec=pltpu.PrefetchScalarGridSpec(
            num_scalar_prefetch=0,
            grid=(nk,),
            in_specs=[
                pl.BlockSpec((2 * Bp, tk), lambda k: (0, k)),     # stacked inputs, K-tiled
                pl.BlockSpec((tk, EMB_DIM), lambda k: (k, 0)),    # encoder weight, K-tiled
                resident((1, EMB_DIM)),                           # encoder bias
                resident((EMB_DIM, HID_DIM)),                     # w1 block a
                resident((EMB_DIM, HID_DIM)),                     # w1 block b
                resident((EMB_DIM, HID_DIM)),                     # w1 block c
                resident((EMB_DIM, HID_DIM)),                     # w1 block d
                resident((1, HID_DIM)),                           # folded bias
                resident((HID_DIM, OUT_PAD)),                     # padded w2
                resident((1, OUT_PAD)),                           # padded b2
            ],
            out_specs=pl.BlockSpec((Bp, OUT_PAD), lambda k: (0, 0)),
            scratch_shapes=[pltpu.VMEM((2 * Bp, EMB_DIM), jnp.float32)],
        ),
        compiler_params=pltpu.CompilerParams(
            dimension_semantics=("arbitrary",)),
    )(x, we, be, w1a, w1b, w1c, w1d, b1f, w2, b2)

    return out[:B, :1]


def init_params(key, in_dim):
    ks = jax.random.split(key, 6)
    scale_e = 1.0 / jnp.sqrt(jnp.float32(in_dim))
    scale_1 = 1.0 / jnp.sqrt(jnp.float32(4 * EMB_DIM))
    scale_2 = 1.0 / jnp.sqrt(jnp.float32(HID_DIM))
    return {
        # encoder stub
        "we": jax.random.normal(ks[0], (in_dim, EMB_DIM), jnp.float32) * scale_e,
        "be": jax.random.normal(ks[1], (1, EMB_DIM), jnp.float32) * 0.01,
        # head Linear(2048, 256)
        "w1": jax.random.normal(ks[2], (4 * EMB_DIM, HID_DIM), jnp.float32) * scale_1,
        "b1": jax.random.normal(ks[3], (1, HID_DIM), jnp.float32) * 0.01,
        # BatchNorm1d(256), eval-mode (running stats)
        "gamma": jnp.ones((1, HID_DIM), jnp.float32),
        "beta": jnp.zeros((1, HID_DIM), jnp.float32),
        "mean": jnp.zeros((1, HID_DIM), jnp.float32),
        "var": jnp.ones((1, HID_DIM), jnp.float32),
        # head Linear(256, 1)
        "w2": jax.random.normal(ks[4], (HID_DIM, 1), jnp.float32) * scale_2,
        "b2": jax.random.normal(ks[5], (1, 1), jnp.float32) * 0.01,
    }


def reference(input1, input2, params):
    """Pure-JAX reference mirroring the kernel numerics (bf16 operands, f32 accum)."""
    B = input1.shape[0]
    x1 = input1.reshape(B, -1).astype(jnp.bfloat16)
    x2 = input2.reshape(B, -1).astype(jnp.bfloat16)
    we = params["we"].astype(jnp.bfloat16)

    e1 = jnp.dot(x1, we, preferred_element_type=jnp.float32) + params["be"]
    e2 = jnp.dot(x2, we, preferred_element_type=jnp.float32) + params["be"]
    e1 = e1 * jax.lax.rsqrt(jnp.sum(e1 * e1, axis=-1, keepdims=True) + L2_EPS)
    e2 = e2 * jax.lax.rsqrt(jnp.sum(e2 * e2, axis=-1, keepdims=True) + L2_EPS)

    x = jnp.concatenate(
        [e1 * e1 - e2 * e2, (e1 - e2) ** 2, e1 * e2, e1 + e2], axis=1)

    scale = params["gamma"] * jax.lax.rsqrt(params["var"] + BN_EPS)
    w1f = (params["w1"] * scale).astype(jnp.bfloat16)
    b1f = (params["b1"] - params["mean"]) * scale + params["beta"]

    h = jnp.dot(x.astype(jnp.bfloat16), w1f, preferred_element_type=jnp.float32) + b1f
    h = jnp.maximum(h, 0.0)
    return (jnp.dot(h.astype(jnp.bfloat16), params["w2"].astype(jnp.bfloat16),
                    preferred_element_type=jnp.float32) + params["b2"])


if __name__ == "__main__":
    key = jax.random.PRNGKey(0)
    k_in1, k_in2, k_par = jax.random.split(key, 3)

    B, C, H, W = 2, 3, 16, 16           # small NCHW inputs
    input1 = jax.random.normal(k_in1, (B, C, H, W), jnp.float32)
    input2 = jax.random.normal(k_in2, (B, C, H, W), jnp.float32)
    params = init_params(k_par, C * H * W)

    out = siamese_net(input1, input2, params)
    out = jax.block_until_ready(out)

    ref = reference(input1, input2, params)
    assert out.shape == (B, 1), out.shape
    assert jnp.allclose(out, ref, atol=2e-3, rtol=2e-3), (out, ref)

    print("KERNEL_OK")
</pallas_src>

<mosaic_0001>
module attributes {stable_mosaic.version = 11 : i64} {
  func.func @siamese_kernel(%arg0: i32, %arg1: memref<16x512xbf16, #tpu.memory_space<vmem>>, %arg2: memref<512x512xbf16, #tpu.memory_space<vmem>>, %arg3: memref<1x512xf32, #tpu.memory_space<vmem>>, %arg4: memref<512x256xbf16, #tpu.memory_space<vmem>>, %arg5: memref<512x256xbf16, #tpu.memory_space<vmem>>, %arg6: memref<512x256xbf16, #tpu.memory_space<vmem>>, %arg7: memref<512x256xbf16, #tpu.memory_space<vmem>>, %arg8: memref<1x256xf32, #tpu.memory_space<vmem>>, %arg9: memref<256x128xbf16, #tpu.memory_space<vmem>>, %arg10: memref<1x128xf32, #tpu.memory_space<vmem>>, %arg11: memref<8x128xf32, #tpu.memory_space<vmem>>, %arg12: memref<16x512xf32, #tpu.memory_space<vmem>>) attributes {dimension_semantics = [#tpu.dimension_semantics<arbitrary>], iteration_bounds = array<i64: 2>, scalar_prefetch = 0 : i64, scratch_operands = 1 : i64, tpu.core_type = #tpu.core_type<tc>, window_params = [{transform_indices = @transform_0, window_bounds = array<i64: 16, 512>}, {transform_indices = @transform_1, window_bounds = array<i64: 512, 512>}, {pipeline_mode = #tpu.pipeline_mode<synchronous>, transform_indices = @transform_2, window_bounds = array<i64: 1, 512>}, {pipeline_mode = #tpu.pipeline_mode<synchronous>, transform_indices = @transform_3, window_bounds = array<i64: 512, 256>}, {pipeline_mode = #tpu.pipeline_mode<synchronous>, transform_indices = @transform_4, window_bounds = array<i64: 512, 256>}, {pipeline_mode = #tpu.pipeline_mode<synchronous>, transform_indices = @transform_5, window_bounds = array<i64: 512, 256>}, {pipeline_mode = #tpu.pipeline_mode<synchronous>, transform_indices = @transform_6, window_bounds = array<i64: 512, 256>}, {pipeline_mode = #tpu.pipeline_mode<synchronous>, transform_indices = @transform_7, window_bounds = array<i64: 1, 256>}, {pipeline_mode = #tpu.pipeline_mode<synchronous>, transform_indices = @transform_8, window_bounds = array<i64: 256, 128>}, {pipeline_mode = #tpu.pipeline_mode<synchronous>, transform_indices = @transform_9, window_bounds = array<i64: 1, 128>}, {pipeline_mode = #tpu.pipeline_mode<synchronous>, transform_indices = @transform_10, window_bounds = array<i64: 8, 128>}]} {
    %c0_i32 = arith.constant 0 : i32
    %0 = arith.cmpi eq, %arg0, %c0_i32 : i32
    %1 = arith.extui %0 : i1 to i32
    %c0_i32_0 = arith.constant 0 : i32
    %2 = arith.cmpi ne, %1, %c0_i32_0 : i32
    scf.if %2 {
      %cst_9 = arith.constant 0.000000e+00 : f32
      %12 = vector.broadcast %cst_9 : f32 to vector<16x512xf32>
      %c0_10 = arith.constant 0 : index
      %c0_11 = arith.constant 0 : index
      %13 = vector.load %arg12[%c0_10, %c0_11] : memref<16x512xf32, #tpu.memory_space<vmem>>, vector<16x512xf32>
      tpu.vector_store %arg12[%c0_10, %c0_11], %12 {strides = array<i32>} : memref<16x512xf32, #tpu.memory_space<vmem>>, vector<16x512xf32>,
    } else {
    }
    %c0 = arith.constant 0 : index
    %c0_1 = arith.constant 0 : index
    %3 = vector.load %arg12[%c0, %c0_1] : memref<16x512xf32, #tpu.memory_space<vmem>>, vector<16x512xf32>
    %c0_2 = arith.constant 0 : index
    %c0_3 = arith.constant 0 : index
    %4 = vector.load %arg1[%c0_2, %c0_3] : memref<16x512xbf16, #tpu.memory_space<vmem>>, vector<16x512xbf16>
    %c0_4 = arith.constant 0 : index
    %c0_5 = arith.constant 0 : index
    %5 = vector.load %arg2[%c0_4, %c0_5] : memref<512x512xbf16, #tpu.memory_space<vmem>>, vector<512x512xbf16>
    %cst = arith.constant dense<0.000000e+00> : vector<16x512xf32>
    %6 = tpu.matmul %4, %5, %cst {dimension_numbers = #tpu.dot_dimension_numbers<[1], [0], [0], [1], [0, 0, 1, 1], [], []>} : vector<16x512xbf16>, vector<512x512xbf16>, vector<16x512xf32> -> vector<16x512xf32>
    %7 = arith.addf %3, %6 : vector<16x512xf32>
    %c0_6 = arith.constant 0 : index
    %c0_7 = arith.constant 0 : index
    %8 = vector.load %arg12[%c0_6, %c0_7] : memref<16x512xf32, #tpu.memory_space<vmem>>, vector<16x512xf32>
    tpu.vector_store %arg12[%c0_6, %c0_7], %7 {strides = array<i32>} : memref<16x512xf32, #tpu.memory_space<vmem>>, vector<16x512xf32>,
    %c1_i32 = arith.constant 1 : i32
    %9 = arith.cmpi eq, %arg0, %c1_i32 : i32
    %10 = arith.extui %9 : i1 to i32
    %c0_i32_8 = arith.constant 0 : i32
    %11 = arith.cmpi ne, %10, %c0_i32_8 : i32
    scf.if %11 {
      %c0_9 = arith.constant 0 : index
      %c0_10 = arith.constant 0 : index
      %12 = vector.load %arg12[%c0_9, %c0_10] : memref<16x512xf32, #tpu.memory_space<vmem>>, vector<16x512xf32>
      %c0_11 = arith.constant 0 : index
      %c0_12 = arith.constant 0 : index
      %13 = vector.load %arg3[%c0_11, %c0_12] : memref<1x512xf32, #tpu.memory_space<vmem>>, vector<1x512xf32>
      %14 = vector.broadcast %13 : vector<1x512xf32> to vector<16x512xf32>
      %15 = arith.addf %12, %14 : vector<16x512xf32>
      %16 = arith.mulf %15, %15 : vector<16x512xf32>
      %cst_13 = arith.constant dense<0.000000e+00> : vector<16xf32>
      %17 = vector.multi_reduction <add>, %16, %cst_13 [1] : vector<16x512xf32> to vector<16xf32>
      %18 = vector.shape_cast %17 : vector<16xf32> to vector<16x1xf32>
      %cst_14 = arith.constant 9.99999996E-13 : f32
      %19 = vector.broadcast %cst_14 : f32 to vector<16x1xf32>
      %20 = arith.addf %18, %19 : vector<16x1xf32>
      %21 = math.rsqrt %20 : vector<16x1xf32>
      %22 = vector.broadcast %21 : vector<16x1xf32> to vector<16x512xf32>
      %23 = arith.mulf %15, %22 : vector<16x512xf32>
      %24 = vector.extract_strided_slice %23 {offsets = [0, 0], sizes = [8, 512], strides = [1, 1]} : vector<16x512xf32> to vector<8x512xf32>
      %25 = vector.extract_strided_slice %23 {offsets = [8, 0], sizes = [8, 512], strides = [1, 1]} : vector<16x512xf32> to vector<8x512xf32>
      %26 = arith.subf %24, %25 : vector<8x512xf32>
      %27 = arith.addf %24, %25 : vector<8x512xf32>
      %28 = arith.mulf %26, %27 : vector<8x512xf32>
      %29 = arith.truncf %28 : vector<8x512xf32> to vector<8x512xbf16>
      %30 = arith.mulf %26, %26 : vector<8x512xf32>
      %31 = arith.truncf %30 : vector<8x512xf32> to vector<8x512xbf16>
      %32 = arith.mulf %24, %25 : vector<8x512xf32>
      %33 = arith.truncf %32 : vector<8x512xf32> to vector<8x512xbf16>
      %34 = arith.truncf %27 : vector<8x512xf32> to vector<8x512xbf16>
      %c0_15 = arith.constant 0 : index
      %c0_16 = arith.constant 0 : index
      %35 = vector.load %arg4[%c0_15, %c0_16] : memref<512x256xbf16, #tpu.memory_space<vmem>>, vector<512x256xbf16>
      %cst_17 = arith.constant dense<0.000000e+00> : vector<8x256xf32>
      %36 = tpu.matmul %29, %35, %cst_17 {dimension_numbers = #tpu.dot_dimension_numbers<[1], [0], [0], [1], [0, 0, 1, 1], [], []>} : vector<8x512xbf16>, vector<512x256xbf16>, vector<8x256xf32> -> vector<8x256xf32>
      %c0_18 = arith.constant 0 : index
      %c0_19 = arith.constant 0 : index
      %37 = vector.load %arg5[%c0_18, %c0_19] : memref<512x256xbf16, #tpu.memory_space<vmem>>, vector<512x256xbf16>
      %cst_20 = arith.constant dense<0.000000e+00> : vector<8x256xf32>
      %38 = tpu.matmul %31, %37, %cst_20 {dimension_numbers = #tpu.dot_dimension_numbers<[1], [0], [0], [1], [0, 0, 1, 1], [], []>} : vector<8x512xbf16>, vector<512x256xbf16>, vector<8x256xf32> -> vector<8x256xf32>
      %39 = arith.addf %36, %38 : vector<8x256xf32>
      %c0_21 = arith.constant 0 : index
      %c0_22 = arith.constant 0 : index
      %40 = vector.load %arg6[%c0_21, %c0_22] : memref<512x256xbf16, #tpu.memory_space<vmem>>, vector<512x256xbf16>
      %cst_23 = arith.constant dense<0.000000e+00> : vector<8x256xf32>
      %41 = tpu.matmul %33, %40, %cst_23 {dimension_numbers = #tpu.dot_dimension_numbers<[1], [0], [0], [1], [0, 0, 1, 1], [], []>} : vector<8x512xbf16>, vector<512x256xbf16>, vector<8x256xf32> -> vector<8x256xf32>
      %42 = arith.addf %39, %41 : vector<8x256xf32>
      %c0_24 = arith.constant 0 : index
      %c0_25 = arith.constant 0 : index
      %43 = vector.load %arg7[%c0_24, %c0_25] : memref<512x256xbf16, #tpu.memory_space<vmem>>, vector<512x256xbf16>
      %cst_26 = arith.constant dense<0.000000e+00> : vector<8x256xf32>
      %44 = tpu.matmul %34, %43, %cst_26 {dimension_numbers = #tpu.dot_dimension_numbers<[1], [0], [0], [1], [0, 0, 1, 1], [], []>} : vector<8x512xbf16>, vector<512x256xbf16>, vector<8x256xf32> -> vector<8x256xf32>
      %45 = arith.addf %42, %44 : vector<8x256xf32>
      %c0_27 = arith.constant 0 : index
      %c0_28 = arith.constant 0 : index
      %46 = vector.load %arg8[%c0_27, %c0_28] : memref<1x256xf32, #tpu.memory_space<vmem>>, vector<1x256xf32>
      %47 = vector.broadcast %46 : vector<1x256xf32> to vector<8x256xf32>
      %48 = arith.addf %45, %47 : vector<8x256xf32>
      %cst_29 = arith.constant 0.000000e+00 : f32
      %49 = vector.broadcast %cst_29 : f32 to vector<8x256xf32>
      %50 = arith.maximumf %48, %49 : vector<8x256xf32>
      %51 = arith.truncf %50 : vector<8x256xf32> to vector<8x256xbf16>
      %c0_30 = arith.constant 0 : index
      %c0_31 = arith.constant 0 : index
      %52 = vector.load %arg9[%c0_30, %c0_31] : memref<256x128xbf16, #tpu.memory_space<vmem>>, vector<256x128xbf16>
      %cst_32 = arith.constant dense<0.000000e+00> : vector<8x128xf32>
      %53 = tpu.matmul %51, %52, %cst_32 {dimension_numbers = #tpu.dot_dimension_numbers<[1], [0], [0], [1], [0, 0, 1, 1], [], []>} : vector<8x256xbf16>, vector<256x128xbf16>, vector<8x128xf32> -> vector<8x128xf32>
      %c0_33 = arith.constant 0 : index
      %c0_34 = arith.constant 0 : index
      %54 = vector.load %arg10[%c0_33, %c0_34] : memref<1x128xf32, #tpu.memory_space<vmem>>, vector<1x128xf32>
      %55 = vector.broadcast %54 : vector<1x128xf32> to vector<8x128xf32>
      %56 = arith.addf %53, %55 : vector<8x128xf32>
      %c0_35 = arith.constant 0 : index
      %c0_36 = arith.constant 0 : index
      %57 = vector.load %arg11[%c0_35, %c0_36] : memref<8x128xf32, #tpu.memory_space<vmem>>, vector<8x128xf32>
      tpu.vector_store %arg11[%c0_35, %c0_36], %56 {strides = array<i32>} : memref<8x128xf32, #tpu.memory_space<vmem>>, vector<8x128xf32>,
    } else {
    }
    return
  }
  func.func @transform_0(%arg0: i32) -> (i32, i32) {
    %c0_i32 = arith.constant 0 : i32
    %c0_i32_0 = arith.constant 0 : i32
    return %c0_i32, %arg0 : i32, i32
  }
  func.func @transform_1(%arg0: i32) -> (i32, i32) {
    %c0_i32 = arith.constant 0 : i32
    %c0_i32_0 = arith.constant 0 : i32
    return %arg0, %c0_i32 : i32, i32
  }
  func.func @transform_2(%arg0: i32) -> (i32, i32) {
    %c0_i32 = arith.constant 0 : i32
    %c0_i32_0 = arith.constant 0 : i32
    %c0_i32_1 = arith.constant 0 : i32
    return %c0_i32, %c0_i32_0 : i32, i32
  }
  func.func @transform_3(%arg0: i32) -> (i32, i32) {
    %c0_i32 = arith.constant 0 : i32
    %c0_i32_0 = arith.constant 0 : i32
    %c0_i32_1 = arith.constant 0 : i32
    return %c0_i32, %c0_i32_0 : i32, i32
  }
  func.func @transform_4(%arg0: i32) -> (i32, i32) {
    %c0_i32 = arith.constant 0 : i32
    %c0_i32_0 = arith.constant 0 : i32
    %c0_i32_1 = arith.constant 0 : i32
    return %c0_i32, %c0_i32_0 : i32, i32
  }
  func.func @transform_5(%arg0: i32) -> (i32, i32) {
    %c0_i32 = arith.constant 0 : i32
    %c0_i32_0 = arith.constant 0 : i32
    %c0_i32_1 = arith.constant 0 : i32
    return %c0_i32, %c0_i32_0 : i32, i32
  }
  func.func @transform_6(%arg0: i32) -> (i32, i32) {
    %c0_i32 = arith.constant 0 : i32
    %c0_i32_0 = arith.constant 0 : i32
    %c0_i32_1 = arith.constant 0 : i32
    return %c0_i32, %c0_i32_0 : i32, i32
  }
  func.func @transform_7(%arg0: i32) -> (i32, i32) {
    %c0_i32 = arith.constant 0 : i32
    %c0_i32_0 = arith.constant 0 : i32
    %c0_i32_1 = arith.constant 0 : i32
    return %c0_i32, %c0_i32_0 : i32, i32
  }
  func.func @transform_8(%arg0: i32) -> (i32, i32) {
    %c0_i32 = arith.constant 0 : i32
    %c0_i32_0 = arith.constant 0 : i32
    %c0_i32_1 = arith.constant 0 : i32
    return %c0_i32, %c0_i32_0 : i32, i32
  }
  func.func @transform_9(%arg0: i32) -> (i32, i32) {
    %c0_i32 = arith.constant 0 : i32
    %c0_i32_0 = arith.constant 0 : i32
    %c0_i32_1 = arith.constant 0 : i32
    return %c0_i32, %c0_i32_0 : i32, i32
  }
  func.func @transform_10(%arg0: i32) -> (i32, i32) {
    %c0_i32 = arith.constant 0 : i32
    %c0_i32_0 = arith.constant 0 : i32
    %c0_i32_1 = arith.constant 0 : i32
    return %c0_i32, %c0_i32_0 : i32, i32
  }
}

</mosaic_0001>

<llo_original>
// kernel: tpu_custom_call.1
$region0: #{tpu_custom_call.1}
  #allocation0 [shape = 'u32[]', space=smem, size = 0x4, offset = 0x4, fixed_abs, tag = 'smem constant byte address 0x4 - core index']
  #allocation1 [shape = 'u32[144,128]{1,0:T(1,128)}', space=vmem, size = 0x12000, scoped, tag = 'internal scratch']
  #allocation2 [shape = 'f32[16,512]{1,0:T(8,128)}', space=vmem, size = 0x8000, scoped, tag = 'scratch operand']
  %s0 = inlined_call_operand.hbm [shape: bf16[16,1024], index: 0, kind: input, shape index: {}]
  %s1 = inlined_call_operand.hbm [shape: bf16[1024,512], index: 1, kind: input, shape index: {}]
  %s2 = inlined_call_operand.vmem [shape: f32[1,512], index: 2, kind: input, shape index: {}]
  %s3 = inlined_call_operand.hbm [shape: bf16[512,256], index: 3, kind: input, shape index: {}]
  %s4 = inlined_call_operand.hbm [shape: bf16[512,256], index: 4, kind: input, shape index: {}]
  %s5 = inlined_call_operand.hbm [shape: bf16[512,256], index: 5, kind: input, shape index: {}]
  %s6 = inlined_call_operand.hbm [shape: bf16[512,256], index: 6, kind: input, shape index: {}]
  %s7 = inlined_call_operand.vmem [shape: f32[1,256], index: 7, kind: input, shape index: {}]
  %s8 = inlined_call_operand.hbm [shape: bf16[256,128], index: 8, kind: input, shape index: {}]
  %s9 = inlined_call_operand.vmem [shape: f32[1,128], index: 9, kind: input, shape index: {}]
  %s10 = inlined_call_operand.hbm [shape: f32[8,128], index: 10, kind: output, shape index: {}]
  %s11 = sld [smem:[#allocation0]]
  $region109: #{tpu_custom_call.1} parent=0
    _
  %s13 = ssub.s32 1, %s11
  %s14 = scalar_select 0, %s13, %s11
  $region1: #{tpu_custom_call.1} parent=0
    #allocation3 [shape = 'u8[32768]{0}', space=vmem, size = 0x8000, scoped, tag = 'input window, operand 0']
    #allocation4 [shape = 's32[2]{0}', space=sflag, size = 0x8, scoped, tag = 'scoped memory for tpu_custom_call.1']
    #allocation5 [shape = 's32[2]{0}', space=sflag, size = 0x8, scoped, tag = 'scoped memory for tpu_custom_call.1']
    #allocation6 [shape = 'u8[1048576]{0}', space=vmem, size = 0x100000, scoped, tag = 'input window, operand 1']
    #allocation7 [shape = 's32[2]{0}', space=sflag, size = 0x8, scoped, tag = 'scoped memory for tpu_custom_call.1']
    #allocation8 [shape = 'u8[262144]{0}', space=vmem, size = 0x40000, scoped, tag = 'input window, operand 3, single buffered']
    #allocation9 [shape = 'u8[262144]{0}', space=vmem, size = 0x40000, scoped, tag = 'input window, operand 4, single buffered']
    #allocation10 [shape = 's32[1]{0}', space=sflag, size = 0x4, scoped, tag = 'scoped memory for tpu_custom_call.1']
    #allocation11 [shape = 'u8[262144]{0}', space=vmem, size = 0x40000, scoped, tag = 'input window, operand 5, single buffered']
    #allocation12 [shape = 'u8[262144]{0}', space=vmem, size = 0x40000, scoped, tag = 'input window, operand 6, single buffered']
    #allocation13 [shape = 's32[1]{0}', space=sflag, size = 0x4, scoped, tag = 'scoped memory for tpu_custom_call.1']
    #allocation14 [shape = 'u8[65536]{0}', space=vmem, size = 0x10000, scoped, tag = 'input window, operand 8, single buffered']
    #allocation15 [shape = 'u8[4096]{0}', space=vmem, size = 0x1000, scoped, tag = 'output window, operand 0, single buffered']
    %15 = vsyncpa [#allocation4], 0
    %s16 = scalar_lea.sflag [#allocation4], 1
    %17 = vsyncpa %s16, 0
    %18 = vsyncpa [#allocation7], 0
    %s19 = scalar_lea.sflag [#allocation7], 1
    %20 = vsyncpa %s19, 0
    %21 = vsyncpa [#allocation10], 0
    %22 = vsyncpa [#allocation13], 0
    %23 = vsyncpa [#allocation5], 0
    loop: start=0, step=1, limit=4
    $region2: #{tpu_custom_call.1} parent=1 // loop_pre_header
      _
    $region3: #{tpu_custom_call.1} parent=1 // loop_header
      %s25 = sphi 0, %s29
      %p26 = scmp.ge.s32.totalorder %s25, 4
      %s35 = sphi 0, %s37
      %s38 = sphi 0, %s35
      %s39 = sphi 0, %s38
      %s55 = sphi 0, %s39
      %s61 = sphi 0, %s63
      %s64 = sphi 0, %s61
      %s65 = sphi 0, %s64
      %s81 = sphi 0, %s65
      %s85 = sphi 0, %s85
      %s87 = sphi 0, %s85
      %s88 = sphi 0, %s87
      %s102 = sphi 0, %s88
      %s106 = sphi 0, %s106
      %s108 = sphi 0, %s106
      %s109 = sphi 0, %s108
      %s123 = sphi 0, %s109
      %s127 = sphi 0, %s127
      %s129 = sphi 0, %s127
      %s130 = sphi 0, %s129
      %s144 = sphi 0, %s130
      %s148 = sphi 0, %s148
      %s150 = sphi 0, %s148
      %s151 = sphi 0, %s150
      %s165 = sphi 0, %s151
      %s169 = sphi 0, %s169
      %s171 = sphi 0, %s169
      %s172 = sphi 0, %s171
      %s186 = sphi 0, %s172
      %s190 = sphi 0, %s190
      %s192 = sphi 0, %s190
      %s193 = sphi 0, %s192
      %s207 = sphi 0, %s193
      %s211 = sphi 0, %s211
      %s213 = sphi 0, %s211
      %s214 = sphi 0, %s213
      %s228 = sphi 0, %s214
      %s232 = sphi 0, %s232
      %s234 = sphi 0, %s232
      %s235 = sphi 0, %s234
      %s249 = sphi 0, %s235
      %s253 = sphi 0, %s253
      %s255 = sphi 0, %s253
      %s256 = sphi 0, %s255
      %s270 = sphi 0, %s256
    $region4: #{tpu_custom_call.1} parent=1 // loop_header_branch
      %28 = sbr.rel (%p26) target = $region8
    $region5: #{tpu_custom_call.1} parent=1 // loop_body
      %s30 = ssub.s32 %s25, 1
      %s31 = ssub.s32 %s25, 2
      %s32 = sadd.s32 %s25, 1
      %s33 = ssub.s32 %s25, %s32
      %p34 = scmp.eq.s32.totalorder %s33, 0
      %s36 = sadd.s32 %s35, 1
      %s37 = scalar_select %p34, %s35, %s36
      %p40 = pneg %p34
      %p41 = scmp.eq.s32.totalorder %s25, 1
      %p42 = por %p40, %p41
      %p43 = scmp.ne.s32.totalorder %s35, %s38
      %p44 = scmp.eq.s32.totalorder %s25, 0
      %p45 = por %p43, %p44
      %p46 = scmp.ne.s32.totalorder %s35, %s38
      %p47 = scmp.eq.s32.totalorder %s30, 1
      %p48 = por %p46, %p47
      %p49 = scmp.ne.s32.totalorder %s38, %s39
      %p50 = scmp.eq.s32.totalorder %s30, 0
      %p51 = por %p49, %p50
      %p52 = scmp.ne.s32.totalorder %s38, %s39
      %p53 = scmp.eq.s32.totalorder %s31, 1
      %p54 = por %p52, %p53
      %p56 = scmp.ne.s32.totalorder %s39, %s55
      %p57 = scmp.eq.s32.totalorder %s31, 0
      %p58 = por %p56, %p57
      %s59 = ssub.s32 %s25, %s32
      %p60 = scmp.eq.s32.totalorder %s59, 0
      %s62 = sadd.s32 %s61, 1
      %s63 = scalar_select %p60, %s61, %s62
      %p66 = pneg %p60
      %p67 = scmp.eq.s32.totalorder %s25, 1
      %p68 = por %p66, %p67
      %p69 = scmp.ne.s32.totalorder %s61, %s64
      %p70 = scmp.eq.s32.totalorder %s25, 0
      %p71 = por %p69, %p70
      %p72 = scmp.ne.s32.totalorder %s61, %s64
      %p73 = scmp.eq.s32.totalorder %s30, 1
      %p74 = por %p72, %p73
      %p75 = scmp.ne.s32.totalorder %s64, %s65
      %p76 = scmp.eq.s32.totalorder %s30, 0
      %p77 = por %p75, %p76
      %p78 = scmp.ne.s32.totalorder %s64, %s65
      %p79 = scmp.eq.s32.totalorder %s31, 1
      %p80 = por %p78, %p79
      %p82 = scmp.ne.s32.totalorder %s65, %s81
      %p83 = scmp.eq.s32.totalorder %s31, 0
      %p84 = por %p82, %p83
      %s86 = sadd.s32 %s85, 1
      %p89 = scmp.eq.s32.totalorder %s25, 1
      %p90 = scmp.ne.s32.totalorder %s85, %s87
      %p91 = scmp.eq.s32.totalorder %s25, 0
      %p92 = por %p90, %p91
      %p93 = scmp.ne.s32.totalorder %s85, %s87
      %p94 = scmp.eq.s32.totalorder %s30, 1
      %p95 = por %p93, %p94
      %p96 = scmp.ne.s32.totalorder %s87, %s88
      %p97 = scmp.eq.s32.totalorder %s30, 0
      %p98 = por %p96, %p97
      %p99 = scmp.ne.s32.totalorder %s87, %s88
      %p100 = scmp.eq.s32.totalorder %s31, 1
      %p101 = por %p99, %p100
      %p103 = scmp.ne.s32.totalorder %s88, %s102
      %p104 = scmp.eq.s32.totalorder %s31, 0
      %p105 = por %p103, %p104
      %s107 = sadd.s32 %s106, 1
      %p110 = scmp.eq.s32.totalorder %s25, 1
      %p111 = scmp.ne.s32.totalorder %s106, %s108
      %p112 = scmp.eq.s32.totalorder %s25, 0
      %p113 = por %p111, %p112
      %p114 = scmp.ne.s32.totalorder %s106, %s108
      %p115 = scmp.eq.s32.totalorder %s30, 1
      %p116 = por %p114, %p115
      %p117 = scmp.ne.s32.totalorder %s108, %s109
      %p118 = scmp.eq.s32.totalorder %s30, 0
      %p119 = por %p117, %p118
      %p120 = scmp.ne.s32.totalorder %s108, %s109
      %p121 = scmp.eq.s32.totalorder %s31, 1
      %p122 = por %p120, %p121
      %p124 = scmp.ne.s32.totalorder %s109, %s123
      %p125 = scmp.eq.s32.totalorder %s31, 0
      %p126 = por %p124, %p125
      %s128 = sadd.s32 %s127, 1
      %p131 = scmp.eq.s32.totalorder %s25, 1
      %p132 = scmp.ne.s32.totalorder %s127, %s129
      %p133 = scmp.eq.s32.totalorder %s25, 0
      %p134 = por %p132, %p133
      %p135 = scmp.ne.s32.totalorder %s127, %s129
      %p136 = scmp.eq.s32.totalorder %s30, 1
      %p137 = por %p135, %p136
      %p138 = scmp.ne.s32.totalorder %s129, %s130
      %p139 = scmp.eq.s32.totalorder %s30, 0
      %p140 = por %p138, %p139
      %p141 = scmp.ne.s32.totalorder %s129, %s130
      %p142 = scmp.eq.s32.totalorder %s31, 1
      %p143 = por %p141, %p142
      %p145 = scmp.ne.s32.totalorder %s130, %s144
      %p146 = scmp.eq.s32.totalorder %s31, 0
      %p147 = por %p145, %p146
      %s149 = sadd.s32 %s148, 1
      %p152 = scmp.eq.s32.totalorder %s25, 1
      %p153 = scmp.ne.s32.totalorder %s148, %s150
      %p154 = scmp.eq.s32.totalorder %s25, 0
      %p155 = por %p153, %p154
      %p156 = scmp.ne.s32.totalorder %s148, %s150
      %p157 = scmp.eq.s32.totalorder %s30, 1
      %p158 = por %p156, %p157
      %p159 = scmp.ne.s32.totalorder %s150, %s151
      %p160 = scmp.eq.s32.totalorder %s30, 0
      %p161 = por %p159, %p160
      %p162 = scmp.ne.s32.totalorder %s150, %s151
      %p163 = scmp.eq.s32.totalorder %s31, 1
      %p164 = por %p162, %p163
      %p166 = scmp.ne.s32.totalorder %s151, %s165
      %p167 = scmp.eq.s32.totalorder %s31, 0
      %p168 = por %p166, %p167
      %s170 = sadd.s32 %s169, 1
      %p173 = scmp.eq.s32.totalorder %s25, 1
      %p174 = scmp.ne.s32.totalorder %s169, %s171
      %p175 = scmp.eq.s32.totalorder %s25, 0
      %p176 = por %p174, %p175
      %p177 = scmp.ne.s32.totalorder %s169, %s171
      %p178 = scmp.eq.s32.totalorder %s30, 1
      %p179 = por %p177, %p178
      %p180 = scmp.ne.s32.totalorder %s171, %s172
      %p181 = scmp.eq.s32.totalorder %s30, 0
      %p182 = por %p180, %p181
      %p183 = scmp.ne.s32.totalorder %s171, %s172
      %p184 = scmp.eq.s32.totalorder %s31, 1
      %p185 = por %p183, %p184
      %p187 = scmp.ne.s32.totalorder %s172, %s186
      %p188 = scmp.eq.s32.totalorder %s31, 0
      %p189 = por %p187, %p188
      %s191 = sadd.s32 %s190, 1
      %p194 = scmp.eq.s32.totalorder %s25, 1
      %p195 = scmp.ne.s32.totalorder %s190, %s192
      %p196 = scmp.eq.s32.totalorder %s25, 0
      %p197 = por %p195, %p196
      %p198 = scmp.ne.s32.totalorder %s190, %s192
      %p199 = scmp.eq.s32.totalorder %s30, 1
      %p200 = por %p198, %p199
      %p201 = scmp.ne.s32.totalorder %s192, %s193
      %p202 = scmp.eq.s32.totalorder %s30, 0
      %p203 = por %p201, %p202
      %p204 = scmp.ne.s32.totalorder %s192, %s193
      %p205 = scmp.eq.s32.totalorder %s31, 1
      %p206 = por %p204, %p205
      %p208 = scmp.ne.s32.totalorder %s193, %s207
      %p209 = scmp.eq.s32.totalorder %s31, 0
      %p210 = por %p208, %p209
      %s212 = sadd.s32 %s211, 1
      %p215 = scmp.eq.s32.totalorder %s25, 1
      %p216 = scmp.ne.s32.totalorder %s211, %s213
      %p217 = scmp.eq.s32.totalorder %s25, 0
      %p218 = por %p216, %p217
      %p219 = scmp.ne.s32.totalorder %s211, %s213
      %p220 = scmp.eq.s32.totalorder %s30, 1
      %p221 = por %p219, %p220
      %p222 = scmp.ne.s32.totalorder %s213, %s214
      %p223 = scmp.eq.s32.totalorder %s30, 0
      %p224 = por %p222, %p223
      %p225 = scmp.ne.s32.totalorder %s213, %s214
      %p226 = scmp.eq.s32.totalorder %s31, 1
      %p227 = por %p225, %p226
      %p229 = scmp.ne.s32.totalorder %s214, %s228
      %p230 = scmp.eq.s32.totalorder %s31, 0
      %p231 = por %p229, %p230
      %s233 = sadd.s32 %s232, 1
      %p236 = scmp.eq.s32.totalorder %s25, 1
      %p237 = scmp.ne.s32.totalorder %s232, %s234
      %p238 = scmp.eq.s32.totalorder %s25, 0
      %p239 = por %p237, %p238
      %p240 = scmp.ne.s32.totalorder %s232, %s234
      %p241 = scmp.eq.s32.totalorder %s30, 1
      %p242 = por %p240, %p241
      %p243 = scmp.ne.s32.totalorder %s234, %s235
      %p244 = scmp.eq.s32.totalorder %s30, 0
      %p245 = por %p243, %p244
      %p246 = scmp.ne.s32.totalorder %s234, %s235
      %p247 = scmp.eq.s32.totalorder %s31, 1
      %p248 = por %p246, %p247
      %p250 = scmp.ne.s32.totalorder %s235, %s249
      %p251 = scmp.eq.s32.totalorder %s31, 0
      %p252 = por %p250, %p251
      %s254 = sadd.s32 %s253, 1
      %p257 = scmp.eq.s32.totalorder %s25, 1
      %p258 = scmp.ne.s32.totalorder %s253, %s255
      %p259 = scmp.eq.s32.totalorder %s25, 0
      %p260 = por %p258, %p259
      %p261 = scmp.ne.s32.totalorder %s253, %s255
      %p262 = scmp.eq.s32.totalorder %s30, 1
      %p263 = por %p261, %p262
      %p264 = scmp.ne.s32.totalorder %s255, %s256
      %p265 = scmp.eq.s32.totalorder %s30, 0
      %p266 = por %p264, %p265
      %p267 = scmp.ne.s32.totalorder %s255, %s256
      %p268 = scmp.eq.s32.totalorder %s31, 1
      %p269 = por %p267, %p268
      %p271 = scmp.ne.s32.totalorder %s256, %s270
      %p272 = scmp.eq.s32.totalorder %s31, 0
      %p273 = por %p271, %p272
      %p274 = scmp.le.s32.totalorder 1, %s25
      %p275 = scmp.lt.s32.totalorder %s25, 3
      %p276 = pnand %p274, %p275
      %p277 = pneg %p276
      // Predicated region
      $region9: #{tpu_custom_call.1} parent=5 // pred_check
        _
      $region10: #{tpu_custom_call.1} parent=5 // pred_check_branch
        %279 = sbr.rel (%p276) target = $region12
      $region11: #{tpu_custom_call.1} parent=5 // pred_region
        %s280 = ssub.s32 %s25, 1
        // Predicated region
        $region13: #{tpu_custom_call.1} parent=11 // pred_check
          %p281 = pneg %p98
        $region14: #{tpu_custom_call.1} parent=11 // pred_check_branch
          %283 = sbr.rel (%p281) target = $region16
        $region15: #{tpu_custom_call.1} parent=11 // pred_region
          _
        $region16: #{tpu_custom_call.1} parent=11 // pred_fallthru
          _
        // Predicated region
        $region17: #{tpu_custom_call.1} parent=11 // pred_check
          %p284 = pneg %p119
        $region18: #{tpu_custom_call.1} parent=11 // pred_check_branch
          %286 = sbr.rel (%p284) target = $region20
        $region19: #{tpu_custom_call.1} parent=11 // pred_region
          %s288 = ssub.s32 8192, 8192
          %289 = vsyncadd [#allocation7], %s288
          %s290 = sshll.u32 [#allocation8], 4
          %s291 = int_to_ptr.vmem [resolvable:$true] %s290
          %296 = dma.hbm_to_vmem [thread:$0]  %s3, 8192, %s291, [#allocation7], 128, 128, 8
        $region20: #{tpu_custom_call.1} parent=11 // pred_fallthru
          _
        // Predicated region
        $region21: #{tpu_custom_call.1} parent=11 // pred_check
          %p297 = pneg %p140
        $region22: #{tpu_custom_call.1} parent=11 // pred_check_branch
          %299 = sbr.rel (%p297) target = $region24
        $region23: #{tpu_custom_call.1} parent=11 // pred_region
          %s301 = ssub.s32 8192, 8192
          %302 = vsyncadd [#allocation10], %s301
          %s303 = sshll.u32 [#allocation9], 4
          %s304 = int_to_ptr.vmem [resolvable:$true] %s303
          %309 = dma.hbm_to_vmem [thread:$0]  %s4, 8192, %s304, [#allocation10], 128, 128, 8
        $region24: #{tpu_custom_call.1} parent=11 // pred_fallthru
          _
        // Predicated region
        $region25: #{tpu_custom_call.1} parent=11 // pred_check
          %p310 = pneg %p161
        $region26: #{tpu_custom_call.1} parent=11 // pred_check_branch
          %312 = sbr.rel (%p310) target = $region28
        $region27: #{tpu_custom_call.1} parent=11 // pred_region
          %s314 = ssub.s32 8192, 8192
          %315 = vsyncadd [#allocation10], %s314
          %s316 = sshll.u32 [#allocation11], 4
          %s317 = int_to_ptr.vmem [resolvable:$true] %s316
          %322 = dma.hbm_to_vmem [thread:$0]  %s5, 8192, %s317, [#allocation10], 128, 128, 8
        $region28: #{tpu_custom_call.1} parent=11 // pred_fallthru
          _
        // Predicated region
        $region29: #{tpu_custom_call.1} parent=11 // pred_check
          %p323 = pneg %p182
        $region30: #{tpu_custom_call.1} parent=11 // pred_check_branch
          %325 = sbr.rel (%p323) target = $region32
        $region31: #{tpu_custom_call.1} parent=11 // pred_region
          %s327 = ssub.s32 8192, 8192
          %328 = vsyncadd [#allocation13], %s327
          %s329 = sshll.u32 [#allocation12], 4
          %s330 = int_to_ptr.vmem [resolvable:$true] %s329
          %335 = dma.hbm_to_vmem [thread:$0]  %s6, 8192, %s330, [#allocation13], 128, 128, 8
        $region32: #{tpu_custom_call.1} parent=11 // pred_fallthru
          _
        // Predicated region
        $region33: #{tpu_custom_call.1} parent=11 // pred_check
          %p336 = pneg %p203
        $region34: #{tpu_custom_call.1} parent=11 // pred_check_branch
          %338 = sbr.rel (%p336) target = $region36
        $region35: #{tpu_custom_call.1} parent=11 // pred_region
          _
        $region36: #{tpu_custom_call.1} parent=11 // pred_fallthru
          _
        // Predicated region
        $region37: #{tpu_custom_call.1} parent=11 // pred_check
          %p339 = pneg %p224
        $region38: #{tpu_custom_call.1} parent=11 // pred_check_branch
          %341 = sbr.rel (%p339) target = $region40
        $region39: #{tpu_custom_call.1} parent=11 // pred_region
          %s343 = ssub.s32 2048, 2048
          %344 = vsyncadd [#allocation13], %s343
          %s345 = sshll.u32 [#allocation14], 4
          %s346 = int_to_ptr.vmem [resolvable:$true] %s345
          %351 = dma.hbm_to_vmem [thread:$0]  %s8, 2048, %s346, [#allocation13], 64, 64, 4
        $region40: #{tpu_custom_call.1} parent=11 // pred_fallthru
          _
        // Predicated region
        $region41: #{tpu_custom_call.1} parent=11 // pred_check
          %p352 = pneg %p245
        $region42: #{tpu_custom_call.1} parent=11 // pred_check_branch
          %354 = sbr.rel (%p352) target = $region44
        $region43: #{tpu_custom_call.1} parent=11 // pred_region
          _
        $region44: #{tpu_custom_call.1} parent=11 // pred_fallthru
          _
      $region12: #{tpu_custom_call.1} parent=5 // pred_fallthru
        _
      %p355 = scmp.lt.s32.totalorder %s25, 2
      // Predicated region
      $region45: #{tpu_custom_call.1} parent=5 // pred_check
        %p356 = pneg %p355
      $region46: #{tpu_custom_call.1} parent=5 // pred_check_branch
        %358 = sbr.rel (%p356) target = $region48
      $region47: #{tpu_custom_call.1} parent=5 // pred_region
        // Predicated region
        $region49: #{tpu_custom_call.1} parent=47 // pred_check
          %p359 = pneg %p45
        $region50: #{tpu_custom_call.1} parent=47 // pred_check_branch
          %361 = sbr.rel (%p359) target = $region52
        $region51: #{tpu_custom_call.1} parent=47 // pred_region
          %s362 = sand.u32 %s35, 1
          %s363 = scalar_lea.sflag [#allocation4], %s362
          %s364 = sand.u32 %s35, 1
          %s365 = smul.addr %s364, 32
          %s366 = scalar_lea.vmem [#allocation3], %s365
          %s367 = smul.u32 4, %s25
          %s369 = ssub.s32 512, 512
          %370 = vsyncadd %s363, %s369
          %s371 = smul.addr %s367, 64
          %s372 = scalar_lea.hbm %s0, %s371
          %s373 = sshll.u32 %s366, 4
          %s374 = int_to_ptr.vmem [resolvable:$true] %s373
          %379 = dma.hbm_to_vmem [thread:$0]  %s372, 512, %s374, %s363, 512, 256, 16
        $region52: #{tpu_custom_call.1} parent=47 // pred_fallthru
          _
        // Predicated region
        $region53: #{tpu_custom_call.1} parent=47 // pred_check
          %p380 = pneg %p71
        $region54: #{tpu_custom_call.1} parent=47 // pred_check_branch
          %382 = sbr.rel (%p380) target = $region56
        $region55: #{tpu_custom_call.1} parent=47 // pred_region
          %s383 = sand.u32 %s25, 1
          %s384 = scalar_lea.sflag [#allocation7], %s383
          %s385 = sand.u32 %s61, 1
          %s386 = smul.addr %s385, 1024
          %s387 = scalar_lea.vmem [#allocation6], %s386
          %s388 = smul.u32 64, %s25
          %s390 = ssub.s32 16384, 16384
          %391 = vsyncadd %s384, %s390
          %s392 = smul.addr %s388, 4
          %s393 = smul.addr %s392, 64
          %s394 = scalar_lea.hbm %s1, %s393
          %s395 = sshll.u32 %s387, 4
          %s396 = int_to_ptr.vmem [resolvable:$true] %s395
          %401 = dma.hbm_to_vmem [thread:$0]  %s394, 16384, %s396, %s384, 256, 256, 16
        $region56: #{tpu_custom_call.1} parent=47 // pred_fallthru
          _
      $region48: #{tpu_custom_call.1} parent=5 // pred_fallthru
        _
      %p402 = scmp.le.s32.totalorder 1, %s25
      %p403 = scmp.lt.s32.totalorder %s25, 3
      %p404 = pnand %p402, %p403
      %p405 = pneg %p404
      // Predicated region
      $region57: #{tpu_custom_call.1} parent=5 // pred_check
        _
      $region58: #{tpu_custom_call.1} parent=5 // pred_check_branch
        %407 = sbr.rel (%p404) target = $region60
      $region59: #{tpu_custom_call.1} parent=5 // pred_region
        %s408 = ssub.s32 %s25, 1
        %s409 = sand.u32 %s38, 1
        %s410 = scalar_lea.sflag [#allocation4], %s409
        %s411 = sand.u32 %s38, 1
        %s412 = smul.addr %s411, 32
        %s413 = scalar_lea.vmem [#allocation3], %s412
        // Predicated region
        $region61: #{tpu_custom_call.1} parent=59 // pred_check
          %p414 = pneg %p51
        $region62: #{tpu_custom_call.1} parent=59 // pred_check_branch
          %416 = sbr.rel (%p414) target = $region64
        $region63: #{tpu_custom_call.1} parent=59 // pred_region
          %417 = dma.done %s410, 512
        $region64: #{tpu_custom_call.1} parent=59 // pred_fallthru
          _
        %s418 = sand.u32 %s30, 1
        %s419 = scalar_lea.sflag [#allocation7], %s418
        %s420 = sand.u32 %s64, 1
        %s421 = smul.addr %s420, 1024
        %s422 = scalar_lea.vmem [#allocation6], %s421
        // Predicated region
        $region65: #{tpu_custom_call.1} parent=59 // pred_check
          %p423 = pneg %p77
        $region66: #{tpu_custom_call.1} parent=59 // pred_check_branch
          %425 = sbr.rel (%p423) target = $region68
        $region67: #{tpu_custom_call.1} parent=59 // pred_region
          %426 = dma.done %s419, 16384
        $region68: #{tpu_custom_call.1} parent=59 // pred_fallthru
          _
        // Predicated region
        $region69: #{tpu_custom_call.1} parent=59 // pred_check
          %p427 = pneg %p119
        $region70: #{tpu_custom_call.1} parent=59 // pred_check_branch
          %429 = sbr.rel (%p427) target = $region72
        $region71: #{tpu_custom_call.1} parent=59 // pred_region
          %430 = dma.done [#allocation7], 8192
        $region72: #{tpu_custom_call.1} parent=59 // pred_fallthru
          _
        // Predicated region
        $region73: #{tpu_custom_call.1} parent=59 // pred_check
          %p431 = pneg %p140
        $region74: #{tpu_custom_call.1} parent=59 // pred_check_branch
          %433 = sbr.rel (%p431) target = $region76
        $region75: #{tpu_custom_call.1} parent=59 // pred_region
          %434 = dma.done [#allocation10], 8192
        $region76: #{tpu_custom_call.1} parent=59 // pred_fallthru
          _
        // Predicated region
        $region77: #{tpu_custom_call.1} parent=59 // pred_check
          %p435 = pneg %p161
        $region78: #{tpu_custom_call.1} parent=59 // pred_check_branch
          %437 = sbr.rel (%p435) target = $region80
        $region79: #{tpu_custom_call.1} parent=59 // pred_region
          %438 = dma.done [#allocation10], 8192
        $region80: #{tpu_custom_call.1} parent=59 // pred_fallthru
          _
        // Predicated region
        $region81: #{tpu_custom_call.1} parent=59 // pred_check
          %p439 = pneg %p182
        $region82: #{tpu_custom_call.1} parent=59 // pred_check_branch
          %441 = sbr.rel (%p439) target = $region84
        $region83: #{tpu_custom_call.1} parent=59 // pred_region
          %442 = dma.done [#allocation13], 8192
        $region84: #{tpu_custom_call.1} parent=59 // pred_fallthru
          _
        // Predicated region
        $region85: #{tpu_custom_call.1} parent=59 // pred_check
          %p443 = pneg %p224
        $region86: #{tpu_custom_call.1} parent=59 // pred_check_branch
          %445 = sbr.rel (%p443) target = $region88
        $region87: #{tpu_custom_call.1} parent=59 // pred_region
          %446 = dma.done [#allocation13], 2048
        $region88: #{tpu_custom_call.1} parent=59 // pred_fallthru
          _
        %s447 = sand.u32 %s38, 1
        %s448 = scalar_lea.sflag [#allocation4], %s447
        %s449 = sand.u32 %s38, 1
        %s450 = smul.addr %s449, 32
        %s451 = scalar_lea.vmem [#allocation3], %s450
        %p452 = pneg %p51
        %p453 = pneg %p48
        %s454 = sand.u32 %s30, 1
        %s455 = scalar_lea.sflag [#allocation7], %s454
        %s456 = sand.u32 %s64, 1
        %s457 = smul.addr %s456, 1024
        %s458 = scalar_lea.vmem [#allocation6], %s457
        %p459 = pneg %p77
        %p460 = pneg %p74
        %p461 = pneg %p98
        %p462 = pneg %p95
        %p463 = pneg %p119
        %p464 = pneg %p116
        %p465 = pneg %p140
        %p466 = pneg %p137
        %p467 = pneg %p161
        %p468 = pneg %p158
        %p469 = pneg %p182
        %p470 = pneg %p179
        %p471 = pneg %p203
        %p472 = pneg %p200
        %p473 = pneg %p224
        %p474 = pneg %p221
        %p475 = pneg %p245
        %p476 = pneg %p242
        %p477 = pneg %p266
        %p478 = pneg %p263
        %s479 = smul.u32 4, %s30
        %s480 = smul.u32 64, %s30
        %p482 = scmp.eq.s32.totalorder %s30, 0
        // Predicated region
        $region89: #{tpu_custom_call.1} parent=59 // pred_check
          %p483 = pneg %p482
        $region90: #{tpu_custom_call.1} parent=59 // pred_check_branch
          %485 = sbr.rel (%p483) target = $region92
        $region91: #{tpu_custom_call.1} parent=59 // pred_region
          %486 = vst [vmem:[#allocation2] sm:$0xff] 0.0
          %487 = vst [vmem:[#allocation2 + $0x8] sm:$0xff] 0.0
          %488 = vst [vmem:[#allocation2 + $0x10] sm:$0xff] 0.0
          %489 = vst [vmem:[#allocation2 + $0x18] sm:$0xff] 0.0
          %490 = vst [vmem:[#allocation2 + $0x20] sm:$0xff] 0.0
          %491 = vst [vmem:[#allocation2 + $0x28] sm:$0xff] 0.0
          %492 = vst [vmem:[#allocation2 + $0x30] sm:$0xff] 0.0
          %493 = vst [vmem:[#allocation2 + $0x38] sm:$0xff] 0.0
        $region92: #{tpu_custom_call.1} parent=59 // pred_fallthru
          _
        %v494 = vld [vmem:[#allocation2] sm:$0xff]
        %v495 = vld [vmem:[#allocation2 + $0x8] sm:$0xff]
        %v496 = vld [vmem:[#allocation2 + $0x10] sm:$0xff]
        %v497 = vld [vmem:[#allocation2 + $0x18] sm:$0xff]
        %v498 = vld [vmem:[#allocation2 + $0x20] sm:$0xff]
        %v499 = vld [vmem:[#allocation2 + $0x28] sm:$0xff]
        %v500 = vld [vmem:[#allocation2 + $0x30] sm:$0xff]
        %v501 = vld [vmem:[#allocation2 + $0x38] sm:$0xff]
        %v502 = vld [vmem:[%s413] sm:$0xff]
        %v503 = vld [vmem:[%s413 + $0x8] sm:$0xff]
        %v504 = vld [vmem:[%s413 + $0x10] sm:$0xff]
        %v505 = vld [vmem:[%s413 + $0x18] sm:$0xff]
        %v506 = vld [vmem:[%s422] sm:$0xff]
        %v507 = vld [vmem:[%s422 + $0x8] sm:$0xff]
        %v508 = vld [vmem:[%s422 + $0x10] sm:$0xff]
        %v509 = vld [vmem:[%s422 + $0x18] sm:$0xff]
        %v510 = vld [vmem:[%s422 + $0x20] sm:$0xff]
        %v511 = vld [vmem:[%s422 + $0x28] sm:$0xff]
        %v512 = vld [vmem:[%s422 + $0x30] sm:$0xff]
        %v513 = vld [vmem:[%s422 + $0x38] sm:$0xff]
        %v514 = vld [vmem:[%s422 + $0x40] sm:$0xff]
        %v515 = vld [vmem:[%s422 + $0x48] sm:$0xff]
        %v516 = vld [vmem:[%s422 + $0x50] sm:$0xff]
        %v517 = vld [vmem:[%s422 + $0x58] sm:$0xff]
        %v518 = vld [vmem:[%s422 + $0x60] sm:$0xff]
        %v519 = vld [vmem:[%s422 + $0x68] sm:$0xff]
        %v520 = vld [vmem:[%s422 + $0x70] sm:$0xff]
        %v521 = vld [vmem:[%s422 + $0x78] sm:$0xff]
        %v522 = vld [vmem:[%s422 + $0x80] sm:$0xff]
        %v523 = vld [vmem:[%s422 + $0x88] sm:$0xff]
        %v524 = vld [vmem:[%s422 + $0x90] sm:$0xff]
        %v525 = vld [vmem:[%s422 + $0x98] sm:$0xff]
        %v526 = vld [vmem:[%s422 + $0xa0] sm:$0xff]
        %v527 = vld [vmem:[%s422 + $0xa8] sm:$0xff]
        %v528 = vld [vmem:[%s422 + $0xb0] sm:$0xff]
        %v529 = vld [vmem:[%s422 + $0xb8] sm:$0xff]
        %v530 = vld [vmem:[%s422 + $0xc0] sm:$0xff]
        %v531 = vld [vmem:[%s422 + $0xc8] sm:$0xff]
        %v532 = vld [vmem:[%s422 + $0xd0] sm:$0xff]
        %v533 = vld [vmem:[%s422 + $0xd8] sm:$0xff]
        %v534 = vld [vmem:[%s422 + $0xe0] sm:$0xff]
        %v535 = vld [vmem:[%s422 + $0xe8] sm:$0xff]
        %v536 = vld [vmem:[%s422 + $0xf0] sm:$0xff]
        %v537 = vld [vmem:[%s422 + $0xf8] sm:$0xff]
        %v538 = vld [vmem:[%s422 + $0x100] sm:$0xff]
        %v539 = vld [vmem:[%s422 + $0x108] sm:$0xff]
        %v540 = vld [vmem:[%s422 + $0x110] sm:$0xff]
        %v541 = vld [vmem:[%s422 + $0x118] sm:$0xff]
        %v542 = vld [vmem:[%s422 + $0x120] sm:$0xff]
        %v543 = vld [vmem:[%s422 + $0x128] sm:$0xff]
        %v544 = vld [vmem:[%s422 + $0x130] sm:$0xff]
        %v545 = vld [vmem:[%s422 + $0x138] sm:$0xff]
        %v546 = vld [vmem:[%s422 + $0x140] sm:$0xff]
        %v547 = vld [vmem:[%s422 + $0x148] sm:$0xff]
        %v548 = vld [vmem:[%s422 + $0x150] sm:$0xff]
        %v549 = vld [vmem:[%s422 + $0x158] sm:$0xff]
        %v550 = vld [vmem:[%s422 + $0x160] sm:$0xff]
        %v551 = vld [vmem:[%s422 + $0x168] sm:$0xff]
        %v552 = vld [vmem:[%s422 + $0x170] sm:$0xff]
        %v553 = vld [vmem:[%s422 + $0x178] sm:$0xff]
        %v554 = vld [vmem:[%s422 + $0x180] sm:$0xff]
        %v555 = vld [vmem:[%s422 + $0x188] sm:$0xff]
        %v556 = vld [vmem:[%s422 + $0x190] sm:$0xff]
        %v557 = vld [vmem:[%s422 + $0x198] sm:$0xff]
        %v558 = vld [vmem:[%s422 + $0x1a0] sm:$0xff]
        %v559 = vld [vmem:[%s422 + $0x1a8] sm:$0xff]
        %v560 = vld [vmem:[%s422 + $0x1b0] sm:$0xff]
        %v561 = vld [vmem:[%s422 + $0x1b8] sm:$0xff]
        %v562 = vld [vmem:[%s422 + $0x1c0] sm:$0xff]
        %v563 = vld [vmem:[%s422 + $0x1c8] sm:$0xff]
        %v564 = vld [vmem:[%s422 + $0x1d0] sm:$0xff]
        %v565 = vld [vmem:[%s422 + $0x1d8] sm:$0xff]
        %v566 = vld [vmem:[%s422 + $0x1e0] sm:$0xff]
        %v567 = vld [vmem:[%s422 + $0x1e8] sm:$0xff]
        %v568 = vld [vmem:[%s422 + $0x1f0] sm:$0xff]
        %v569 = vld [vmem:[%s422 + $0x1f8] sm:$0xff]
        %v570 = vld [vmem:[%s422 + $0x200] sm:$0xff]
        %v571 = vld [vmem:[%s422 + $0x208] sm:$0xff]
        %v572 = vld [vmem:[%s422 + $0x210] sm:$0xff]
        %v573 = vld [vmem:[%s422 + $0x218] sm:$0xff]
        %v574 = vld [vmem:[%s422 + $0x220] sm:$0xff]
        %v575 = vld [vmem:[%s422 + $0x228] sm:$0xff]
        %v576 = vld [vmem:[%s422 + $0x230] sm:$0xff]
        %v577 = vld [vmem:[%s422 + $0x238] sm:$0xff]
        %v578 = vld [vmem:[%s422 + $0x240] sm:$0xff]
        %v579 = vld [vmem:[%s422 + $0x248] sm:$0xff]
        %v580 = vld [vmem:[%s422 + $0x250] sm:$0xff]
        %v581 = vld [vmem:[%s422 + $0x258] sm:$0xff]
        %v582 = vld [vmem:[%s422 + $0x260] sm:$0xff]
        %v583 = vld [vmem:[%s422 + $0x268] sm:$0xff]
        %v584 = vld [vmem:[%s422 + $0x270] sm:$0xff]
        %v585 = vld [vmem:[%s422 + $0x278] sm:$0xff]
        %v586 = vld [vmem:[%s422 + $0x280] sm:$0xff]
        %v587 = vld [vmem:[%s422 + $0x288] sm:$0xff]
        %v588 = vld [vmem:[%s422 + $0x290] sm:$0xff]
        %v589 = vld [vmem:[%s422 + $0x298] sm:$0xff]
        %v590 = vld [vmem:[%s422 + $0x2a0] sm:$0xff]
        %v591 = vld [vmem:[%s422 + $0x2a8] sm:$0xff]
        %v592 = vld [vmem:[%s422 + $0x2b0] sm:$0xff]
        %v593 = vld [vmem:[%s422 + $0x2b8] sm:$0xff]
        %v594 = vld [vmem:[%s422 + $0x2c0] sm:$0xff]
        %v595 = vld [vmem:[%s422 + $0x2c8] sm:$0xff]
        %v596 = vld [vmem:[%s422 + $0x2d0] sm:$0xff]
        %v597 = vld [vmem:[%s422 + $0x2d8] sm:$0xff]
        %v598 = vld [vmem:[%s422 + $0x2e0] sm:$0xff]
        %v599 = vld [vmem:[%s422 + $0x2e8] sm:$0xff]
        %v600 = vld [vmem:[%s422 + $0x2f0] sm:$0xff]
        %v601 = vld [vmem:[%s422 + $0x2f8] sm:$0xff]
        %v602 = vld [vmem:[%s422 + $0x300] sm:$0xff]
        %v603 = vld [vmem:[%s422 + $0x308] sm:$0xff]
        %v604 = vld [vmem:[%s422 + $0x310] sm:$0xff]
        %v605 = vld [vmem:[%s422 + $0x318] sm:$0xff]
        %v606 = vld [vmem:[%s422 + $0x320] sm:$0xff]
        %v607 = vld [vmem:[%s422 + $0x328] sm:$0xff]
        %v608 = vld [vmem:[%s422 + $0x330] sm:$0xff]
        %v609 = vld [vmem:[%s422 + $0x338] sm:$0xff]
        %v610 = vld [vmem:[%s422 + $0x340] sm:$0xff]
        %v611 = vld [vmem:[%s422 + $0x348] sm:$0xff]
        %v612 = vld [vmem:[%s422 + $0x350] sm:$0xff]
        %v613 = vld [vmem:[%s422 + $0x358] sm:$0xff]
        %v614 = vld [vmem:[%s422 + $0x360] sm:$0xff]
        %v615 = vld [vmem:[%s422 + $0x368] sm:$0xff]
        %v616 = vld [vmem:[%s422 + $0x370] sm:$0xff]
        %v617 = vld [vmem:[%s422 + $0x378] sm:$0xff]
        %v618 = vld [vmem:[%s422 + $0x380] sm:$0xff]
        %v619 = vld [vmem:[%s422 + $0x388] sm:$0xff]
        %v620 = vld [vmem:[%s422 + $0x390] sm:$0xff]
        %v621 = vld [vmem:[%s422 + $0x398] sm:$0xff]
        %v622 = vld [vmem:[%s422 + $0x3a0] sm:$0xff]
        %v623 = vld [vmem:[%s422 + $0x3a8] sm:$0xff]
        %v624 = vld [vmem:[%s422 + $0x3b0] sm:$0xff]
        %v625 = vld [vmem:[%s422 + $0x3b8] sm:$0xff]
        %v626 = vld [vmem:[%s422 + $0x3c0] sm:$0xff]
        %v627 = vld [vmem:[%s422 + $0x3c8] sm:$0xff]
        %v628 = vld [vmem:[%s422 + $0x3d0] sm:$0xff]
        %v629 = vld [vmem:[%s422 + $0x3d8] sm:$0xff]
        %v630 = vld [vmem:[%s422 + $0x3e0] sm:$0xff]
        %v631 = vld [vmem:[%s422 + $0x3e8] sm:$0xff]
        %v632 = vld [vmem:[%s422 + $0x3f0] sm:$0xff]
        %v633 = vld [vmem:[%s422 + $0x3f8] sm:$0xff]
        %v638 = vunpack.c.l.b16 %v502
        %v639 = vunpack.c.h.b16 %v502
        %v640 = vunpack.c.l.b16 %v503
        %v641 = vunpack.c.h.b16 %v503
        %v642 = vunpack.c.l.b16 %v504
        %v643 = vunpack.c.h.b16 %v504
        %v644 = vunpack.c.l.b16 %v505
        %v645 = vunpack.c.h.b16 %v505
        %v646 = vpack.c.b16 %v642, %v638
        %v647 = vpack.c.b16 %v643, %v639
        %v648 = vpack.c.b16 %v644, %v640
        %v649 = vpack.c.b16 %v645, %v641
        %v782 = vunpack.c.l.b16 %v506
        %v783 = vunpack.c.h.b16 %v506
        %v784 = vunpack.c.l.b16 %v507
        %v785 = vunpack.c.h.b16 %v507
        %v786 = vunpack.c.l.b16 %v508
        %v787 = vunpack.c.h.b16 %v508
        %v788 = vunpack.c.l.b16 %v509
        %v789 = vunpack.c.h.b16 %v509
        %v790 = vunpack.c.l.b16 %v510
        %v791 = vunpack.c.h.b16 %v510
        %v792 = vunpack.c.l.b16 %v511
        %v793 = vunpack.c.h.b16 %v511
        %v794 = vunpack.c.l.b16 %v512
        %v795 = vunpack.c.h.b16 %v512
        %v796 = vunpack.c.l.b16 %v513
        %v797 = vunpack.c.h.b16 %v513
        %v798 = vunpack.c.l.b16 %v514
        %v799 = vunpack.c.h.b16 %v514
        %v800 = vunpack.c.l.b16 %v515
        %v801 = vunpack.c.h.b16 %v515
        %v802 = vunpack.c.l.b16 %v516
        %v803 = vunpack.c.h.b16 %v516
        %v804 = vunpack.c.l.b16 %v517
        %v805 = vunpack.c.h.b16 %v517
        %v806 = vunpack.c.l.b16 %v518
        %v807 = vunpack.c.h.b16 %v518
        %v808 = vunpack.c.l.b16 %v519
        %v809 = vunpack.c.h.b16 %v519
        %v810 = vunpack.c.l.b16 %v520
        %v811 = vunpack.c.h.b16 %v520
        %v812 = vunpack.c.l.b16 %v521
        %v813 = vunpack.c.h.b16 %v521
        %v814 = vunpack.c.l.b16 %v522
        %v815 = vunpack.c.h.b16 %v522
        %v816 = vunpack.c.l.b16 %v523
        %v817 = vunpack.c.h.b16 %v523
        %v818 = vunpack.c.l.b16 %v524
        %v819 = vunpack.c.h.b16 %v524
        %v820 = vunpack.c.l.b16 %v525
        %v821 = vunpack.c.h.b16 %v525
        %v822 = vunpack.c.l.b16 %v526
        %v823 = vunpack.c.h.b16 %v526
        %v824 = vunpack.c.l.b16 %v527
        %v825 = vunpack.c.h.b16 %v527
        %v826 = vunpack.c.l.b16 %v528
        %v827 = vunpack.c.h.b16 %v528
        %v828 = vunpack.c.l.b16 %v529
        %v829 = vunpack.c.h.b16 %v529
        %v830 = vunpack.c.l.b16 %v530
        %v831 = vunpack.c.h.b16 %v530
        %v832 = vunpack.c.l.b16 %v531
        %v833 = vunpack.c.h.b16 %v531
        %v834 = vunpack.c.l.b16 %v532
        %v835 = vunpack.c.h.b16 %v532
        %v836 = vunpack.c.l.b16 %v533
        %v837 = vunpack.c.h.b16 %v533
        %v838 = vunpack.c.l.b16 %v534
        %v839 = vunpack.c.h.b16 %v534
        %v840 = vunpack.c.l.b16 %v535
        %v841 = vunpack.c.h.b16 %v535
        %v842 = vunpack.c.l.b16 %v536
        %v843 = vunpack.c.h.b16 %v536
        %v844 = vunpack.c.l.b16 %v537
        %v845 = vunpack.c.h.b16 %v537
        %v846 = vunpack.c.l.b16 %v538
        %v847 = vunpack.c.h.b16 %v538
        %v848 = vunpack.c.l.b16 %v539
        %v849 = vunpack.c.h.b16 %v539
        %v850 = vunpack.c.l.b16 %v540
        %v851 = vunpack.c.h.b16 %v540
        %v852 = vunpack.c.l.b16 %v541
        %v853 = vunpack.c.h.b16 %v541
        %v854 = vunpack.c.l.b16 %v542
        %v855 = vunpack.c.h.b16 %v542
        %v856 = vunpack.c.l.b16 %v543
        %v857 = vunpack.c.h.b16 %v543
        %v858 = vunpack.c.l.b16 %v544
        %v859 = vunpack.c.h.b16 %v544
        %v860 = vunpack.c.l.b16 %v545
        %v861 = vunpack.c.h.b16 %v545
        %v862 = vunpack.c.l.b16 %v546
        %v863 = vunpack.c.h.b16 %v546
        %v864 = vunpack.c.l.b16 %v547
        %v865 = vunpack.c.h.b16 %v547
        %v866 = vunpack.c.l.b16 %v548
        %v867 = vunpack.c.h.b16 %v548
        %v868 = vunpack.c.l.b16 %v549
        %v869 = vunpack.c.h.b16 %v549
        %v870 = vunpack.c.l.b16 %v550
        %v871 = vunpack.c.h.b16 %v550
        %v872 = vunpack.c.l.b16 %v551
        %v873 = vunpack.c.h.b16 %v551
        %v874 = vunpack.c.l.b16 %v552
        %v875 = vunpack.c.h.b16 %v552
        %v876 = vunpack.c.l.b16 %v553
        %v877 = vunpack.c.h.b16 %v553
        %v878 = vunpack.c.l.b16 %v554
        %v879 = vunpack.c.h.b16 %v554
        %v880 = vunpack.c.l.b16 %v555
        %v881 = vunpack.c.h.b16 %v555
        %v882 = vunpack.c.l.b16 %v556
        %v883 = vunpack.c.h.b16 %v556
        %v884 = vunpack.c.l.b16 %v557
        %v885 = vunpack.c.h.b16 %v557
        %v886 = vunpack.c.l.b16 %v558
        %v887 = vunpack.c.h.b16 %v558
        %v888 = vunpack.c.l.b16 %v559
        %v889 = vunpack.c.h.b16 %v559
        %v890 = vunpack.c.l.b16 %v560
        %v891 = vunpack.c.h.b16 %v560
        %v892 = vunpack.c.l.b16 %v561
        %v893 = vunpack.c.h.b16 %v561
        %v894 = vunpack.c.l.b16 %v562
        %v895 = vunpack.c.h.b16 %v562
        %v896 = vunpack.c.l.b16 %v563
        %v897 = vunpack.c.h.b16 %v563
        %v898 = vunpack.c.l.b16 %v564
        %v899 = vunpack.c.h.b16 %v564
        %v900 = vunpack.c.l.b16 %v565
        %v901 = vunpack.c.h.b16 %v565
        %v902 = vunpack.c.l.b16 %v566
        %v903 = vunpack.c.h.b16 %v566
        %v904 = vunpack.c.l.b16 %v567
        %v905 = vunpack.c.h.b16 %v567
        %v906 = vunpack.c.l.b16 %v568
        %v907 = vunpack.c.h.b16 %v568
        %v908 = vunpack.c.l.b16 %v569
        %v909 = vunpack.c.h.b16 %v569
        %v910 = vunpack.c.l.b16 %v570
        %v911 = vunpack.c.h.b16 %v570
        %v912 = vunpack.c.l.b16 %v571
        %v913 = vunpack.c.h.b16 %v571
        %v914 = vunpack.c.l.b16 %v572
        %v915 = vunpack.c.h.b16 %v572
        %v916 = vunpack.c.l.b16 %v573
        %v917 = vunpack.c.h.b16 %v573
        %v918 = vunpack.c.l.b16 %v574
        %v919 = vunpack.c.h.b16 %v574
        %v920 = vunpack.c.l.b16 %v575
        %v921 = vunpack.c.h.b16 %v575
        %v922 = vunpack.c.l.b16 %v576
        %v923 = vunpack.c.h.b16 %v576
        %v924 = vunpack.c.l.b16 %v577
        %v925 = vunpack.c.h.b16 %v577
        %v926 = vunpack.c.l.b16 %v578
        %v927 = vunpack.c.h.b16 %v578
        %v928 = vunpack.c.l.b16 %v579
        %v929 = vunpack.c.h.b16 %v579
        %v930 = vunpack.c.l.b16 %v580
        %v931 = vunpack.c.h.b16 %v580
        %v932 = vunpack.c.l.b16 %v581
        %v933 = vunpack.c.h.b16 %v581
        %v934 = vunpack.c.l.b16 %v582
        %v935 = vunpack.c.h.b16 %v582
        %v936 = vunpack.c.l.b16 %v583
        %v937 = vunpack.c.h.b16 %v583
        %v938 = vunpack.c.l.b16 %v584
        %v939 = vunpack.c.h.b16 %v584
        %v940 = vunpack.c.l.b16 %v585
        %v941 = vunpack.c.h.b16 %v585
        %v942 = vunpack.c.l.b16 %v586
        %v943 = vunpack.c.h.b16 %v586
        %v944 = vunpack.c.l.b16 %v587
        %v945 = vunpack.c.h.b16 %v587
        %v946 = vunpack.c.l.b16 %v588
        %v947 = vunpack.c.h.b16 %v588
        %v948 = vunpack.c.l.b16 %v589
        %v949 = vunpack.c.h.b16 %v589
        %v950 = vunpack.c.l.b16 %v590
        %v951 = vunpack.c.h.b16 %v590
        %v952 = vunpack.c.l.b16 %v591
        %v953 = vunpack.c.h.b16 %v591
        %v954 = vunpack.c.l.b16 %v592
        %v955 = vunpack.c.h.b16 %v592
        %v956 = vunpack.c.l.b16 %v593
        %v957 = vunpack.c.h.b16 %v593
        %v958 = vunpack.c.l.b16 %v594
        %v959 = vunpack.c.h.b16 %v594
        %v960 = vunpack.c.l.b16 %v595
        %v961 = vunpack.c.h.b16 %v595
        %v962 = vunpack.c.l.b16 %v596
        %v963 = vunpack.c.h.b16 %v596
        %v964 = vunpack.c.l.b16 %v597
        %v965 = vunpack.c.h.b16 %v597
        %v966 = vunpack.c.l.b16 %v598
        %v967 = vunpack.c.h.b16 %v598
        %v968 = vunpack.c.l.b16 %v599
        %v969 = vunpack.c.h.b16 %v599
        %v970 = vunpack.c.l.b16 %v600
        %v971 = vunpack.c.h.b16 %v600
        %v972 = vunpack.c.l.b16 %v601
        %v973 = vunpack.c.h.b16 %v601
        %v974 = vunpack.c.l.b16 %v602
        %v975 = vunpack.c.h.b16 %v602
        %v976 = vunpack.c.l.b16 %v603
        %v977 = vunpack.c.h.b16 %v603
        %v978 = vunpack.c.l.b16 %v604
        %v979 = vunpack.c.h.b16 %v604
        %v980 = vunpack.c.l.b16 %v605
        %v981 = vunpack.c.h.b16 %v605
        %v982 = vunpack.c.l.b16 %v606
        %v983 = vunpack.c.h.b16 %v606
        %v984 = vunpack.c.l.b16 %v607
        %v985 = vunpack.c.h.b16 %v607
        %v986 = vunpack.c.l.b16 %v608
        %v987 = vunpack.c.h.b16 %v608
        %v988 = vunpack.c.l.b16 %v609
        %v989 = vunpack.c.h.b16 %v609
        %v990 = vunpack.c.l.b16 %v610
        %v991 = vunpack.c.h.b16 %v610
        %v992 = vunpack.c.l.b16 %v611
        %v993 = vunpack.c.h.b16 %v611
        %v994 = vunpack.c.l.b16 %v612
        %v995 = vunpack.c.h.b16 %v612
        %v996 = vunpack.c.l.b16 %v613
        %v997 = vunpack.c.h.b16 %v613
        %v998 = vunpack.c.l.b16 %v614
        %v999 = vunpack.c.h.b16 %v614
        %v1000 = vunpack.c.l.b16 %v615
        %v1001 = vunpack.c.h.b16 %v615
        %v1002 = vunpack.c.l.b16 %v616
        %v1003 = vunpack.c.h.b16 %v616
        %v1004 = vunpack.c.l.b16 %v617
        %v1005 = vunpack.c.h.b16 %v617
        %v1006 = vunpack.c.l.b16 %v618
        %v1007 = vunpack.c.h.b16 %v618
        %v1008 = vunpack.c.l.b16 %v619
        %v1009 = vunpack.c.h.b16 %v619
        %v1010 = vunpack.c.l.b16 %v620
        %v1011 = vunpack.c.h.b16 %v620
        %v1012 = vunpack.c.l.b16 %v621
        %v1013 = vunpack.c.h.b16 %v621
        %v1014 = vunpack.c.l.b16 %v622
        %v1015 = vunpack.c.h.b16 %v622
        %v1016 = vunpack.c.l.b16 %v623
        %v1017 = vunpack.c.h.b16 %v623
        %v1018 = vunpack.c.l.b16 %v624
        %v1019 = vunpack.c.h.b16 %v624
        %v1020 = vunpack.c.l.b16 %v625
        %v1021 = vunpack.c.h.b16 %v625
        %v1022 = vunpack.c.l.b16 %v626
        %v1023 = vunpack.c.h.b16 %v626
        %v1024 = vunpack.c.l.b16 %v627
        %v1025 = vunpack.c.h.b16 %v627
        %v1026 = vunpack.c.l.b16 %v628
        %v1027 = vunpack.c.h.b16 %v628
        %v1028 = vunpack.c.l.b16 %v629
        %v1029 = vunpack.c.h.b16 %v629
        %v1030 = vunpack.c.l.b16 %v630
        %v1031 = vunpack.c.h.b16 %v630
        %v1032 = vunpack.c.l.b16 %v631
        %v1033 = vunpack.c.h.b16 %v631
        %v1034 = vunpack.c.l.b16 %v632
        %v1035 = vunpack.c.h.b16 %v632
        %v1036 = vunpack.c.l.b16 %v633
        %v1037 = vunpack.c.h.b16 %v633
        %v1038 = vpack.c.b16 %v786, %v782
        %v1039 = vpack.c.b16 %v787, %v783
        %v1040 = vpack.c.b16 %v788, %v784
        %v1041 = vpack.c.b16 %v789, %v785
        %v1042 = vpack.c.b16 %v794, %v790
        %v1043 = vpack.c.b16 %v795, %v791
        %v1044 = vpack.c.b16 %v796, %v792
        %v1045 = vpack.c.b16 %v797, %v793
        %v1046 = vpack.c.b16 %v802, %v798
        %v1047 = vpack.c.b16 %v803, %v799
        %v1048 = vpack.c.b16 %v804, %v800
        %v1049 = vpack.c.b16 %v805, %v801
        %v1050 = vpack.c.b16 %v810, %v806
        %v1051 = vpack.c.b16 %v811, %v807
        %v1052 = vpack.c.b16 %v812, %v808
        %v1053 = vpack.c.b16 %v813, %v809
        %v1054 = vpack.c.b16 %v818, %v814
        %v1055 = vpack.c.b16 %v819, %v815
        %v1056 = vpack.c.b16 %v820, %v816
        %v1057 = vpack.c.b16 %v821, %v817
        %v1058 = vpack.c.b16 %v826, %v822
        %v1059 = vpack.c.b16 %v827, %v823
        %v1060 = vpack.c.b16 %v828, %v824
        %v1061 = vpack.c.b16 %v829, %v825
        %v1062 = vpack.c.b16 %v834, %v830
        %v1063 = vpack.c.b16 %v835, %v831
        %v1064 = vpack.c.b16 %v836, %v832
        %v1065 = vpack.c.b16 %v837, %v833
        %v1066 = vpack.c.b16 %v842, %v838
        %v1067 = vpack.c.b16 %v843, %v839
        %v1068 = vpack.c.b16 %v844, %v840
        %v1069 = vpack.c.b16 %v845, %v841
        %v1070 = vpack.c.b16 %v850, %v846
        %v1071 = vpack.c.b16 %v851, %v847
        %v1072 = vpack.c.b16 %v852, %v848
        %v1073 = vpack.c.b16 %v853, %v849
        %v1074 = vpack.c.b16 %v858, %v854
        %v1075 = vpack.c.b16 %v859, %v855
        %v1076 = vpack.c.b16 %v860, %v856
        %v1077 = vpack.c.b16 %v861, %v857
        %v1078 = vpack.c.b16 %v866, %v862
        %v1079 = vpack.c.b16 %v867, %v863
        %v1080 = vpack.c.b16 %v868, %v864
        %v1081 = vpack.c.b16 %v869, %v865
        %v1082 = vpack.c.b16 %v874, %v870
        %v1083 = vpack.c.b16 %v875, %v871
        %v1084 = vpack.c.b16 %v876, %v872
        %v1085 = vpack.c.b16 %v877, %v873
        %v1086 = vpack.c.b16 %v882, %v878
        %v1087 = vpack.c.b16 %v883, %v879
        %v1088 = vpack.c.b16 %v884, %v880
        %v1089 = vpack.c.b16 %v885, %v881
        %v1090 = vpack.c.b16 %v890, %v886
        %v1091 = vpack.c.b16 %v891, %v887
        %v1092 = vpack.c.b16 %v892, %v888
        %v1093 = vpack.c.b16 %v893, %v889
        %v1094 = vpack.c.b16 %v898, %v894
        %v1095 = vpack.c.b16 %v899, %v895
        %v1096 = vpack.c.b16 %v900, %v896
        %v1097 = vpack.c.b16 %v901, %v897
        %v1098 = vpack.c.b16 %v906, %v902
        %v1099 = vpack.c.b16 %v907, %v903
        %v1100 = vpack.c.b16 %v908, %v904
        %v1101 = vpack.c.b16 %v909, %v905
        %v1102 = vpack.c.b16 %v914, %v910
        %v1103 = vpack.c.b16 %v915, %v911
        %v1104 = vpack.c.b16 %v916, %v912
        %v1105 = vpack.c.b16 %v917, %v913
        %v1106 = vpack.c.b16 %v922, %v918
        %v1107 = vpack.c.b16 %v923, %v919
        %v1108 = vpack.c.b16 %v924, %v920
        %v1109 = vpack.c.b16 %v925, %v921
        %v1110 = vpack.c.b16 %v930, %v926
        %v1111 = vpack.c.b16 %v931, %v927
        %v1112 = vpack.c.b16 %v932, %v928
        %v1113 = vpack.c.b16 %v933, %v929
        %v1114 = vpack.c.b16 %v938, %v934
        %v1115 = vpack.c.b16 %v939, %v935
        %v1116 = vpack.c.b16 %v940, %v936
        %v1117 = vpack.c.b16 %v941, %v937
        %v1118 = vpack.c.b16 %v946, %v942
        %v1119 = vpack.c.b16 %v947, %v943
        %v1120 = vpack.c.b16 %v948, %v944
        %v1121 = vpack.c.b16 %v949, %v945
        %v1122 = vpack.c.b16 %v954, %v950
        %v1123 = vpack.c.b16 %v955, %v951
        %v1124 = vpack.c.b16 %v956, %v952
        %v1125 = vpack.c.b16 %v957, %v953
        %v1126 = vpack.c.b16 %v962, %v958
        %v1127 = vpack.c.b16 %v963, %v959
        %v1128 = vpack.c.b16 %v964, %v960
        %v1129 = vpack.c.b16 %v965, %v961
        %v1130 = vpack.c.b16 %v970, %v966
        %v1131 = vpack.c.b16 %v971, %v967
        %v1132 = vpack.c.b16 %v972, %v968
        %v1133 = vpack.c.b16 %v973, %v969
        %v1134 = vpack.c.b16 %v978, %v974
        %v1135 = vpack.c.b16 %v979, %v975
        %v1136 = vpack.c.b16 %v980, %v976
        %v1137 = vpack.c.b16 %v981, %v977
        %v1138 = vpack.c.b16 %v986, %v982
        %v1139 = vpack.c.b16 %v987, %v983
        %v1140 = vpack.c.b16 %v988, %v984
        %v1141 = vpack.c.b16 %v989, %v985
        %v1142 = vpack.c.b16 %v994, %v990
        %v1143 = vpack.c.b16 %v995, %v991
        %v1144 = vpack.c.b16 %v996, %v992
        %v1145 = vpack.c.b16 %v997, %v993
        %v1146 = vpack.c.b16 %v1002, %v998
        %v1147 = vpack.c.b16 %v1003, %v999
        %v1148 = vpack.c.b16 %v1004, %v1000
        %v1149 = vpack.c.b16 %v1005, %v1001
        %v1150 = vpack.c.b16 %v1010, %v1006
        %v1151 = vpack.c.b16 %v1011, %v1007
        %v1152 = vpack.c.b16 %v1012, %v1008
        %v1153 = vpack.c.b16 %v1013, %v1009
        %v1154 = vpack.c.b16 %v1018, %v1014
        %v1155 = vpack.c.b16 %v1019, %v1015
        %v1156 = vpack.c.b16 %v1020, %v1016
        %v1157 = vpack.c.b16 %v1021, %v1017
        %v1158 = vpack.c.b16 %v1026, %v1022
        %v1159 = vpack.c.b16 %v1027, %v1023
        %v1160 = vpack.c.b16 %v1028, %v1024
        %v1161 = vpack.c.b16 %v1029, %v1025
        %v1162 = vpack.c.b16 %v1034, %v1030
        %v1163 = vpack.c.b16 %v1035, %v1031
        %v1164 = vpack.c.b16 %v1036, %v1032
        %v1165 = vpack.c.b16 %v1037, %v1033
        %1294 = vmatprep.subr.bf16.mxu0 %v1039
        %1295 = vmatpush1.bf16.msra.mxu0 %v1038
        %1296 = vmatprep.subr.bf16.mxu0 %v1043
        %1297 = vmatpush1.bf16.msra.mxu0 %v1042
        %1298 = vmatprep.subr.bf16.mxu0 %v1047
        %1299 = vmatpush1.bf16.msra.mxu0 %v1046
        %1300 = vmatprep.subr.bf16.mxu0 %v1051
        %1301 = vmatpush1.bf16.msra.mxu0 %v1050
        %1302 = vmatprep.subr.bf16.mxu0 %v1055
        %1303 = vmatpush1.bf16.msra.mxu0 %v1054
        %1304 = vmatprep.subr.bf16.mxu0 %v1059
        %1305 = vmatpush1.bf16.msra.mxu0 %v1058
        %1306 = vmatprep.subr.bf16.mxu0 %v1063
        %1307 = vmatpush1.bf16.msra.mxu0 %v1062
        %1308 = vmatprep.subr.bf16.mxu0 %v1067
        %1309 = vmatpush1.bf16.msra.mxu0 %v1066
        %1310 = vmatprep.subr.bf16.mxu0 %v1071
        %1311 = vmatpush1.bf16.msra.mxu0 %v1070
        %1312 = vmatprep.subr.bf16.mxu0 %v1075
        %1313 = vmatpush1.bf16.msra.mxu0 %v1074
        %1314 = vmatprep.subr.bf16.mxu0 %v1079
        %1315 = vmatpush1.bf16.msra.mxu0 %v1078
        %1316 = vmatprep.subr.bf16.mxu0 %v1083
        %1317 = vmatpush1.bf16.msra.mxu0 %v1082
        %1318 = vmatprep.subr.bf16.mxu0 %v1087
        %1319 = vmatpush1.bf16.msra.mxu0 %v1086
        %1320 = vmatprep.subr.bf16.mxu0 %v1091
        %1321 = vmatpush1.bf16.msra.mxu0 %v1090
        %1322 = vmatprep.subr.bf16.mxu0 %v1095
        %1323 = vmatpush1.bf16.msra.mxu0 %v1094
        %1324 = vmatprep.subr.bf16.mxu0 %v1099
        %1325 = vmatpush1.bf16.msra.mxu0 %v1098
        %1326 = vmatprep.mubr.bf16.mxu0 %v647
        %1327 = vmatmul.mubr.bf16.gmra.mrb[0].mxu0 %v646
        %v1328 = vpop.f32.mrb[0].mxu0
        %v1329 = vadd.f32 0.0, %v1328
        %v1330 = vpop.f32.mrb[0].mxu0
        %v1331 = vadd.f32 0.0, %v1330
        %v1332 = vpop.f32.mrb[0].mxu0
        %v1333 = vadd.f32 0.0, %v1332
        %v1334 = vpop.f32.mrb[0].mxu0
        %v1335 = vadd.f32 0.0, %v1334
        %1336 = vdwg.mxu0
        %1337 = vmatprep.subr.bf16.mxu0 %v1103
        %1338 = vmatpush1.bf16.msra.mxu0 %v1102
        %1339 = vmatprep.subr.bf16.mxu0 %v1107
        %1340 = vmatpush1.bf16.msra.mxu0 %v1106
        %1341 = vmatprep.subr.bf16.mxu0 %v1111
        %1342 = vmatpush1.bf16.msra.mxu0 %v1110
        %1343 = vmatprep.subr.bf16.mxu0 %v1115
        %1344 = vmatpush1.bf16.msra.mxu0 %v1114
        %1345 = vmatprep.subr.bf16.mxu0 %v1119
        %1346 = vmatpush1.bf16.msra.mxu0 %v1118
        %1347 = vmatprep.subr.bf16.mxu0 %v1123
        %1348 = vmatpush1.bf16.msra.mxu0 %v1122
        %1349 = vmatprep.subr.bf16.mxu0 %v1127
        %1350 = vmatpush1.bf16.msra.mxu0 %v1126
        %1351 = vmatprep.subr.bf16.mxu0 %v1131
        %1352 = vmatpush1.bf16.msra.mxu0 %v1130
        %1353 = vmatprep.subr.bf16.mxu0 %v1135
        %1354 = vmatpush1.bf16.msra.mxu0 %v1134
        %1355 = vmatprep.subr.bf16.mxu0 %v1139
        %1356 = vmatpush1.bf16.msra.mxu0 %v1138
        %1357 = vmatprep.subr.bf16.mxu0 %v1143
        %1358 = vmatpush1.bf16.msra.mxu0 %v1142
        %1359 = vmatprep.subr.bf16.mxu0 %v1147
        %1360 = vmatpush1.bf16.msra.mxu0 %v1146
        %1361 = vmatprep.subr.bf16.mxu0 %v1151
        %1362 = vmatpush1.bf16.msra.mxu0 %v1150
        %1363 = vmatprep.subr.bf16.mxu0 %v1155
        %1364 = vmatpush1.bf16.msra.mxu0 %v1154
        %1365 = vmatprep.subr.bf16.mxu0 %v1159
        %1366 = vmatpush1.bf16.msra.mxu0 %v1158
        %1367 = vmatprep.subr.bf16.mxu0 %v1163
        %1368 = vmatpush1.bf16.msra.mxu0 %v1162
        %1369 = vmatprep.mubr.bf16.mxu0 %v649
        %1370 = vmatmul.mubr.bf16.gmra.mrb[0].mxu0 %v648
        %v1371 = vpop.f32.mrb[0].mxu0
        %v1372 = vadd.f32 %v1329, %v1371
        %v1373 = vpop.f32.mrb[0].mxu0
        %v1374 = vadd.f32 %v1331, %v1373
        %v1375 = vpop.f32.mrb[0].mxu0
        %v1376 = vadd.f32 %v1333, %v1375
        %v1377 = vpop.f32.mrb[0].mxu0
        %v1378 = vadd.f32 %v1335, %v1377
        %1379 = vdwg.mxu0
        %1380 = vmatprep.subr.bf16.mxu0 %v1041
        %1381 = vmatpush1.bf16.msra.mxu0 %v1040
        %1382 = vmatprep.subr.bf16.mxu0 %v1045
        %1383 = vmatpush1.bf16.msra.mxu0 %v1044
        %1384 = vmatprep.subr.bf16.mxu0 %v1049
        %1385 = vmatpush1.bf16.msra.mxu0 %v1048
        %1386 = vmatprep.subr.bf16.mxu0 %v1053
        %1387 = vmatpush1.bf16.msra.mxu0 %v1052
        %1388 = vmatprep.subr.bf16.mxu0 %v1057
        %1389 = vmatpush1.bf16.msra.mxu0 %v1056
        %1390 = vmatprep.subr.bf16.mxu0 %v1061
        %1391 = vmatpush1.bf16.msra.mxu0 %v1060
        %1392 = vmatprep.subr.bf16.mxu0 %v1065
        %1393 = vmatpush1.bf16.msra.mxu0 %v1064
        %1394 = vmatprep.subr.bf16.mxu0 %v1069
        %1395 = vmatpush1.bf16.msra.mxu0 %v1068
        %1396 = vmatprep.subr.bf16.mxu0 %v1073
        %1397 = vmatpush1.bf16.msra.mxu0 %v1072
        %1398 = vmatprep.subr.bf16.mxu0 %v1077
        %1399 = vmatpush1.bf16.msra.mxu0 %v1076
        %1400 = vmatprep.subr.bf16.mxu0 %v1081
        %1401 = vmatpush1.bf16.msra.mxu0 %v1080
        %1402 = vmatprep.subr.bf16.mxu0 %v1085
        %1403 = vmatpush1.bf16.msra.mxu0 %v1084
        %1404 = vmatprep.subr.bf16.mxu0 %v1089
        %1405 = vmatpush1.bf16.msra.mxu0 %v1088
        %1406 = vmatprep.subr.bf16.mxu0 %v1093
        %1407 = vmatpush1.bf16.msra.mxu0 %v1092
        %1408 = vmatprep.subr.bf16.mxu0 %v1097
        %1409 = vmatpush1.bf16.msra.mxu0 %v1096
        %1410 = vmatprep.subr.bf16.mxu0 %v1101
        %1411 = vmatpush1.bf16.msra.mxu0 %v1100
        %1412 = vmatprep.mubr.bf16.mxu0 %v647
        %1413 = vmatmul.mubr.bf16.gmra.mrb[0].mxu0 %v646
        %v1414 = vpop.f32.mrb[0].mxu0
        %v1415 = vadd.f32 0.0, %v1414
        %v1416 = vpop.f32.mrb[0].mxu0
        %v1417 = vadd.f32 0.0, %v1416
        %v1418 = vpop.f32.mrb[0].mxu0
        %v1419 = vadd.f32 0.0, %v1418
        %v1420 = vpop.f32.mrb[0].mxu0
        %v1421 = vadd.f32 0.0, %v1420
        %1422 = vdwg.mxu0
        %1423 = vmatprep.subr.bf16.mxu0 %v1105
        %1424 = vmatpush1.bf16.msra.mxu0 %v1104
        %1425 = vmatprep.subr.bf16.mxu0 %v1109
        %1426 = vmatpush1.bf16.msra.mxu0 %v1108
        %1427 = vmatprep.subr.bf16.mxu0 %v1113
        %1428 = vmatpush1.bf16.msra.mxu0 %v1112
        %1429 = vmatprep.subr.bf16.mxu0 %v1117
        %1430 = vmatpush1.bf16.msra.mxu0 %v1116
        %1431 = vmatprep.subr.bf16.mxu0 %v1121
        %1432 = vmatpush1.bf16.msra.mxu0 %v1120
        %1433 = vmatprep.subr.bf16.mxu0 %v1125
        %1434 = vmatpush1.bf16.msra.mxu0 %v1124
        %1435 = vmatprep.subr.bf16.mxu0 %v1129
        %1436 = vmatpush1.bf16.msra.mxu0 %v1128
        %1437 = vmatprep.subr.bf16.mxu0 %v1133
        %1438 = vmatpush1.bf16.msra.mxu0 %v1132
        %1439 = vmatprep.subr.bf16.mxu0 %v1137
        %1440 = vmatpush1.bf16.msra.mxu0 %v1136
        %1441 = vmatprep.subr.bf16.mxu0 %v1141
        %1442 = vmatpush1.bf16.msra.mxu0 %v1140
        %1443 = vmatprep.subr.bf16.mxu0 %v1145
        %1444 = vmatpush1.bf16.msra.mxu0 %v1144
        %1445 = vmatprep.subr.bf16.mxu0 %v1149
        %1446 = vmatpush1.bf16.msra.mxu0 %v1148
        %1447 = vmatprep.subr.bf16.mxu0 %v1153
        %1448 = vmatpush1.bf16.msra.mxu0 %v1152
        %1449 = vmatprep.subr.bf16.mxu0 %v1157
        %1450 = vmatpush1.bf16.msra.mxu0 %v1156
        %1451 = vmatprep.subr.bf16.mxu0 %v1161
        %1452 = vmatpush1.bf16.msra.mxu0 %v1160
        %1453 = vmatprep.subr.bf16.mxu0 %v1165
        %1454 = vmatpush1.bf16.msra.mxu0 %v1164
        %1455 = vmatprep.mubr.bf16.mxu0 %v649
        %1456 = vmatmul.mubr.bf16.gmra.mrb[0].mxu0 %v648
        %v1457 = vpop.f32.mrb[0].mxu0
        %v1458 = vadd.f32 %v1415, %v1457
        %v1459 = vpop.f32.mrb[0].mxu0
        %v1460 = vadd.f32 %v1417, %v1459
        %v1461 = vpop.f32.mrb[0].mxu0
        %v1462 = vadd.f32 %v1419, %v1461
        %v1463 = vpop.f32.mrb[0].mxu0
        %v1464 = vadd.f32 %v1421, %v1463
        %1465 = vdwg.mxu0
        %v1466 = vadd.f32 %v494, %v1372
        %v1467 = vadd.f32 %v495, %v1374
        %v1468 = vadd.f32 %v496, %v1458
        %v1469 = vadd.f32 %v497, %v1460
        %v1470 = vadd.f32 %v498, %v1376
        %v1471 = vadd.f32 %v499, %v1378
        %v1472 = vadd.f32 %v500, %v1462
        %v1473 = vadd.f32 %v501, %v1464
        %1474 = vst [vmem:[#allocation2] sm:$0xff] %v1466
        %1475 = vst [vmem:[#allocation2 + $0x8] sm:$0xff] %v1467
        %1476 = vst [vmem:[#allocation2 + $0x10] sm:$0xff] %v1468
        %1477 = vst [vmem:[#allocation2 + $0x18] sm:$0xff] %v1469
        %1478 = vst [vmem:[#allocation2 + $0x20] sm:$0xff] %v1470
        %1479 = vst [vmem:[#allocation2 + $0x28] sm:$0xff] %v1471
        %1480 = vst [vmem:[#allocation2 + $0x30] sm:$0xff] %v1472
        %1481 = vst [vmem:[#allocation2 + $0x38] sm:$0xff] %v1473
        %p1482 = scmp.eq.s32.totalorder %s30, 1
        // Predicated region
        $region93: #{tpu_custom_call.1} parent=59 // pred_check
          %p1483 = pneg %p1482
        $region94: #{tpu_custom_call.1} parent=59 // pred_check_branch
          %1485 = sbr.rel (%p1483) target = $region96
        $region95: #{tpu_custom_call.1} parent=59 // pred_region
          %v1486 = vld [vmem:[#allocation2] sm:$0xff]
          %v1487 = vld [vmem:[#allocation2 + $0x8] sm:$0xff]
          %v1488 = vld [vmem:[#allocation2 + $0x10] sm:$0xff]
          %v1489 = vld [vmem:[#allocation2 + $0x18] sm:$0xff]
          %v1490 = vld [vmem:[#allocation2 + $0x20] sm:$0xff]
          %v1491 = vld [vmem:[#allocation2 + $0x28] sm:$0xff]
          %v1492 = vld [vmem:[#allocation2 + $0x30] sm:$0xff]
          %v1493 = vld [vmem:[#allocation2 + $0x38] sm:$0xff]
          %v1494 = vld [vmem:[%s2] sm:$0xf]
          %v1496 = vlaneseq
          %v1497 = vshrl.u32 %v1496, 7
          %v1498 = vsub.s32 0, %v1497
          %v1499 = vrot.slane %v1494, %v1498
          %v1500 = vlaneseq
          %v1501 = vshrl.u32 %v1500, 7
          %v1502 = vsub.s32 1, %v1501
          %v1503 = vrot.slane %v1494, %v1502
          %v1504 = vlaneseq
          %v1505 = vshrl.u32 %v1504, 7
          %v1506 = vsub.s32 2, %v1505
          %v1507 = vrot.slane %v1494, %v1506
          %v1508 = vlaneseq
          %v1509 = vshrl.u32 %v1508, 7
          %v1510 = vsub.s32 3, %v1509
          %v1511 = vrot.slane %v1494, %v1510
          %v1516 = vadd.f32 %v1486, %v1499
          %v1517 = vadd.f32 %v1487, %v1503
          %v1518 = vadd.f32 %v1488, %v1507
          %v1519 = vadd.f32 %v1489, %v1511
          %v1520 = vadd.f32 %v1490, %v1499
          %v1521 = vadd.f32 %v1491, %v1503
          %v1522 = vadd.f32 %v1492, %v1507
          %v1523 = vadd.f32 %v1493, %v1511
          %v1524 = vmul.f32 %v1516, %v1516
          %v1525 = vmul.f32 %v1517, %v1517
          %v1526 = vmul.f32 %v1518, %v1518
          %v1527 = vmul.f32 %v1519, %v1519
          %v1528 = vmul.f32 %v1520, %v1520
          %v1529 = vmul.f32 %v1521, %v1521
          %v1530 = vmul.f32 %v1522, %v1522
          %v1531 = vmul.f32 %v1523, %v1523
          %v1532 = vadd.f32 %v1524, %v1525
          %v1533 = vadd.f32 %v1532, %v1526
          %v1534 = vadd.f32 %v1533, %v1527
          %1535 = vadd.xlane.f32.xlu0 %v1534
          %v1536 = vpop.xlane.xlu0 %1535
          %v1537 = vadd.f32 %v1528, %v1529
          %v1538 = vadd.f32 %v1537, %v1530
          %v1539 = vadd.f32 %v1538, %v1531
          %1540 = vadd.xlane.f32.xlu0 %v1539
          %v1541 = vpop.xlane.xlu0 %1540
          %v1542 = vadd.f32 %v1536, 1e-12
          %v1543 = vadd.f32 %v1541, 1e-12
          %v1544 = vrsqrt.pop %v1542
          %v1545 = vrsqrt.pop %v1543
          %v1546 = vmul.f32 %v1516, %v1544
          %v1547 = vmul.f32 %v1517, %v1544
          %v1548 = vmul.f32 %v1518, %v1544
          %v1549 = vmul.f32 %v1519, %v1544
          %v1550 = vmul.f32 %v1520, %v1545
          %v1551 = vmul.f32 %v1521, %v1545
          %v1552 = vmul.f32 %v1522, %v1545
          %v1553 = vmul.f32 %v1523, %v1545
          %v1554 = vsub.f32 %v1546, %v1550
          %v1555 = vsub.f32 %v1547, %v1551
          %v1556 = vsub.f32 %v1548, %v1552
          %v1557 = vsub.f32 %v1549, %v1553
          %v1558 = vadd.f32 %v1546, %v1550
          %v1559 = vadd.f32 %v1547, %v1551
          %v1560 = vadd.f32 %v1548, %v1552
          %v1561 = vadd.f32 %v1549, %v1553
          %v1562 = vmul.f32 %v1554, %v1558
          %v1563 = vmul.f32 %v1555, %v1559
          %v1564 = vmul.f32 %v1556, %v1560
          %v1565 = vmul.f32 %v1557, %v1561
          %v1566 = vpack.c.bf16 %v1562, %v1562
          %v1567 = vpack.c.bf16 %v1563, %v1563
          %v1568 = vpack.c.bf16 %v1564, %v1564
          %v1569 = vpack.c.bf16 %v1565, %v1565
          %v1570 = vmul.f32 %v1554, %v1554
          %v1571 = vmul.f32 %v1555, %v1555
          %v1572 = vmul.f32 %v1556, %v1556
          %v1573 = vmul.f32 %v1557, %v1557
          %v1574 = vpack.c.bf16 %v1570, %v1570
          %v1575 = vpack.c.bf16 %v1571, %v1571
          %v1576 = vpack.c.bf16 %v1572, %v1572
          %v1577 = vpack.c.bf16 %v1573, %v1573
          %v1578 = vmul.f32 %v1546, %v1550
          %v1579 = vmul.f32 %v1547, %v1551
          %v1580 = vmul.f32 %v1548, %v1552
          %v1581 = vmul.f32 %v1549, %v1553
          %v1582 = vpack.c.bf16 %v1578, %v1578
          %v1583 = vpack.c.bf16 %v1579, %v1579
          %v1584 = vpack.c.bf16 %v1580, %v1580
          %v1585 = vpack.c.bf16 %v1581, %v1581
          %v1586 = vpack.c.bf16 %v1558, %v1558
          %v1587 = vpack.c.bf16 %v1559, %v1559
          %v1588 = vpack.c.bf16 %v1560, %v1560
          %v1589 = vpack.c.bf16 %v1561, %v1561
          %v1590 = vld [vmem:[#allocation8] sm:$0xff]
          %v1591 = vld [vmem:[#allocation8 + $0x8] sm:$0xff]
          %v1592 = vld [vmem:[#allocation8 + $0x10] sm:$0xff]
          %v1593 = vld [vmem:[#allocation8 + $0x18] sm:$0xff]
          %v1594 = vld [vmem:[#allocation8 + $0x20] sm:$0xff]
          %v1595 = vld [vmem:[#allocation8 + $0x28] sm:$0xff]
          %v1596 = vld [vmem:[#allocation8 + $0x30] sm:$0xff]
          %v1597 = vld [vmem:[#allocation8 + $0x38] sm:$0xff]
          %v1598 = vld [vmem:[#allocation8 + $0x40] sm:$0xff]
          %v1599 = vld [vmem:[#allocation8 + $0x48] sm:$0xff]
          %v1600 = vld [vmem:[#allocation8 + $0x50] sm:$0xff]
          %v1601 = vld [vmem:[#allocation8 + $0x58] sm:$0xff]
          %v1602 = vld [vmem:[#allocation8 + $0x60] sm:$0xff]
          %v1603 = vld [vmem:[#allocation8 + $0x68] sm:$0xff]
          %v1604 = vld [vmem:[#allocation8 + $0x70] sm:$0xff]
          %v1605 = vld [vmem:[#allocation8 + $0x78] sm:$0xff]
          %v1606 = vld [vmem:[#allocation8 + $0x80] sm:$0xff]
          %v1607 = vld [vmem:[#allocation8 + $0x88] sm:$0xff]
          %v1608 = vld [vmem:[#allocation8 + $0x90] sm:$0xff]
          %v1609 = vld [vmem:[#allocation8 + $0x98] sm:$0xff]
          %v1610 = vld [vmem:[#allocation8 + $0xa0] sm:$0xff]
          %v1611 = vld [vmem:[#allocation8 + $0xa8] sm:$0xff]
          %v1612 = vld [vmem:[#allocation8 + $0xb0] sm:$0xff]
          %v1613 = vld [vmem:[#allocation8 + $0xb8] sm:$0xff]
          %v1614 = vld [vmem:[#allocation8 + $0xc0] sm:$0xff]
          %v1615 = vld [vmem:[#allocation8 + $0xc8] sm:$0xff]
          %v1616 = vld [vmem:[#allocation8 + $0xd0] sm:$0xff]
          %v1617 = vld [vmem:[#allocation8 + $0xd8] sm:$0xff]
          %v1618 = vld [vmem:[#allocation8 + $0xe0] sm:$0xff]
          %v1619 = vld [vmem:[#allocation8 + $0xe8] sm:$0xff]
          %v1620 = vld [vmem:[#allocation8 + $0xf0] sm:$0xff]
          %v1621 = vld [vmem:[#allocation8 + $0xf8] sm:$0xff]
          %v1622 = vld [vmem:[#allocation8 + $0x100] sm:$0xff]
          %v1623 = vld [vmem:[#allocation8 + $0x108] sm:$0xff]
          %v1624 = vld [vmem:[#allocation8 + $0x110] sm:$0xff]
          %v1625 = vld [vmem:[#allocation8 + $0x118] sm:$0xff]
          %v1626 = vld [vmem:[#allocation8 + $0x120] sm:$0xff]
          %v1627 = vld [vmem:[#allocation8 + $0x128] sm:$0xff]
          %v1628 = vld [vmem:[#allocation8 + $0x130] sm:$0xff]
          %v1629 = vld [vmem:[#allocation8 + $0x138] sm:$0xff]
          %v1630 = vld [vmem:[#allocation8 + $0x140] sm:$0xff]
          %v1631 = vld [vmem:[#allocation8 + $0x148] sm:$0xff]
          %v1632 = vld [vmem:[#allocation8 + $0x150] sm:$0xff]
          %v1633 = vld [vmem:[#allocation8 + $0x158] sm:$0xff]
          %v1634 = vld [vmem:[#allocation8 + $0x160] sm:$0xff]
          %v1635 = vld [vmem:[#allocation8 + $0x168] sm:$0xff]
          %v1636 = vld [vmem:[#allocation8 + $0x170] sm:$0xff]
          %v1637 = vld [vmem:[#allocation8 + $0x178] sm:$0xff]
          %v1638 = vld [vmem:[#allocation8 + $0x180] sm:$0xff]
          %v1639 = vld [vmem:[#allocation8 + $0x188] sm:$0xff]
          %v1640 = vld [vmem:[#allocation8 + $0x190] sm:$0xff]
          %v1641 = vld [vmem:[#allocation8 + $0x198] sm:$0xff]
          %v1642 = vld [vmem:[#allocation8 + $0x1a0] sm:$0xff]
          %v1643 = vld [vmem:[#allocation8 + $0x1a8] sm:$0xff]
          %v1644 = vld [vmem:[#allocation8 + $0x1b0] sm:$0xff]
          %v1645 = vld [vmem:[#allocation8 + $0x1b8] sm:$0xff]
          %v1646 = vld [vmem:[#allocation8 + $0x1c0] sm:$0xff]
          %v1647 = vld [vmem:[#allocation8 + $0x1c8] sm:$0xff]
          %v1648 = vld [vmem:[#allocation8 + $0x1d0] sm:$0xff]
          %v1649 = vld [vmem:[#allocation8 + $0x1d8] sm:$0xff]
          %v1650 = vld [vmem:[#allocation8 + $0x1e0] sm:$0xff]
          %v1651 = vld [vmem:[#allocation8 + $0x1e8] sm:$0xff]
          %v1652 = vld [vmem:[#allocation8 + $0x1f0] sm:$0xff]
          %v1653 = vld [vmem:[#allocation8 + $0x1f8] sm:$0xff]
          %v1654 = vld [vmem:[#allocation9] sm:$0xff]
          %v1655 = vld [vmem:[#allocation9 + $0x8] sm:$0xff]
          %v1656 = vld [vmem:[#allocation9 + $0x10] sm:$0xff]
          %v1657 = vld [vmem:[#allocation9 + $0x18] sm:$0xff]
          %v1658 = vld [vmem:[#allocation9 + $0x20] sm:$0xff]
          %v1659 = vld [vmem:[#allocation9 + $0x28] sm:$0xff]
          %v1660 = vld [vmem:[#allocation9 + $0x30] sm:$0xff]
          %v1661 = vld [vmem:[#allocation9 + $0x38] sm:$0xff]
          %v1662 = vld [vmem:[#allocation9 + $0x40] sm:$0xff]
          %v1663 = vld [vmem:[#allocation9 + $0x48] sm:$0xff]
          %v1664 = vld [vmem:[#allocation9 + $0x50] sm:$0xff]
          %v1665 = vld [vmem:[#allocation9 + $0x58] sm:$0xff]
          %v1666 = vld [vmem:[#allocation9 + $0x60] sm:$0xff]
          %v1667 = vld [vmem:[#allocation9 + $0x68] sm:$0xff]
          %v1668 = vld [vmem:[#allocation9 + $0x70] sm:$0xff]
          %v1669 = vld [vmem:[#allocation9 + $0x78] sm:$0xff]
          %v1670 = vld [vmem:[#allocation9 + $0x80] sm:$0xff]
          %v1671 = vld [vmem:[#allocation9 + $0x88] sm:$0xff]
          %v1672 = vld [vmem:[#allocation9 + $0x90] sm:$0xff]
          %v1673 = vld [vmem:[#allocation9 + $0x98] sm:$0xff]
          %v1674 = vld [vmem:[#allocation9 + $0xa0] sm:$0xff]
          %v1675 = vld [vmem:[#allocation9 + $0xa8] sm:$0xff]
          %v1676 = vld [vmem:[#allocation9 + $0xb0] sm:$0xff]
          %v1677 = vld [vmem:[#allocation9 + $0xb8] sm:$0xff]
          %v1678 = vld [vmem:[#allocation9 + $0xc0] sm:$0xff]
          %v1679 = vld [vmem:[#allocation9 + $0xc8] sm:$0xff]
          %v1680 = vld [vmem:[#allocation9 + $0xd0] sm:$0xff]
          %v1681 = vld [vmem:[#allocation9 + $0xd8] sm:$0xff]
          %v1682 = vld [vmem:[#allocation9 + $0xe0] sm:$0xff]
          %v1683 = vld [vmem:[#allocation9 + $0xe8] sm:$0xff]
          %v1684 = vld [vmem:[#allocation9 + $0xf0] sm:$0xff]
          %v1685 = vld [vmem:[#allocation9 + $0xf8] sm:$0xff]
          %v1686 = vld [vmem:[#allocation9 + $0x100] sm:$0xff]
          %v1687 = vld [vmem:[#allocation9 + $0x108] sm:$0xff]
          %v1688 = vld [vmem:[#allocation9 + $0x110] sm:$0xff]
          %v1689 = vld [vmem:[#allocation9 + $0x118] sm:$0xff]
          %v1690 = vld [vmem:[#allocation9 + $0x120] sm:$0xff]
          %v1691 = vld [vmem:[#allocation9 + $0x128] sm:$0xff]
          %v1692 = vld [vmem:[#allocation9 + $0x130] sm:$0xff]
          %v1693 = vld [vmem:[#allocation9 + $0x138] sm:$0xff]
          %v1694 = vld [vmem:[#allocation9 + $0x140] sm:$0xff]
          %v1695 = vld [vmem:[#allocation9 + $0x148] sm:$0xff]
          %v1696 = vld [vmem:[#allocation9 + $0x150] sm:$0xff]
          %v1697 = vld [vmem:[#allocation9 + $0x158] sm:$0xff]
          %v1698 = vld [vmem:[#allocation9 + $0x160] sm:$0xff]
          %v1699 = vld [vmem:[#allocation9 + $0x168] sm:$0xff]
          %v1700 = vld [vmem:[#allocation9 + $0x170] sm:$0xff]
          %v1701 = vld [vmem:[#allocation9 + $0x178] sm:$0xff]
          %v1702 = vld [vmem:[#allocation9 + $0x180] sm:$0xff]
          %v1703 = vld [vmem:[#allocation9 + $0x188] sm:$0xff]
          %v1704 = vld [vmem:[#allocation9 + $0x190] sm:$0xff]
          %v1705 = vld [vmem:[#allocation9 + $0x198] sm:$0xff]
          %v1706 = vld [vmem:[#allocation9 + $0x1a0] sm:$0xff]
          %v1707 = vld [vmem:[#allocation9 + $0x1a8] sm:$0xff]
          %v1708 = vld [vmem:[#allocation9 + $0x1b0] sm:$0xff]
          %v1709 = vld [vmem:[#allocation9 + $0x1b8] sm:$0xff]
          %v1710 = vld [vmem:[#allocation9 + $0x1c0] sm:$0xff]
          %v1711 = vld [vmem:[#allocation9 + $0x1c8] sm:$0xff]
          %v1712 = vld [vmem:[#allocation9 + $0x1d0] sm:$0xff]
          %v1713 = vld [vmem:[#allocation9 + $0x1d8] sm:$0xff]
          %v1714 = vld [vmem:[#allocation9 + $0x1e0] sm:$0xff]
          %v1715 = vld [vmem:[#allocation9 + $0x1e8] sm:$0xff]
          %v1716 = vld [vmem:[#allocation9 + $0x1f0] sm:$0xff]
          %v1717 = vld [vmem:[#allocation9 + $0x1f8] sm:$0xff]
          %v1782 = vunpack.c.l.b16 %v1654
          %v1783 = vunpack.c.h.b16 %v1654
          %v1784 = vunpack.c.l.b16 %v1655
          %v1785 = vunpack.c.h.b16 %v1655
          %v1786 = vunpack.c.l.b16 %v1656
          %v1787 = vunpack.c.h.b16 %v1656
          %v1788 = vunpack.c.l.b16 %v1657
          %v1789 = vunpack.c.h.b16 %v1657
          %v1790 = vunpack.c.l.b16 %v1658
          %v1791 = vunpack.c.h.b16 %v1658
          %v1792 = vunpack.c.l.b16 %v1659
          %v1793 = vunpack.c.h.b16 %v1659
          %v1794 = vunpack.c.l.b16 %v1660
          %v1795 = vunpack.c.h.b16 %v1660
          %v1796 = vunpack.c.l.b16 %v1661
          %v1797 = vunpack.c.h.b16 %v1661
          %v1798 = vunpack.c.l.b16 %v1662
          %v1799 = vunpack.c.h.b16 %v1662
          %v1800 = vunpack.c.l.b16 %v1663
          %v1801 = vunpack.c.h.b16 %v1663
          %v1802 = vunpack.c.l.b16 %v1664
          %v1803 = vunpack.c.h.b16 %v1664
          %v1804 = vunpack.c.l.b16 %v1665
          %v1805 = vunpack.c.h.b16 %v1665
          %v1806 = vunpack.c.l.b16 %v1666
          %v1807 = vunpack.c.h.b16 %v1666
          %v1808 = vunpack.c.l.b16 %v1667
          %v1809 = vunpack.c.h.b16 %v1667
          %v1810 = vunpack.c.l.b16 %v1668
          %v1811 = vunpack.c.h.b16 %v1668
          %v1812 = vunpack.c.l.b16 %v1669
          %v1813 = vunpack.c.h.b16 %v1669
          %v1814 = vunpack.c.l.b16 %v1670
          %v1815 = vunpack.c.h.b16 %v1670
          %v1816 = vunpack.c.l.b16 %v1671
          %v1817 = vunpack.c.h.b16 %v1671
          %v1818 = vunpack.c.l.b16 %v1672
          %v1819 = vunpack.c.h.b16 %v1672
          %v1820 = vunpack.c.l.b16 %v1673
          %v1821 = vunpack.c.h.b16 %v1673
          %v1822 = vunpack.c.l.b16 %v1674
          %v1823 = vunpack.c.h.b16 %v1674
          %v1824 = vunpack.c.l.b16 %v1675
          %v1825 = vunpack.c.h.b16 %v1675
          %v1826 = vunpack.c.l.b16 %v1676
          %v1827 = vunpack.c.h.b16 %v1676
          %v1828 = vunpack.c.l.b16 %v1677
          %v1829 = vunpack.c.h.b16 %v1677
          %v1830 = vunpack.c.l.b16 %v1678
          %v1831 = vunpack.c.h.b16 %v1678
          %v1832 = vunpack.c.l.b16 %v1679
          %v1833 = vunpack.c.h.b16 %v1679
          %v1834 = vunpack.c.l.b16 %v1680
          %v1835 = vunpack.c.h.b16 %v1680
          %v1836 = vunpack.c.l.b16 %v1681
          %v1837 = vunpack.c.h.b16 %v1681
          %v1838 = vunpack.c.l.b16 %v1682
          %v1839 = vunpack.c.h.b16 %v1682
          %v1840 = vunpack.c.l.b16 %v1683
          %v1841 = vunpack.c.h.b16 %v1683
          %v1842 = vunpack.c.l.b16 %v1684
          %v1843 = vunpack.c.h.b16 %v1684
          %v1844 = vunpack.c.l.b16 %v1685
          %v1845 = vunpack.c.h.b16 %v1685
          %v1846 = vunpack.c.l.b16 %v1686
          %v1847 = vunpack.c.h.b16 %v1686
          %v1848 = vunpack.c.l.b16 %v1687
          %v1849 = vunpack.c.h.b16 %v1687
          %v1850 = vunpack.c.l.b16 %v1688
          %v1851 = vunpack.c.h.b16 %v1688
          %v1852 = vunpack.c.l.b16 %v1689
          %v1853 = vunpack.c.h.b16 %v1689
          %v1854 = vunpack.c.l.b16 %v1690
          %v1855 = vunpack.c.h.b16 %v1690
          %v1856 = vunpack.c.l.b16 %v1691
          %v1857 = vunpack.c.h.b16 %v1691
          %v1858 = vunpack.c.l.b16 %v1692
          %v1859 = vunpack.c.h.b16 %v1692
          %v1860 = vunpack.c.l.b16 %v1693
          %v1861 = vunpack.c.h.b16 %v1693
          %v1862 = vunpack.c.l.b16 %v1694
          %v1863 = vunpack.c.h.b16 %v1694
          %v1864 = vunpack.c.l.b16 %v1695
          %v1865 = vunpack.c.h.b16 %v1695
          %v1866 = vunpack.c.l.b16 %v1696
          %v1867 = vunpack.c.h.b16 %v1696
          %v1868 = vunpack.c.l.b16 %v1697
          %v1869 = vunpack.c.h.b16 %v1697
          %v1870 = vunpack.c.l.b16 %v1698
          %v1871 = vunpack.c.h.b16 %v1698
          %v1872 = vunpack.c.l.b16 %v1699
          %v1873 = vunpack.c.h.b16 %v1699
          %v1874 = vunpack.c.l.b16 %v1700
          %v1875 = vunpack.c.h.b16 %v1700
          %v1876 = vunpack.c.l.b16 %v1701
          %v1877 = vunpack.c.h.b16 %v1701
          %v1878 = vunpack.c.l.b16 %v1702
          %v1879 = vunpack.c.h.b16 %v1702
          %v1880 = vunpack.c.l.b16 %v1703
          %v1881 = vunpack.c.h.b16 %v1703
          %v1882 = vunpack.c.l.b16 %v1704
          %v1883 = vunpack.c.h.b16 %v1704
          %v1884 = vunpack.c.l.b16 %v1705
          %v1885 = vunpack.c.h.b16 %v1705
          %v1886 = vunpack.c.l.b16 %v1706
          %v1887 = vunpack.c.h.b16 %v1706
          %v1888 = vunpack.c.l.b16 %v1707
          %v1889 = vunpack.c.h.b16 %v1707
          %v1890 = vunpack.c.l.b16 %v1708
          %v1891 = vunpack.c.h.b16 %v1708
          %v1892 = vunpack.c.l.b16 %v1709
          %v1893 = vunpack.c.h.b16 %v1709
          %v1894 = vunpack.c.l.b16 %v1710
          %v1895 = vunpack.c.h.b16 %v1710
          %v1896 = vunpack.c.l.b16 %v1711
          %v1897 = vunpack.c.h.b16 %v1711
          %v1898 = vunpack.c.l.b16 %v1712
          %v1899 = vunpack.c.h.b16 %v1712
          %v1900 = vunpack.c.l.b16 %v1713
          %v1901 = vunpack.c.h.b16 %v1713
          %v1902 = vunpack.c.l.b16 %v1714
          %v1903 = vunpack.c.h.b16 %v1714
          %v1904 = vunpack.c.l.b16 %v1715
          %v1905 = vunpack.c.h.b16 %v1715
          %v1906 = vunpack.c.l.b16 %v1716
          %v1907 = vunpack.c.h.b16 %v1716
          %v1908 = vunpack.c.l.b16 %v1717
          %v1909 = vunpack.c.h.b16 %v1717
          %v1910 = vpack.c.b16 %v1784, %v1782
          %v1911 = vpack.c.b16 %v1785, %v1783
          %v1912 = vpack.c.b16 %v1788, %v1786
          %v1913 = vpack.c.b16 %v1789, %v1787
          %v1914 = vpack.c.b16 %v1792, %v1790
          %v1915 = vpack.c.b16 %v1793, %v1791
          %v1916 = vpack.c.b16 %v1796, %v1794
          %v1917 = vpack.c.b16 %v1797, %v1795
          %v1918 = vpack.c.b16 %v1800, %v1798
          %v1919 = vpack.c.b16 %v1801, %v1799
          %v1920 = vpack.c.b16 %v1804, %v1802
          %v1921 = vpack.c.b16 %v1805, %v1803
          %v1922 = vpack.c.b16 %v1808, %v1806
          %v1923 = vpack.c.b16 %v1809, %v1807
          %v1924 = vpack.c.b16 %v1812, %v1810
          %v1925 = vpack.c.b16 %v1813, %v1811
          %v1926 = vpack.c.b16 %v1816, %v1814
          %v1927 = vpack.c.b16 %v1817, %v1815
          %v1928 = vpack.c.b16 %v1820, %v1818
          %v1929 = vpack.c.b16 %v1821, %v1819
          %v1930 = vpack.c.b16 %v1824, %v1822
          %v1931 = vpack.c.b16 %v1825, %v1823
          %v1932 = vpack.c.b16 %v1828, %v1826
          %v1933 = vpack.c.b16 %v1829, %v1827
          %v1934 = vpack.c.b16 %v1832, %v1830
          %v1935 = vpack.c.b16 %v1833, %v1831
          %v1936 = vpack.c.b16 %v1836, %v1834
          %v1937 = vpack.c.b16 %v1837, %v1835
          %v1938 = vpack.c.b16 %v1840, %v1838
          %v1939 = vpack.c.b16 %v1841, %v1839
          %v1940 = vpack.c.b16 %v1844, %v1842
          %v1941 = vpack.c.b16 %v1845, %v1843
          %v1942 = vpack.c.b16 %v1848, %v1846
          %v1943 = vpack.c.b16 %v1849, %v1847
          %v1944 = vpack.c.b16 %v1852, %v1850
          %v1945 = vpack.c.b16 %v1853, %v1851
          %v1946 = vpack.c.b16 %v1856, %v1854
          %v1947 = vpack.c.b16 %v1857, %v1855
          %v1948 = vpack.c.b16 %v1860, %v1858
          %v1949 = vpack.c.b16 %v1861, %v1859
          %v1950 = vpack.c.b16 %v1864, %v1862
          %v1951 = vpack.c.b16 %v1865, %v1863
          %v1952 = vpack.c.b16 %v1868, %v1866
          %v1953 = vpack.c.b16 %v1869, %v1867
          %v1954 = vpack.c.b16 %v1872, %v1870
          %v1955 = vpack.c.b16 %v1873, %v1871
          %v1956 = vpack.c.b16 %v1876, %v1874
          %v1957 = vpack.c.b16 %v1877, %v1875
          %v1958 = vpack.c.b16 %v1880, %v1878
          %v1959 = vpack.c.b16 %v1881, %v1879
          %v1960 = vpack.c.b16 %v1884, %v1882
          %v1961 = vpack.c.b16 %v1885, %v1883
          %v1962 = vpack.c.b16 %v1888, %v1886
          %v1963 = vpack.c.b16 %v1889, %v1887
          %v1964 = vpack.c.b16 %v1892, %v1890
          %v1965 = vpack.c.b16 %v1893, %v1891
          %v1966 = vpack.c.b16 %v1896, %v1894
          %v1967 = vpack.c.b16 %v1897, %v1895
          %v1968 = vpack.c.b16 %v1900, %v1898
          %v1969 = vpack.c.b16 %v1901, %v1899
          %v1970 = vpack.c.b16 %v1904, %v1902
          %v1971 = vpack.c.b16 %v1905, %v1903
          %v1972 = vpack.c.b16 %v1908, %v1906
          %v1973 = vpack.c.b16 %v1909, %v1907
          %2038 = vmatprep.subr.bf16.mxu0 %v1911
          %2039 = vmatpush1.bf16.msra.mxu0 %v1910
          %2040 = vmatprep.subr.bf16.mxu0 %v1913
          %2041 = vmatpush1.bf16.msra.mxu0 %v1912
          %2042 = vmatprep.subr.bf16.mxu0 %v1915
          %2043 = vmatpush1.bf16.msra.mxu0 %v1914
          %2044 = vmatprep.subr.bf16.mxu0 %v1917
          %2045 = vmatpush1.bf16.msra.mxu0 %v1916
          %2046 = vmatprep.subr.bf16.mxu0 %v1919
          %2047 = vmatpush1.bf16.msra.mxu0 %v1918
          %2048 = vmatprep.subr.bf16.mxu0 %v1921
          %2049 = vmatpush1.bf16.msra.mxu0 %v1920
          %2050 = vmatprep.subr.bf16.mxu0 %v1923
          %2051 = vmatpush1.bf16.msra.mxu0 %v1922
          %2052 = vmatprep.subr.bf16.mxu0 %v1925
          %2053 = vmatpush1.bf16.msra.mxu0 %v1924
          %2054 = vmatprep.subr.bf16.mxu0 %v1927
          %2055 = vmatpush1.bf16.msra.mxu0 %v1926
          %2056 = vmatprep.subr.bf16.mxu0 %v1929
          %2057 = vmatpush1.bf16.msra.mxu0 %v1928
          %2058 = vmatprep.subr.bf16.mxu0 %v1931
          %2059 = vmatpush1.bf16.msra.mxu0 %v1930
          %2060 = vmatprep.subr.bf16.mxu0 %v1933
          %2061 = vmatpush1.bf16.msra.mxu0 %v1932
          %2062 = vmatprep.subr.bf16.mxu0 %v1935
          %2063 = vmatpush1.bf16.msra.mxu0 %v1934
          %2064 = vmatprep.subr.bf16.mxu0 %v1937
          %2065 = vmatpush1.bf16.msra.mxu0 %v1936
          %2066 = vmatprep.subr.bf16.mxu0 %v1939
          %2067 = vmatpush1.bf16.msra.mxu0 %v1938
          %2068 = vmatprep.subr.bf16.mxu0 %v1941
          %2069 = vmatpush1.bf16.msra.mxu0 %v1940
          %2070 = vmatprep.mubr.bf16.mxu0 %v1575
          %2071 = vmatmul.mubr.bf16.gmra.mrb[0].mxu0 %v1574
          %v2072 = vpop.f32.mrb[0].mxu0
          %v2073 = vadd.f32 0.0, %v2072
          %v2074 = vpop.f32.mrb[0].mxu0
          %v2075 = vadd.f32 0.0, %v2074
          %v2076 = vpop.f32.mrb[0].mxu0
          %v2077 = vpop.f32.mrb[0].mxu0
          %2078 = vdwg.mxu0
          %2079 = vmatprep.subr.bf16.mxu0 %v1943
          %2080 = vmatpush1.bf16.msra.mxu0 %v1942
          %2081 = vmatprep.subr.bf16.mxu0 %v1945
          %2082 = vmatpush1.bf16.msra.mxu0 %v1944
          %2083 = vmatprep.subr.bf16.mxu0 %v1947
          %2084 = vmatpush1.bf16.msra.mxu0 %v1946
          %2085 = vmatprep.subr.bf16.mxu0 %v1949
          %2086 = vmatpush1.bf16.msra.mxu0 %v1948
          %2087 = vmatprep.subr.bf16.mxu0 %v1951
          %2088 = vmatpush1.bf16.msra.mxu0 %v1950
          %2089 = vmatprep.subr.bf16.mxu0 %v1953
          %2090 = vmatpush1.bf16.msra.mxu0 %v1952
          %2091 = vmatprep.subr.bf16.mxu0 %v1955
          %2092 = vmatpush1.bf16.msra.mxu0 %v1954
          %2093 = vmatprep.subr.bf16.mxu0 %v1957
          %2094 = vmatpush1.bf16.msra.mxu0 %v1956
          %2095 = vmatprep.subr.bf16.mxu0 %v1959
          %2096 = vmatpush1.bf16.msra.mxu0 %v1958
          %2097 = vmatprep.subr.bf16.mxu0 %v1961
          %2098 = vmatpush1.bf16.msra.mxu0 %v1960
          %2099 = vmatprep.subr.bf16.mxu0 %v1963
          %2100 = vmatpush1.bf16.msra.mxu0 %v1962
          %2101 = vmatprep.subr.bf16.mxu0 %v1965
          %2102 = vmatpush1.bf16.msra.mxu0 %v1964
          %2103 = vmatprep.subr.bf16.mxu0 %v1967
          %2104 = vmatpush1.bf16.msra.mxu0 %v1966
          %2105 = vmatprep.subr.bf16.mxu0 %v1969
          %2106 = vmatpush1.bf16.msra.mxu0 %v1968
          %2107 = vmatprep.subr.bf16.mxu0 %v1971
          %2108 = vmatpush1.bf16.msra.mxu0 %v1970
          %2109 = vmatprep.subr.bf16.mxu0 %v1973
          %2110 = vmatpush1.bf16.msra.mxu0 %v1972
          %2111 = vmatprep.mubr.bf16.mxu0 %v1577
          %2112 = vmatmul.mubr.bf16.gmra.mrb[0].mxu0 %v1576
          %v2113 = vpop.f32.mrb[0].mxu0
          %v2114 = vadd.f32 %v2073, %v2113
          %v2115 = vpop.f32.mrb[0].mxu0
          %v2116 = vadd.f32 %v2075, %v2115
          %v2117 = vpop.f32.mrb[0].mxu0
          %v2118 = vpop.f32.mrb[0].mxu0
          %2119 = vdwg.mxu0
          %v2184 = vunpack.c.l.b16 %v1590
          %v2185 = vunpack.c.h.b16 %v1590
          %v2186 = vunpack.c.l.b16 %v1591
          %v2187 = vunpack.c.h.b16 %v1591
          %v2188 = vunpack.c.l.b16 %v1592
          %v2189 = vunpack.c.h.b16 %v1592
          %v2190 = vunpack.c.l.b16 %v1593
          %v2191 = vunpack.c.h.b16 %v1593
          %v2192 = vunpack.c.l.b16 %v1594
          %v2193 = vunpack.c.h.b16 %v1594
          %v2194 = vunpack.c.l.b16 %v1595
          %v2195 = vunpack.c.h.b16 %v1595
          %v2196 = vunpack.c.l.b16 %v1596
          %v2197 = vunpack.c.h.b16 %v1596
          %v2198 = vunpack.c.l.b16 %v1597
          %v2199 = vunpack.c.h.b16 %v1597
          %v2200 = vunpack.c.l.b16 %v1598
          %v2201 = vunpack.c.h.b16 %v1598
          %v2202 = vunpack.c.l.b16 %v1599
          %v2203 = vunpack.c.h.b16 %v1599
          %v2204 = vunpack.c.l.b16 %v1600
          %v2205 = vunpack.c.h.b16 %v1600
          %v2206 = vunpack.c.l.b16 %v1601
          %v2207 = vunpack.c.h.b16 %v1601
          %v2208 = vunpack.c.l.b16 %v1602
          %v2209 = vunpack.c.h.b16 %v1602
          %v2210 = vunpack.c.l.b16 %v1603
          %v2211 = vunpack.c.h.b16 %v1603
          %v2212 = vunpack.c.l.b16 %v1604
          %v2213 = vunpack.c.h.b16 %v1604
          %v2214 = vunpack.c.l.b16 %v1605
          %v2215 = vunpack.c.h.b16 %v1605
          %v2216 = vunpack.c.l.b16 %v1606
          %v2217 = vunpack.c.h.b16 %v1606
          %v2218 = vunpack.c.l.b16 %v1607
          %v2219 = vunpack.c.h.b16 %v1607
          %v2220 = vunpack.c.l.b16 %v1608
          %v2221 = vunpack.c.h.b16 %v1608
          %v2222 = vunpack.c.l.b16 %v1609
          %v2223 = vunpack.c.h.b16 %v1609
          %v2224 = vunpack.c.l.b16 %v1610
          %v2225 = vunpack.c.h.b16 %v1610
          %v2226 = vunpack.c.l.b16 %v1611
          %v2227 = vunpack.c.h.b16 %v1611
          %v2228 = vunpack.c.l.b16 %v1612
          %v2229 = vunpack.c.h.b16 %v1612
          %v2230 = vunpack.c.l.b16 %v1613
          %v2231 = vunpack.c.h.b16 %v1613
          %v2232 = vunpack.c.l.b16 %v1614
          %v2233 = vunpack.c.h.b16 %v1614
          %v2234 = vunpack.c.l.b16 %v1615
          %v2235 = vunpack.c.h.b16 %v1615
          %v2236 = vunpack.c.l.b16 %v1616
          %v2237 = vunpack.c.h.b16 %v1616
          %v2238 = vunpack.c.l.b16 %v1617
          %v2239 = vunpack.c.h.b16 %v1617
          %v2240 = vunpack.c.l.b16 %v1618
          %v2241 = vunpack.c.h.b16 %v1618
          %v2242 = vunpack.c.l.b16 %v1619
          %v2243 = vunpack.c.h.b16 %v1619
          %v2244 = vunpack.c.l.b16 %v1620
          %v2245 = vunpack.c.h.b16 %v1620
          %v2246 = vunpack.c.l.b16 %v1621
          %v2247 = vunpack.c.h.b16 %v1621
          %v2248 = vunpack.c.l.b16 %v1622
          %v2249 = vunpack.c.h.b16 %v1622
          %v2250 = vunpack.c.l.b16 %v1623
          %v2251 = vunpack.c.h.b16 %v1623
          %v2252 = vunpack.c.l.b16 %v1624
          %v2253 = vunpack.c.h.b16 %v1624
          %v2254 = vunpack.c.l.b16 %v1625
          %v2255 = vunpack.c.h.b16 %v1625
          %v2256 = vunpack.c.l.b16 %v1626
          %v2257 = vunpack.c.h.b16 %v1626
          %v2258 = vunpack.c.l.b16 %v1627
          %v2259 = vunpack.c.h.b16 %v1627
          %v2260 = vunpack.c.l.b16 %v1628
          %v2261 = vunpack.c.h.b16 %v1628
          %v2262 = vunpack.c.l.b16 %v1629
          %v2263 = vunpack.c.h.b16 %v1629
          %v2264 = vunpack.c.l.b16 %v1630
          %v2265 = vunpack.c.h.b16 %v1630
          %v2266 = vunpack.c.l.b16 %v1631
          %v2267 = vunpack.c.h.b16 %v1631
          %v2268 = vunpack.c.l.b16 %v1632
          %v2269 = vunpack.c.h.b16 %v1632
          %v2270 = vunpack.c.l.b16 %v1633
          %v2271 = vunpack.c.h.b16 %v1633
          %v2272 = vunpack.c.l.b16 %v1634
          %v2273 = vunpack.c.h.b16 %v1634
          %v2274 = vunpack.c.l.b16 %v1635
          %v2275 = vunpack.c.h.b16 %v1635
          %v2276 = vunpack.c.l.b16 %v1636
          %v2277 = vunpack.c.h.b16 %v1636
          %v2278 = vunpack.c.l.b16 %v1637
          %v2279 = vunpack.c.h.b16 %v1637
          %v2280 = vunpack.c.l.b16 %v1638
          %v2281 = vunpack.c.h.b16 %v1638
          %v2282 = vunpack.c.l.b16 %v1639
          %v2283 = vunpack.c.h.b16 %v1639
          %v2284 = vunpack.c.l.b16 %v1640
          %v2285 = vunpack.c.h.b16 %v1640
          %v2286 = vunpack.c.l.b16 %v1641
          %v2287 = vunpack.c.h.b16 %v1641
          %v2288 = vunpack.c.l.b16 %v1642
          %v2289 = vunpack.c.h.b16 %v1642
          %v2290 = vunpack.c.l.b16 %v1643
          %v2291 = vunpack.c.h.b16 %v1643
          %v2292 = vunpack.c.l.b16 %v1644
          %v2293 = vunpack.c.h.b16 %v1644
          %v2294 = vunpack.c.l.b16 %v1645
          %v2295 = vunpack.c.h.b16 %v1645
          %v2296 = vunpack.c.l.b16 %v1646
          %v2297 = vunpack.c.h.b16 %v1646
          %v2298 = vunpack.c.l.b16 %v1647
          %v2299 = vunpack.c.h.b16 %v1647
          %v2300 = vunpack.c.l.b16 %v1648
          %v2301 = vunpack.c.h.b16 %v1648
          %v2302 = vunpack.c.l.b16 %v1649
          %v2303 = vunpack.c.h.b16 %v1649
          %v2304 = vunpack.c.l.b16 %v1650
          %v2305 = vunpack.c.h.b16 %v1650
          %v2306 = vunpack.c.l.b16 %v1651
          %v2307 = vunpack.c.h.b16 %v1651
          %v2308 = vunpack.c.l.b16 %v1652
          %v2309 = vunpack.c.h.b16 %v1652
          %v2310 = vunpack.c.l.b16 %v1653
          %v2311 = vunpack.c.h.b16 %v1653
          %v2312 = vpack.c.b16 %v2186, %v2184
          %v2313 = vpack.c.b16 %v2187, %v2185
          %v2314 = vpack.c.b16 %v2190, %v2188
          %v2315 = vpack.c.b16 %v2191, %v2189
          %v2316 = vpack.c.b16 %v2194, %v2192
          %v2317 = vpack.c.b16 %v2195, %v2193
          %v2318 = vpack.c.b16 %v2198, %v2196
          %v2319 = vpack.c.b16 %v2199, %v2197
          %v2320 = vpack.c.b16 %v2202, %v2200
          %v2321 = vpack.c.b16 %v2203, %v2201
          %v2322 = vpack.c.b16 %v2206, %v2204
          %v2323 = vpack.c.b16 %v2207, %v2205
          %v2324 = vpack.c.b16 %v2210, %v2208
          %v2325 = vpack.c.b16 %v2211, %v2209
          %v2326 = vpack.c.b16 %v2214, %v2212
          %v2327 = vpack.c.b16 %v2215, %v2213
          %v2328 = vpack.c.b16 %v2218, %v2216
          %v2329 = vpack.c.b16 %v2219, %v2217
          %v2330 = vpack.c.b16 %v2222, %v2220
          %v2331 = vpack.c.b16 %v2223, %v2221
          %v2332 = vpack.c.b16 %v2226, %v2224
          %v2333 = vpack.c.b16 %v2227, %v2225
          %v2334 = vpack.c.b16 %v2230, %v2228
          %v2335 = vpack.c.b16 %v2231, %v2229
          %v2336 = vpack.c.b16 %v2234, %v2232
          %v2337 = vpack.c.b16 %v2235, %v2233
          %v2338 = vpack.c.b16 %v2238, %v2236
          %v2339 = vpack.c.b16 %v2239, %v2237
          %v2340 = vpack.c.b16 %v2242, %v2240
          %v2341 = vpack.c.b16 %v2243, %v2241
          %v2342 = vpack.c.b16 %v2246, %v2244
          %v2343 = vpack.c.b16 %v2247, %v2245
          %v2344 = vpack.c.b16 %v2250, %v2248
          %v2345 = vpack.c.b16 %v2251, %v2249
          %v2346 = vpack.c.b16 %v2254, %v2252
          %v2347 = vpack.c.b16 %v2255, %v2253
          %v2348 = vpack.c.b16 %v2258, %v2256
          %v2349 = vpack.c.b16 %v2259, %v2257
          %v2350 = vpack.c.b16 %v2262, %v2260
          %v2351 = vpack.c.b16 %v2263, %v2261
          %v2352 = vpack.c.b16 %v2266, %v2264
          %v2353 = vpack.c.b16 %v2267, %v2265
          %v2354 = vpack.c.b16 %v2270, %v2268
          %v2355 = vpack.c.b16 %v2271, %v2269
          %v2356 = vpack.c.b16 %v2274, %v2272
          %v2357 = vpack.c.b16 %v2275, %v2273
          %v2358 = vpack.c.b16 %v2278, %v2276
          %v2359 = vpack.c.b16 %v2279, %v2277
          %v2360 = vpack.c.b16 %v2282, %v2280
          %v2361 = vpack.c.b16 %v2283, %v2281
          %v2362 = vpack.c.b16 %v2286, %v2284
          %v2363 = vpack.c.b16 %v2287, %v2285
          %v2364 = vpack.c.b16 %v2290, %v2288
          %v2365 = vpack.c.b16 %v2291, %v2289
          %v2366 = vpack.c.b16 %v2294, %v2292
          %v2367 = vpack.c.b16 %v2295, %v2293
          %v2368 = vpack.c.b16 %v2298, %v2296
          %v2369 = vpack.c.b16 %v2299, %v2297
          %v2370 = vpack.c.b16 %v2302, %v2300
          %v2371 = vpack.c.b16 %v2303, %v2301
          %v2372 = vpack.c.b16 %v2306, %v2304
          %v2373 = vpack.c.b16 %v2307, %v2305
          %v2374 = vpack.c.b16 %v2310, %v2308
          %v2375 = vpack.c.b16 %v2311, %v2309
          %2440 = vmatprep.subr.bf16.mxu0 %v2313
          %2441 = vmatpush1.bf16.msra.mxu0 %v2312
          %2442 = vmatprep.subr.bf16.mxu0 %v2315
          %2443 = vmatpush1.bf16.msra.mxu0 %v2314
          %2444 = vmatprep.subr.bf16.mxu0 %v2317
          %2445 = vmatpush1.bf16.msra.mxu0 %v2316
          %2446 = vmatprep.subr.bf16.mxu0 %v2319
          %2447 = vmatpush1.bf16.msra.mxu0 %v2318
          %2448 = vmatprep.subr.bf16.mxu0 %v2321
          %2449 = vmatpush1.bf16.msra.mxu0 %v2320
          %2450 = vmatprep.subr.bf16.mxu0 %v2323
          %2451 = vmatpush1.bf16.msra.mxu0 %v2322
          %2452 = vmatprep.subr.bf16.mxu0 %v2325
          %2453 = vmatpush1.bf16.msra.mxu0 %v2324
          %2454 = vmatprep.subr.bf16.mxu0 %v2327
          %2455 = vmatpush1.bf16.msra.mxu0 %v2326
          %2456 = vmatprep.subr.bf16.mxu0 %v2329
          %2457 = vmatpush1.bf16.msra.mxu0 %v2328
          %2458 = vmatprep.subr.bf16.mxu0 %v2331
          %2459 = vmatpush1.bf16.msra.mxu0 %v2330
          %2460 = vmatprep.subr.bf16.mxu0 %v2333
          %2461 = vmatpush1.bf16.msra.mxu0 %v2332
          %2462 = vmatprep.subr.bf16.mxu0 %v2335
          %2463 = vmatpush1.bf16.msra.mxu0 %v2334
          %2464 = vmatprep.subr.bf16.mxu0 %v2337
          %2465 = vmatpush1.bf16.msra.mxu0 %v2336
          %2466 = vmatprep.subr.bf16.mxu0 %v2339
          %2467 = vmatpush1.bf16.msra.mxu0 %v2338
          %2468 = vmatprep.subr.bf16.mxu0 %v2341
          %2469 = vmatpush1.bf16.msra.mxu0 %v2340
          %2470 = vmatprep.subr.bf16.mxu0 %v2343
          %2471 = vmatpush1.bf16.msra.mxu0 %v2342
          %2472 = vmatprep.mubr.bf16.mxu0 %v1567
          %2473 = vmatmul.mubr.bf16.gmra.mrb[0].mxu0 %v1566
          %v2474 = vpop.f32.mrb[0].mxu0
          %v2475 = vadd.f32 %v2114, %v2474
          %v2476 = vpop.f32.mrb[0].mxu0
          %v2477 = vadd.f32 %v2116, %v2476
          %v2478 = vpop.f32.mrb[0].mxu0
          %v2479 = vpop.f32.mrb[0].mxu0
          %2480 = vdwg.mxu0
          %2481 = vmatprep.subr.bf16.mxu0 %v2345
          %2482 = vmatpush1.bf16.msra.mxu0 %v2344
          %2483 = vmatprep.subr.bf16.mxu0 %v2347
          %2484 = vmatpush1.bf16.msra.mxu0 %v2346
          %2485 = vmatprep.subr.bf16.mxu0 %v2349
          %2486 = vmatpush1.bf16.msra.mxu0 %v2348
          %2487 = vmatprep.subr.bf16.mxu0 %v2351
          %2488 = vmatpush1.bf16.msra.mxu0 %v2350
          %2489 = vmatprep.subr.bf16.mxu0 %v2353
          %2490 = vmatpush1.bf16.msra.mxu0 %v2352
          %2491 = vmatprep.subr.bf16.mxu0 %v2355
          %2492 = vmatpush1.bf16.msra.mxu0 %v2354
          %2493 = vmatprep.subr.bf16.mxu0 %v2357
          %2494 = vmatpush1.bf16.msra.mxu0 %v2356
          %2495 = vmatprep.subr.bf16.mxu0 %v2359
          %2496 = vmatpush1.bf16.msra.mxu0 %v2358
          %2497 = vmatprep.subr.bf16.mxu0 %v2361
          %2498 = vmatpush1.bf16.msra.mxu0 %v2360
          %2499 = vmatprep.subr.bf16.mxu0 %v2363
          %2500 = vmatpush1.bf16.msra.mxu0 %v2362
          %2501 = vmatprep.subr.bf16.mxu0 %v2365
          %2502 = vmatpush1.bf16.msra.mxu0 %v2364
          %2503 = vmatprep.subr.bf16.mxu0 %v2367
          %2504 = vmatpush1.bf16.msra.mxu0 %v2366
          %2505 = vmatprep.subr.bf16.mxu0 %v2369
          %2506 = vmatpush1.bf16.msra.mxu0 %v2368
          %2507 = vmatprep.subr.bf16.mxu0 %v2371
          %2508 = vmatpush1.bf16.msra.mxu0 %v2370
          %2509 = vmatprep.subr.bf16.mxu0 %v2373
          %2510 = vmatpush1.bf16.msra.mxu0 %v2372
          %2511 = vmatprep.subr.bf16.mxu0 %v2375
          %2512 = vmatpush1.bf16.msra.mxu0 %v2374
          %2513 = vmatprep.mubr.bf16.mxu0 %v1569
          %2514 = vmatmul.mubr.bf16.gmra.mrb[0].mxu0 %v1568
          %v2515 = vpop.f32.mrb[0].mxu0
          %v2516 = vadd.f32 %v2475, %v2515
          %v2517 = vpop.f32.mrb[0].mxu0
          %v2518 = vadd.f32 %v2477, %v2517
          %v2519 = vpop.f32.mrb[0].mxu0
          %v2520 = vpop.f32.mrb[0].mxu0
          %2521 = vdwg.mxu0
          %v2522 = vld [vmem:[#allocation11] sm:$0xff]
          %v2523 = vld [vmem:[#allocation11 + $0x8] sm:$0xff]
          %v2524 = vld [vmem:[#allocation11 + $0x10] sm:$0xff]
          %v2525 = vld [vmem:[#allocation11 + $0x18] sm:$0xff]
          %v2526 = vld [vmem:[#allocation11 + $0x20] sm:$0xff]
          %v2527 = vld [vmem:[#allocation11 + $0x28] sm:$0xff]
          %v2528 = vld [vmem:[#allocation11 + $0x30] sm:$0xff]
          %v2529 = vld [vmem:[#allocation11 + $0x38] sm:$0xff]
          %v2530 = vld [vmem:[#allocation11 + $0x40] sm:$0xff]
          %v2531 = vld [vmem:[#allocation11 + $0x48] sm:$0xff]
          %v2532 = vld [vmem:[#allocation11 + $0x50] sm:$0xff]
          %v2533 = vld [vmem:[#allocation11 + $0x58] sm:$0xff]
          %v2534 = vld [vmem:[#allocation11 + $0x60] sm:$0xff]
          %v2535 = vld [vmem:[#allocation11 + $0x68] sm:$0xff]
          %v2536 = vld [vmem:[#allocation11 + $0x70] sm:$0xff]
          %v2537 = vld [vmem:[#allocation11 + $0x78] sm:$0xff]
          %v2538 = vld [vmem:[#allocation11 + $0x80] sm:$0xff]
          %v2539 = vld [vmem:[#allocation11 + $0x88] sm:$0xff]
          %v2540 = vld [vmem:[#allocation11 + $0x90] sm:$0xff]
          %v2541 = vld [vmem:[#allocation11 + $0x98] sm:$0xff]
          %v2542 = vld [vmem:[#allocation11 + $0xa0] sm:$0xff]
          %v2543 = vld [vmem:[#allocation11 + $0xa8] sm:$0xff]
          %v2544 = vld [vmem:[#allocation11 + $0xb0] sm:$0xff]
          %v2545 = vld [vmem:[#allocation11 + $0xb8] sm:$0xff]
          %v2546 = vld [vmem:[#allocation11 + $0xc0] sm:$0xff]
          %v2547 = vld [vmem:[#allocation11 + $0xc8] sm:$0xff]
          %v2548 = vld [vmem:[#allocation11 + $0xd0] sm:$0xff]
          %v2549 = vld [vmem:[#allocation11 + $0xd8] sm:$0xff]
          %v2550 = vld [vmem:[#allocation11 + $0xe0] sm:$0xff]
          %v2551 = vld [vmem:[#allocation11 + $0xe8] sm:$0xff]
          %v2552 = vld [vmem:[#allocation11 + $0xf0] sm:$0xff]
          %v2553 = vld [vmem:[#allocation11 + $0xf8] sm:$0xff]
          %v2554 = vld [vmem:[#allocation11 + $0x100] sm:$0xff]
          %v2555 = vld [vmem:[#allocation11 + $0x108] sm:$0xff]
          %v2556 = vld [vmem:[#allocation11 + $0x110] sm:$0xff]
          %v2557 = vld [vmem:[#allocation11 + $0x118] sm:$0xff]
          %v2558 = vld [vmem:[#allocation11 + $0x120] sm:$0xff]
          %v2559 = vld [vmem:[#allocation11 + $0x128] sm:$0xff]
          %v2560 = vld [vmem:[#allocation11 + $0x130] sm:$0xff]
          %v2561 = vld [vmem:[#allocation11 + $0x138] sm:$0xff]
          %v2562 = vld [vmem:[#allocation11 + $0x140] sm:$0xff]
          %v2563 = vld [vmem:[#allocation11 + $0x148] sm:$0xff]
          %v2564 = vld [vmem:[#allocation11 + $0x150] sm:$0xff]
          %v2565 = vld [vmem:[#allocation11 + $0x158] sm:$0xff]
          %v2566 = vld [vmem:[#allocation11 + $0x160] sm:$0xff]
          %v2567 = vld [vmem:[#allocation11 + $0x168] sm:$0xff]
          %v2568 = vld [vmem:[#allocation11 + $0x170] sm:$0xff]
          %v2569 = vld [vmem:[#allocation11 + $0x178] sm:$0xff]
          %v2570 = vld [vmem:[#allocation11 + $0x180] sm:$0xff]
          %v2571 = vld [vmem:[#allocation11 + $0x188] sm:$0xff]
          %v2572 = vld [vmem:[#allocation11 + $0x190] sm:$0xff]
          %v2573 = vld [vmem:[#allocation11 + $0x198] sm:$0xff]
          %v2574 = vld [vmem:[#allocation11 + $0x1a0] sm:$0xff]
          %v2575 = vld [vmem:[#allocation11 + $0x1a8] sm:$0xff]
          %v2576 = vld [vmem:[#allocation11 + $0x1b0] sm:$0xff]
          %v2577 = vld [vmem:[#allocation11 + $0x1b8] sm:$0xff]
          %v2578 = vld [vmem:[#allocation11 + $0x1c0] sm:$0xff]
          %v2579 = vld [vmem:[#allocation11 + $0x1c8] sm:$0xff]
          %v2580 = vld [vmem:[#allocation11 + $0x1d0] sm:$0xff]
          %v2581 = vld [vmem:[#allocation11 + $0x1d8] sm:$0xff]
          %v2582 = vld [vmem:[#allocation11 + $0x1e0] sm:$0xff]
          %v2583 = vld [vmem:[#allocation11 + $0x1e8] sm:$0xff]
          %v2584 = vld [vmem:[#allocation11 + $0x1f0] sm:$0xff]
          %v2585 = vld [vmem:[#allocation11 + $0x1f8] sm:$0xff]
          %v2650 = vunpack.c.l.b16 %v2522
          %v2651 = vunpack.c.h.b16 %v2522
          %v2652 = vunpack.c.l.b16 %v2523
          %v2653 = vunpack.c.h.b16 %v2523
          %v2654 = vunpack.c.l.b16 %v2524
          %v2655 = vunpack.c.h.b16 %v2524
          %v2656 = vunpack.c.l.b16 %v2525
          %v2657 = vunpack.c.h.b16 %v2525
          %v2658 = vunpack.c.l.b16 %v2526
          %v2659 = vunpack.c.h.b16 %v2526
          %v2660 = vunpack.c.l.b16 %v2527
          %v2661 = vunpack.c.h.b16 %v2527
          %v2662 = vunpack.c.l.b16 %v2528
          %v2663 = vunpack.c.h.b16 %v2528
          %v2664 = vunpack.c.l.b16 %v2529
          %v2665 = vunpack.c.h.b16 %v2529
          %v2666 = vunpack.c.l.b16 %v2530
          %v2667 = vunpack.c.h.b16 %v2530
          %v2668 = vunpack.c.l.b16 %v2531
          %v2669 = vunpack.c.h.b16 %v2531
          %v2670 = vunpack.c.l.b16 %v2532
          %v2671 = vunpack.c.h.b16 %v2532
          %v2672 = vunpack.c.l.b16 %v2533
          %v2673 = vunpack.c.h.b16 %v2533
          %v2674 = vunpack.c.l.b16 %v2534
          %v2675 = vunpack.c.h.b16 %v2534
          %v2676 = vunpack.c.l.b16 %v2535
          %v2677 = vunpack.c.h.b16 %v2535
          %v2678 = vunpack.c.l.b16 %v2536
          %v2679 = vunpack.c.h.b16 %v2536
          %v2680 = vunpack.c.l.b16 %v2537
          %v2681 = vunpack.c.h.b16 %v2537
          %v2682 = vunpack.c.l.b16 %v2538
          %v2683 = vunpack.c.h.b16 %v2538
          %v2684 = vunpack.c.l.b16 %v2539
          %v2685 = vunpack.c.h.b16 %v2539
          %v2686 = vunpack.c.l.b16 %v2540
          %v2687 = vunpack.c.h.b16 %v2540
          %v2688 = vunpack.c.l.b16 %v2541
          %v2689 = vunpack.c.h.b16 %v2541
          %v2690 = vunpack.c.l.b16 %v2542
          %v2691 = vunpack.c.h.b16 %v2542
          %v2692 = vunpack.c.l.b16 %v2543
          %v2693 = vunpack.c.h.b16 %v2543
          %v2694 = vunpack.c.l.b16 %v2544
          %v2695 = vunpack.c.h.b16 %v2544
          %v2696 = vunpack.c.l.b16 %v2545
          %v2697 = vunpack.c.h.b16 %v2545
          %v2698 = vunpack.c.l.b16 %v2546
          %v2699 = vunpack.c.h.b16 %v2546
          %v2700 = vunpack.c.l.b16 %v2547
          %v2701 = vunpack.c.h.b16 %v2547
          %v2702 = vunpack.c.l.b16 %v2548
          %v2703 = vunpack.c.h.b16 %v2548
          %v2704 = vunpack.c.l.b16 %v2549
          %v2705 = vunpack.c.h.b16 %v2549
          %v2706 = vunpack.c.l.b16 %v2550
          %v2707 = vunpack.c.h.b16 %v2550
          %v2708 = vunpack.c.l.b16 %v2551
          %v2709 = vunpack.c.h.b16 %v2551
          %v2710 = vunpack.c.l.b16 %v2552
          %v2711 = vunpack.c.h.b16 %v2552
          %v2712 = vunpack.c.l.b16 %v2553
          %v2713 = vunpack.c.h.b16 %v2553
          %v2714 = vunpack.c.l.b16 %v2554
          %v2715 = vunpack.c.h.b16 %v2554
          %v2716 = vunpack.c.l.b16 %v2555
          %v2717 = vunpack.c.h.b16 %v2555
          %v2718 = vunpack.c.l.b16 %v2556
          %v2719 = vunpack.c.h.b16 %v2556
          %v2720 = vunpack.c.l.b16 %v2557
          %v2721 = vunpack.c.h.b16 %v2557
          %v2722 = vunpack.c.l.b16 %v2558
          %v2723 = vunpack.c.h.b16 %v2558
          %v2724 = vunpack.c.l.b16 %v2559
          %v2725 = vunpack.c.h.b16 %v2559
          %v2726 = vunpack.c.l.b16 %v2560
          %v2727 = vunpack.c.h.b16 %v2560
          %v2728 = vunpack.c.l.b16 %v2561
          %v2729 = vunpack.c.h.b16 %v2561
          %v2730 = vunpack.c.l.b16 %v2562
          %v2731 = vunpack.c.h.b16 %v2562
          %v2732 = vunpack.c.l.b16 %v2563
          %v2733 = vunpack.c.h.b16 %v2563
          %v2734 = vunpack.c.l.b16 %v2564
          %v2735 = vunpack.c.h.b16 %v2564
          %v2736 = vunpack.c.l.b16 %v2565
          %v2737 = vunpack.c.h.b16 %v2565
          %v2738 = vunpack.c.l.b16 %v2566
          %v2739 = vunpack.c.h.b16 %v2566
          %v2740 = vunpack.c.l.b16 %v2567
          %v2741 = vunpack.c.h.b16 %v2567
          %v2742 = vunpack.c.l.b16 %v2568
          %v2743 = vunpack.c.h.b16 %v2568
          %v2744 = vunpack.c.l.b16 %v2569
          %v2745 = vunpack.c.h.b16 %v2569
          %v2746 = vunpack.c.l.b16 %v2570
          %v2747 = vunpack.c.h.b16 %v2570
          %v2748 = vunpack.c.l.b16 %v2571
          %v2749 = vunpack.c.h.b16 %v2571
          %v2750 = vunpack.c.l.b16 %v2572
          %v2751 = vunpack.c.h.b16 %v2572
          %v2752 = vunpack.c.l.b16 %v2573
          %v2753 = vunpack.c.h.b16 %v2573
          %v2754 = vunpack.c.l.b16 %v2574
          %v2755 = vunpack.c.h.b16 %v2574
          %v2756 = vunpack.c.l.b16 %v2575
          %v2757 = vunpack.c.h.b16 %v2575
          %v2758 = vunpack.c.l.b16 %v2576
          %v2759 = vunpack.c.h.b16 %v2576
          %v2760 = vunpack.c.l.b16 %v2577
          %v2761 = vunpack.c.h.b16 %v2577
          %v2762 = vunpack.c.l.b16 %v2578
          %v2763 = vunpack.c.h.b16 %v2578
          %v2764 = vunpack.c.l.b16 %v2579
          %v2765 = vunpack.c.h.b16 %v2579
          %v2766 = vunpack.c.l.b16 %v2580
          %v2767 = vunpack.c.h.b16 %v2580
          %v2768 = vunpack.c.l.b16 %v2581
          %v2769 = vunpack.c.h.b16 %v2581
          %v2770 = vunpack.c.l.b16 %v2582
          %v2771 = vunpack.c.h.b16 %v2582
          %v2772 = vunpack.c.l.b16 %v2583
          %v2773 = vunpack.c.h.b16 %v2583
          %v2774 = vunpack.c.l.b16 %v2584
          %v2775 = vunpack.c.h.b16 %v2584
          %v2776 = vunpack.c.l.b16 %v2585
          %v2777 = vunpack.c.h.b16 %v2585
          %v2778 = vpack.c.b16 %v2652, %v2650
          %v2779 = vpack.c.b16 %v2653, %v2651
          %v2780 = vpack.c.b16 %v2656, %v2654
          %v2781 = vpack.c.b16 %v2657, %v2655
          %v2782 = vpack.c.b16 %v2660, %v2658
          %v2783 = vpack.c.b16 %v2661, %v2659
          %v2784 = vpack.c.b16 %v2664, %v2662
          %v2785 = vpack.c.b16 %v2665, %v2663
          %v2786 = vpack.c.b16 %v2668, %v2666
          %v2787 = vpack.c.b16 %v2669, %v2667
          %v2788 = vpack.c.b16 %v2672, %v2670
          %v2789 = vpack.c.b16 %v2673, %v2671
          %v2790 = vpack.c.b16 %v2676, %v2674
          %v2791 = vpack.c.b16 %v2677, %v2675
          %v2792 = vpack.c.b16 %v2680, %v2678
          %v2793 = vpack.c.b16 %v2681, %v2679
          %v2794 = vpack.c.b16 %v2684, %v2682
          %v2795 = vpack.c.b16 %v2685, %v2683
          %v2796 = vpack.c.b16 %v2688, %v2686
          %v2797 = vpack.c.b16 %v2689, %v2687
          %v2798 = vpack.c.b16 %v2692, %v2690
          %v2799 = vpack.c.b16 %v2693, %v2691
          %v2800 = vpack.c.b16 %v2696, %v2694
          %v2801 = vpack.c.b16 %v2697, %v2695
          %v2802 = vpack.c.b16 %v2700, %v2698
          %v2803 = vpack.c.b16 %v2701, %v2699
          %v2804 = vpack.c.b16 %v2704, %v2702
          %v2805 = vpack.c.b16 %v2705, %v2703
          %v2806 = vpack.c.b16 %v2708, %v2706
          %v2807 = vpack.c.b16 %v2709, %v2707
          %v2808 = vpack.c.b16 %v2712, %v2710
          %v2809 = vpack.c.b16 %v2713, %v2711
          %v2810 = vpack.c.b16 %v2716, %v2714
          %v2811 = vpack.c.b16 %v2717, %v2715
          %v2812 = vpack.c.b16 %v2720, %v2718
          %v2813 = vpack.c.b16 %v2721, %v2719
          %v2814 = vpack.c.b16 %v2724, %v2722
          %v2815 = vpack.c.b16 %v2725, %v2723
          %v2816 = vpack.c.b16 %v2728, %v2726
          %v2817 = vpack.c.b16 %v2729, %v2727
          %v2818 = vpack.c.b16 %v2732, %v2730
          %v2819 = vpack.c.b16 %v2733, %v2731
          %v2820 = vpack.c.b16 %v2736, %v2734
          %v2821 = vpack.c.b16 %v2737, %v2735
          %v2822 = vpack.c.b16 %v2740, %v2738
          %v2823 = vpack.c.b16 %v2741, %v2739
          %v2824 = vpack.c.b16 %v2744, %v2742
          %v2825 = vpack.c.b16 %v2745, %v2743
          %v2826 = vpack.c.b16 %v2748, %v2746
          %v2827 = vpack.c.b16 %v2749, %v2747
          %v2828 = vpack.c.b16 %v2752, %v2750
          %v2829 = vpack.c.b16 %v2753, %v2751
          %v2830 = vpack.c.b16 %v2756, %v2754
          %v2831 = vpack.c.b16 %v2757, %v2755
          %v2832 = vpack.c.b16 %v2760, %v2758
          %v2833 = vpack.c.b16 %v2761, %v2759
          %v2834 = vpack.c.b16 %v2764, %v2762
          %v2835 = vpack.c.b16 %v2765, %v2763
          %v2836 = vpack.c.b16 %v2768, %v2766
          %v2837 = vpack.c.b16 %v2769, %v2767
          %v2838 = vpack.c.b16 %v2772, %v2770
          %v2839 = vpack.c.b16 %v2773, %v2771
          %v2840 = vpack.c.b16 %v2776, %v2774
          %v2841 = vpack.c.b16 %v2777, %v2775
          %2906 = vmatprep.subr.bf16.mxu0 %v2779
          %2907 = vmatpush1.bf16.msra.mxu0 %v2778
          %2908 = vmatprep.subr.bf16.mxu0 %v2781
          %2909 = vmatpush1.bf16.msra.mxu0 %v2780
          %2910 = vmatprep.subr.bf16.mxu0 %v2783
          %2911 = vmatpush1.bf16.msra.mxu0 %v2782
          %2912 = vmatprep.subr.bf16.mxu0 %v2785
          %2913 = vmatpush1.bf16.msra.mxu0 %v2784
          %2914 = vmatprep.subr.bf16.mxu0 %v2787
          %2915 = vmatpush1.bf16.msra.mxu0 %v2786
          %2916 = vmatprep.subr.bf16.mxu0 %v2789
          %2917 = vmatpush1.bf16.msra.mxu0 %v2788
          %2918 = vmatprep.subr.bf16.mxu0 %v2791
          %2919 = vmatpush1.bf16.msra.mxu0 %v2790
          %2920 = vmatprep.subr.bf16.mxu0 %v2793
          %2921 = vmatpush1.bf16.msra.mxu0 %v2792
          %2922 = vmatprep.subr.bf16.mxu0 %v2795
          %2923 = vmatpush1.bf16.msra.mxu0 %v2794
          %2924 = vmatprep.subr.bf16.mxu0 %v2797
          %2925 = vmatpush1.bf16.msra.mxu0 %v2796
          %2926 = vmatprep.subr.bf16.mxu0 %v2799
          %2927 = vmatpush1.bf16.msra.mxu0 %v2798
          %2928 = vmatprep.subr.bf16.mxu0 %v2801
          %2929 = vmatpush1.bf16.msra.mxu0 %v2800
          %2930 = vmatprep.subr.bf16.mxu0 %v2803
          %2931 = vmatpush1.bf16.msra.mxu0 %v2802
          %2932 = vmatprep.subr.bf16.mxu0 %v2805
          %2933 = vmatpush1.bf16.msra.mxu0 %v2804
          %2934 = vmatprep.subr.bf16.mxu0 %v2807
          %2935 = vmatpush1.bf16.msra.mxu0 %v2806
          %2936 = vmatprep.subr.bf16.mxu0 %v2809
          %2937 = vmatpush1.bf16.msra.mxu0 %v2808
          %2938 = vmatprep.mubr.bf16.mxu0 %v1583
          %2939 = vmatmul.mubr.bf16.gmra.mrb[0].mxu0 %v1582
          %v2940 = vpop.f32.mrb[0].mxu0
          %v2941 = vadd.f32 0.0, %v2940
          %v2942 = vpop.f32.mrb[0].mxu0
          %v2943 = vadd.f32 0.0, %v2942
          %v2944 = vpop.f32.mrb[0].mxu0
          %v2945 = vpop.f32.mrb[0].mxu0
          %2946 = vdwg.mxu0
          %2947 = vmatprep.subr.bf16.mxu0 %v2811
          %2948 = vmatpush1.bf16.msra.mxu0 %v2810
          %2949 = vmatprep.subr.bf16.mxu0 %v2813
          %2950 = vmatpush1.bf16.msra.mxu0 %v2812
          %2951 = vmatprep.subr.bf16.mxu0 %v2815
          %2952 = vmatpush1.bf16.msra.mxu0 %v2814
          %2953 = vmatprep.subr.bf16.mxu0 %v2817
          %2954 = vmatpush1.bf16.msra.mxu0 %v2816
          %2955 = vmatprep.subr.bf16.mxu0 %v2819
          %2956 = vmatpush1.bf16.msra.mxu0 %v2818
          %2957 = vmatprep.subr.bf16.mxu0 %v2821
          %2958 = vmatpush1.bf16.msra.mxu0 %v2820
          %2959 = vmatprep.subr.bf16.mxu0 %v2823
          %2960 = vmatpush1.bf16.msra.mxu0 %v2822
          %2961 = vmatprep.subr.bf16.mxu0 %v2825
          %2962 = vmatpush1.bf16.msra.mxu0 %v2824
          %2963 = vmatprep.subr.bf16.mxu0 %v2827
          %2964 = vmatpush1.bf16.msra.mxu0 %v2826
          %2965 = vmatprep.subr.bf16.mxu0 %v2829
          %2966 = vmatpush1.bf16.msra.mxu0 %v2828
          %2967 = vmatprep.subr.bf16.mxu0 %v2831
          %2968 = vmatpush1.bf16.msra.mxu0 %v2830
          %2969 = vmatprep.subr.bf16.mxu0 %v2833
          %2970 = vmatpush1.bf16.msra.mxu0 %v2832
          %2971 = vmatprep.subr.bf16.mxu0 %v2835
          %2972 = vmatpush1.bf16.msra.mxu0 %v2834
          %2973 = vmatprep.subr.bf16.mxu0 %v2837
          %2974 = vmatpush1.bf16.msra.mxu0 %v2836
          %2975 = vmatprep.subr.bf16.mxu0 %v2839
          %2976 = vmatpush1.bf16.msra.mxu0 %v2838
          %2977 = vmatprep.subr.bf16.mxu0 %v2841
          %2978 = vmatpush1.bf16.msra.mxu0 %v2840
          %2979 = vmatprep.mubr.bf16.mxu0 %v1585
          %2980 = vmatmul.mubr.bf16.gmra.mrb[0].mxu0 %v1584
          %v2981 = vpop.f32.mrb[0].mxu0
          %v2982 = vadd.f32 %v2941, %v2981
          %v2983 = vpop.f32.mrb[0].mxu0
          %v2984 = vadd.f32 %v2943, %v2983
          %v2985 = vpop.f32.mrb[0].mxu0
          %v2986 = vpop.f32.mrb[0].mxu0
          %2987 = vdwg.mxu0
          %v2988 = vadd.f32 %v2516, %v2982
          %v2989 = vadd.f32 %v2518, %v2984
          %v2990 = vld [vmem:[#allocation12] sm:$0xff]
          %v2991 = vld [vmem:[#allocation12 + $0x8] sm:$0xff]
          %v2992 = vld [vmem:[#allocation12 + $0x10] sm:$0xff]
          %v2993 = vld [vmem:[#allocation12 + $0x18] sm:$0xff]
          %v2994 = vld [vmem:[#allocation12 + $0x20] sm:$0xff]
          %v2995 = vld [vmem:[#allocation12 + $0x28] sm:$0xff]
          %v2996 = vld [vmem:[#allocation12 + $0x30] sm:$0xff]
          %v2997 = vld [vmem:[#allocation12 + $0x38] sm:$0xff]
          %v2998 = vld [vmem:[#allocation12 + $0x40] sm:$0xff]
          %v2999 = vld [vmem:[#allocation12 + $0x48] sm:$0xff]
          %v3000 = vld [vmem:[#allocation12 + $0x50] sm:$0xff]
          %v3001 = vld [vmem:[#allocation12 + $0x58] sm:$0xff]
          %v3002 = vld [vmem:[#allocation12 + $0x60] sm:$0xff]
          %v3003 = vld [vmem:[#allocation12 + $0x68] sm:$0xff]
          %v3004 = vld [vmem:[#allocation12 + $0x70] sm:$0xff]
          %v3005 = vld [vmem:[#allocation12 + $0x78] sm:$0xff]
          %v3006 = vld [vmem:[#allocation12 + $0x80] sm:$0xff]
          %v3007 = vld [vmem:[#allocation12 + $0x88] sm:$0xff]
          %v3008 = vld [vmem:[#allocation12 + $0x90] sm:$0xff]
          %v3009 = vld [vmem:[#allocation12 + $0x98] sm:$0xff]
          %v3010 = vld [vmem:[#allocation12 + $0xa0] sm:$0xff]
          %v3011 = vld [vmem:[#allocation12 + $0xa8] sm:$0xff]
          %v3012 = vld [vmem:[#allocation12 + $0xb0] sm:$0xff]
          %v3013 = vld [vmem:[#allocation12 + $0xb8] sm:$0xff]
          %v3014 = vld [vmem:[#allocation12 + $0xc0] sm:$0xff]
          %v3015 = vld [vmem:[#allocation12 + $0xc8] sm:$0xff]
          %v3016 = vld [vmem:[#allocation12 + $0xd0] sm:$0xff]
          %v3017 = vld [vmem:[#allocation12 + $0xd8] sm:$0xff]
          %v3018 = vld [vmem:[#allocation12 + $0xe0] sm:$0xff]
          %v3019 = vld [vmem:[#allocation12 + $0xe8] sm:$0xff]
          %v3020 = vld [vmem:[#allocation12 + $0xf0] sm:$0xff]
          %v3021 = vld [vmem:[#allocation12 + $0xf8] sm:$0xff]
          %v3022 = vld [vmem:[#allocation12 + $0x100] sm:$0xff]
          %v3023 = vld [vmem:[#allocation12 + $0x108] sm:$0xff]
          %v3024 = vld [vmem:[#allocation12 + $0x110] sm:$0xff]
          %v3025 = vld [vmem:[#allocation12 + $0x118] sm:$0xff]
          %v3026 = vld [vmem:[#allocation12 + $0x120] sm:$0xff]
          %v3027 = vld [vmem:[#allocation12 + $0x128] sm:$0xff]
          %v3028 = vld [vmem:[#allocation12 + $0x130] sm:$0xff]
          %v3029 = vld [vmem:[#allocation12 + $0x138] sm:$0xff]
          %v3030 = vld [vmem:[#allocation12 + $0x140] sm:$0xff]
          %v3031 = vld [vmem:[#allocation12 + $0x148] sm:$0xff]
          %v3032 = vld [vmem:[#allocation12 + $0x150] sm:$0xff]
          %v3033 = vld [vmem:[#allocation12 + $0x158] sm:$0xff]
          %v3034 = vld [vmem:[#allocation12 + $0x160] sm:$0xff]
          %v3035 = vld [vmem:[#allocation12 + $0x168] sm:$0xff]
          %v3036 = vld [vmem:[#allocation12 + $0x170] sm:$0xff]
          %v3037 = vld [vmem:[#allocation12 + $0x178] sm:$0xff]
          %v3038 = vld [vmem:[#allocation12 + $0x180] sm:$0xff]
          %v3039 = vld [vmem:[#allocation12 + $0x188] sm:$0xff]
          %v3040 = vld [vmem:[#allocation12 + $0x190] sm:$0xff]
          %v3041 = vld [vmem:[#allocation12 + $0x198] sm:$0xff]
          %v3042 = vld [vmem:[#allocation12 + $0x1a0] sm:$0xff]
          %v3043 = vld [vmem:[#allocation12 + $0x1a8] sm:$0xff]
          %v3044 = vld [vmem:[#allocation12 + $0x1b0] sm:$0xff]
          %v3045 = vld [vmem:[#allocation12 + $0x1b8] sm:$0xff]
          %v3046 = vld [vmem:[#allocation12 + $0x1c0] sm:$0xff]
          %v3047 = vld [vmem:[#allocation12 + $0x1c8] sm:$0xff]
          %v3048 = vld [vmem:[#allocation12 + $0x1d0] sm:$0xff]
          %v3049 = vld [vmem:[#allocation12 + $0x1d8] sm:$0xff]
          %v3050 = vld [vmem:[#allocation12 + $0x1e0] sm:$0xff]
          %v3051 = vld [vmem:[#allocation12 + $0x1e8] sm:$0xff]
          %v3052 = vld [vmem:[#allocation12 + $0x1f0] sm:$0xff]
          %v3053 = vld [vmem:[#allocation12 + $0x1f8] sm:$0xff]
          %v3118 = vunpack.c.l.b16 %v2990
          %v3119 = vunpack.c.h.b16 %v2990
          %v3120 = vunpack.c.l.b16 %v2991
          %v3121 = vunpack.c.h.b16 %v2991
          %v3122 = vunpack.c.l.b16 %v2992
          %v3123 = vunpack.c.h.b16 %v2992
          %v3124 = vunpack.c.l.b16 %v2993
          %v3125 = vunpack.c.h.b16 %v2993
          %v3126 = vunpack.c.l.b16 %v2994
          %v3127 = vunpack.c.h.b16 %v2994
          %v3128 = vunpack.c.l.b16 %v2995
          %v3129 = vunpack.c.h.b16 %v2995
          %v3130 = vunpack.c.l.b16 %v2996
          %v3131 = vunpack.c.h.b16 %v2996
          %v3132 = vunpack.c.l.b16 %v2997
          %v3133 = vunpack.c.h.b16 %v2997
          %v3134 = vunpack.c.l.b16 %v2998
          %v3135 = vunpack.c.h.b16 %v2998
          %v3136 = vunpack.c.l.b16 %v2999
          %v3137 = vunpack.c.h.b16 %v2999
          %v3138 = vunpack.c.l.b16 %v3000
          %v3139 = vunpack.c.h.b16 %v3000
          %v3140 = vunpack.c.l.b16 %v3001
          %v3141 = vunpack.c.h.b16 %v3001
          %v3142 = vunpack.c.l.b16 %v3002
          %v3143 = vunpack.c.h.b16 %v3002
          %v3144 = vunpack.c.l.b16 %v3003
          %v3145 = vunpack.c.h.b16 %v3003
          %v3146 = vunpack.c.l.b16 %v3004
          %v3147 = vunpack.c.h.b16 %v3004
          %v3148 = vunpack.c.l.b16 %v3005
          %v3149 = vunpack.c.h.b16 %v3005
          %v3150 = vunpack.c.l.b16 %v3006
          %v3151 = vunpack.c.h.b16 %v3006
          %v3152 = vunpack.c.l.b16 %v3007
          %v3153 = vunpack.c.h.b16 %v3007
          %v3154 = vunpack.c.l.b16 %v3008
          %v3155 = vunpack.c.h.b16 %v3008
          %v3156 = vunpack.c.l.b16 %v3009
          %v3157 = vunpack.c.h.b16 %v3009
          %v3158 = vunpack.c.l.b16 %v3010
          %v3159 = vunpack.c.h.b16 %v3010
          %v3160 = vunpack.c.l.b16 %v3011
          %v3161 = vunpack.c.h.b16 %v3011
          %v3162 = vunpack.c.l.b16 %v3012
          %v3163 = vunpack.c.h.b16 %v3012
          %v3164 = vunpack.c.l.b16 %v3013
          %v3165 = vunpack.c.h.b16 %v3013
          %v3166 = vunpack.c.l.b16 %v3014
          %v3167 = vunpack.c.h.b16 %v3014
          %v3168 = vunpack.c.l.b16 %v3015
          %v3169 = vunpack.c.h.b16 %v3015
          %v3170 = vunpack.c.l.b16 %v3016
          %v3171 = vunpack.c.h.b16 %v3016
          %v3172 = vunpack.c.l.b16 %v3017
          %v3173 = vunpack.c.h.b16 %v3017
          %v3174 = vunpack.c.l.b16 %v3018
          %v3175 = vunpack.c.h.b16 %v3018
          %v3176 = vunpack.c.l.b16 %v3019
          %v3177 = vunpack.c.h.b16 %v3019
          %v3178 = vunpack.c.l.b16 %v3020
          %v3179 = vunpack.c.h.b16 %v3020
          %v3180 = vunpack.c.l.b16 %v3021
          %v3181 = vunpack.c.h.b16 %v3021
          %v3182 = vunpack.c.l.b16 %v3022
          %v3183 = vunpack.c.h.b16 %v3022
          %v3184 = vunpack.c.l.b16 %v3023
          %v3185 = vunpack.c.h.b16 %v3023
          %v3186 = vunpack.c.l.b16 %v3024
          %v3187 = vunpack.c.h.b16 %v3024
          %v3188 = vunpack.c.l.b16 %v3025
          %v3189 = vunpack.c.h.b16 %v3025
          %v3190 = vunpack.c.l.b16 %v3026
          %v3191 = vunpack.c.h.b16 %v3026
          %v3192 = vunpack.c.l.b16 %v3027
          %v3193 = vunpack.c.h.b16 %v3027
          %v3194 = vunpack.c.l.b16 %v3028
          %v3195 = vunpack.c.h.b16 %v3028
          %v3196 = vunpack.c.l.b16 %v3029
          %v3197 = vunpack.c.h.b16 %v3029
          %v3198 = vunpack.c.l.b16 %v3030
          %v3199 = vunpack.c.h.b16 %v3030
          %v3200 = vunpack.c.l.b16 %v3031
          %v3201 = vunpack.c.h.b16 %v3031
          %v3202 = vunpack.c.l.b16 %v3032
          %v3203 = vunpack.c.h.b16 %v3032
          %v3204 = vunpack.c.l.b16 %v3033
          %v3205 = vunpack.c.h.b16 %v3033
          %v3206 = vunpack.c.l.b16 %v3034
          %v3207 = vunpack.c.h.b16 %v3034
          %v3208 = vunpack.c.l.b16 %v3035
          %v3209 = vunpack.c.h.b16 %v3035
          %v3210 = vunpack.c.l.b16 %v3036
          %v3211 = vunpack.c.h.b16 %v3036
          %v3212 = vunpack.c.l.b16 %v3037
          %v3213 = vunpack.c.h.b16 %v3037
          %v3214 = vunpack.c.l.b16 %v3038
          %v3215 = vunpack.c.h.b16 %v3038
          %v3216 = vunpack.c.l.b16 %v3039
          %v3217 = vunpack.c.h.b16 %v3039
          %v3218 = vunpack.c.l.b16 %v3040
          %v3219 = vunpack.c.h.b16 %v3040
          %v3220 = vunpack.c.l.b16 %v3041
          %v3221 = vunpack.c.h.b16 %v3041
          %v3222 = vunpack.c.l.b16 %v3042
          %v3223 = vunpack.c.h.b16 %v3042
          %v3224 = vunpack.c.l.b16 %v3043
          %v3225 = vunpack.c.h.b16 %v3043
          %v3226 = vunpack.c.l.b16 %v3044
          %v3227 = vunpack.c.h.b16 %v3044
          %v3228 = vunpack.c.l.b16 %v3045
          %v3229 = vunpack.c.h.b16 %v3045
          %v3230 = vunpack.c.l.b16 %v3046
          %v3231 = vunpack.c.h.b16 %v3046
          %v3232 = vunpack.c.l.b16 %v3047
          %v3233 = vunpack.c.h.b16 %v3047
          %v3234 = vunpack.c.l.b16 %v3048
          %v3235 = vunpack.c.h.b16 %v3048
          %v3236 = vunpack.c.l.b16 %v3049
          %v3237 = vunpack.c.h.b16 %v3049
          %v3238 = vunpack.c.l.b16 %v3050
          %v3239 = vunpack.c.h.b16 %v3050
          %v3240 = vunpack.c.l.b16 %v3051
          %v3241 = vunpack.c.h.b16 %v3051
          %v3242 = vunpack.c.l.b16 %v3052
          %v3243 = vunpack.c.h.b16 %v3052
          %v3244 = vunpack.c.l.b16 %v3053
          %v3245 = vunpack.c.h.b16 %v3053
          %v3246 = vpack.c.b16 %v3120, %v3118
          %v3247 = vpack.c.b16 %v3121, %v3119
          %v3248 = vpack.c.b16 %v3124, %v3122
          %v3249 = vpack.c.b16 %v3125, %v3123
          %v3250 = vpack.c.b16 %v3128, %v3126
          %v3251 = vpack.c.b16 %v3129, %v3127
          %v3252 = vpack.c.b16 %v3132, %v3130
          %v3253 = vpack.c.b16 %v3133, %v3131
          %v3254 = vpack.c.b16 %v3136, %v3134
          %v3255 = vpack.c.b16 %v3137, %v3135
          %v3256 = vpack.c.b16 %v3140, %v3138
          %v3257 = vpack.c.b16 %v3141, %v3139
          %v3258 = vpack.c.b16 %v3144, %v3142
          %v3259 = vpack.c.b16 %v3145, %v3143
          %v3260 = vpack.c.b16 %v3148, %v3146
          %v3261 = vpack.c.b16 %v3149, %v3147
          %v3262 = vpack.c.b16 %v3152, %v3150
          %v3263 = vpack.c.b16 %v3153, %v3151
          %v3264 = vpack.c.b16 %v3156, %v3154
          %v3265 = vpack.c.b16 %v3157, %v3155
          %v3266 = vpack.c.b16 %v3160, %v3158
          %v3267 = vpack.c.b16 %v3161, %v3159
          %v3268 = vpack.c.b16 %v3164, %v3162
          %v3269 = vpack.c.b16 %v3165, %v3163
          %v3270 = vpack.c.b16 %v3168, %v3166
          %v3271 = vpack.c.b16 %v3169, %v3167
          %v3272 = vpack.c.b16 %v3172, %v3170
          %v3273 = vpack.c.b16 %v3173, %v3171
          %v3274 = vpack.c.b16 %v3176, %v3174
          %v3275 = vpack.c.b16 %v3177, %v3175
          %v3276 = vpack.c.b16 %v3180, %v3178
          %v3277 = vpack.c.b16 %v3181, %v3179
          %v3278 = vpack.c.b16 %v3184, %v3182
          %v3279 = vpack.c.b16 %v3185, %v3183
          %v3280 = vpack.c.b16 %v3188, %v3186
          %v3281 = vpack.c.b16 %v3189, %v3187
          %v3282 = vpack.c.b16 %v3192, %v3190
          %v3283 = vpack.c.b16 %v3193, %v3191
          %v3284 = vpack.c.b16 %v3196, %v3194
          %v3285 = vpack.c.b16 %v3197, %v3195
          %v3286 = vpack.c.b16 %v3200, %v3198
          %v3287 = vpack.c.b16 %v3201, %v3199
          %v3288 = vpack.c.b16 %v3204, %v3202
          %v3289 = vpack.c.b16 %v3205, %v3203
          %v3290 = vpack.c.b16 %v3208, %v3206
          %v3291 = vpack.c.b16 %v3209, %v3207
          %v3292 = vpack.c.b16 %v3212, %v3210
          %v3293 = vpack.c.b16 %v3213, %v3211
          %v3294 = vpack.c.b16 %v3216, %v3214
          %v3295 = vpack.c.b16 %v3217, %v3215
          %v3296 = vpack.c.b16 %v3220, %v3218
          %v3297 = vpack.c.b16 %v3221, %v3219
          %v3298 = vpack.c.b16 %v3224, %v3222
          %v3299 = vpack.c.b16 %v3225, %v3223
          %v3300 = vpack.c.b16 %v3228, %v3226
          %v3301 = vpack.c.b16 %v3229, %v3227
          %v3302 = vpack.c.b16 %v3232, %v3230
          %v3303 = vpack.c.b16 %v3233, %v3231
          %v3304 = vpack.c.b16 %v3236, %v3234
          %v3305 = vpack.c.b16 %v3237, %v3235
          %v3306 = vpack.c.b16 %v3240, %v3238
          %v3307 = vpack.c.b16 %v3241, %v3239
          %v3308 = vpack.c.b16 %v3244, %v3242
          %v3309 = vpack.c.b16 %v3245, %v3243
          %3374 = vmatprep.subr.bf16.mxu0 %v3247
          %3375 = vmatpush1.bf16.msra.mxu0 %v3246
          %3376 = vmatprep.subr.bf16.mxu0 %v3249
          %3377 = vmatpush1.bf16.msra.mxu0 %v3248
          %3378 = vmatprep.subr.bf16.mxu0 %v3251
          %3379 = vmatpush1.bf16.msra.mxu0 %v3250
          %3380 = vmatprep.subr.bf16.mxu0 %v3253
          %3381 = vmatpush1.bf16.msra.mxu0 %v3252
          %3382 = vmatprep.subr.bf16.mxu0 %v3255
          %3383 = vmatpush1.bf16.msra.mxu0 %v3254
          %3384 = vmatprep.subr.bf16.mxu0 %v3257
          %3385 = vmatpush1.bf16.msra.mxu0 %v3256
          %3386 = vmatprep.subr.bf16.mxu0 %v3259
          %3387 = vmatpush1.bf16.msra.mxu0 %v3258
          %3388 = vmatprep.subr.bf16.mxu0 %v3261
          %3389 = vmatpush1.bf16.msra.mxu0 %v3260
          %3390 = vmatprep.subr.bf16.mxu0 %v3263
          %3391 = vmatpush1.bf16.msra.mxu0 %v3262
          %3392 = vmatprep.subr.bf16.mxu0 %v3265
          %3393 = vmatpush1.bf16.msra.mxu0 %v3264
          %3394 = vmatprep.subr.bf16.mxu0 %v3267
          %3395 = vmatpush1.bf16.msra.mxu0 %v3266
          %3396 = vmatprep.subr.bf16.mxu0 %v3269
          %3397 = vmatpush1.bf16.msra.mxu0 %v3268
          %3398 = vmatprep.subr.bf16.mxu0 %v3271
          %3399 = vmatpush1.bf16.msra.mxu0 %v3270
          %3400 = vmatprep.subr.bf16.mxu0 %v3273
          %3401 = vmatpush1.bf16.msra.mxu0 %v3272
          %3402 = vmatprep.subr.bf16.mxu0 %v3275
          %3403 = vmatpush1.bf16.msra.mxu0 %v3274
          %3404 = vmatprep.subr.bf16.mxu0 %v3277
          %3405 = vmatpush1.bf16.msra.mxu0 %v3276
          %3406 = vmatprep.mubr.bf16.mxu0 %v1587
          %3407 = vmatmul.mubr.bf16.gmra.mrb[0].mxu0 %v1586
          %v3408 = vpop.f32.mrb[0].mxu0
          %v3409 = vadd.f32 0.0, %v3408
          %v3410 = vpop.f32.mrb[0].mxu0
          %v3411 = vadd.f32 0.0, %v3410
          %v3412 = vpop.f32.mrb[0].mxu0
          %v3413 = vpop.f32.mrb[0].mxu0
          %3414 = vdwg.mxu0
          %3415 = vmatprep.subr.bf16.mxu0 %v3279
          %3416 = vmatpush1.bf16.msra.mxu0 %v3278
          %3417 = vmatprep.subr.bf16.mxu0 %v3281
          %3418 = vmatpush1.bf16.msra.mxu0 %v3280
          %3419 = vmatprep.subr.bf16.mxu0 %v3283
          %3420 = vmatpush1.bf16.msra.mxu0 %v3282
          %3421 = vmatprep.subr.bf16.mxu0 %v3285
          %3422 = vmatpush1.bf16.msra.mxu0 %v3284
          %3423 = vmatprep.subr.bf16.mxu0 %v3287
          %3424 = vmatpush1.bf16.msra.mxu0 %v3286
          %3425 = vmatprep.subr.bf16.mxu0 %v3289
          %3426 = vmatpush1.bf16.msra.mxu0 %v3288
          %3427 = vmatprep.subr.bf16.mxu0 %v3291
          %3428 = vmatpush1.bf16.msra.mxu0 %v3290
          %3429 = vmatprep.subr.bf16.mxu0 %v3293
          %3430 = vmatpush1.bf16.msra.mxu0 %v3292
          %3431 = vmatprep.subr.bf16.mxu0 %v3295
          %3432 = vmatpush1.bf16.msra.mxu0 %v3294
          %3433 = vmatprep.subr.bf16.mxu0 %v3297
          %3434 = vmatpush1.bf16.msra.mxu0 %v3296
          %3435 = vmatprep.subr.bf16.mxu0 %v3299
          %3436 = vmatpush1.bf16.msra.mxu0 %v3298
          %3437 = vmatprep.subr.bf16.mxu0 %v3301
          %3438 = vmatpush1.bf16.msra.mxu0 %v3300
          %3439 = vmatprep.subr.bf16.mxu0 %v3303
          %3440 = vmatpush1.bf16.msra.mxu0 %v3302
          %3441 = vmatprep.subr.bf16.mxu0 %v3305
          %3442 = vmatpush1.bf16.msra.mxu0 %v3304
          %3443 = vmatprep.subr.bf16.mxu0 %v3307
          %3444 = vmatpush1.bf16.msra.mxu0 %v3306
          %3445 = vmatprep.subr.bf16.mxu0 %v3309
          %3446 = vmatpush1.bf16.msra.mxu0 %v3308
          %3447 = vmatprep.mubr.bf16.mxu0 %v1589
          %3448 = vmatmul.mubr.bf16.gmra.mrb[0].mxu0 %v1588
          %v3449 = vpop.f32.mrb[0].mxu0
          %v3450 = vadd.f32 %v3409, %v3449
          %v3451 = vpop.f32.mrb[0].mxu0
          %v3452 = vadd.f32 %v3411, %v3451
          %v3453 = vpop.f32.mrb[0].mxu0
          %v3454 = vpop.f32.mrb[0].mxu0
          %3455 = vdwg.mxu0
          %v3456 = vadd.f32 %v2988, %v3450
          %v3457 = vadd.f32 %v2989, %v3452
          %v3458 = vld [vmem:[%s7] sm:$0x3]
          %v3460 = vlaneseq
          %v3461 = vshrl.u32 %v3460, 7
          %v3462 = vsub.s32 0, %v3461
          %v3463 = vrot.slane %v3458, %v3462
          %v3464 = vlaneseq
          %v3465 = vshrl.u32 %v3464, 7
          %v3466 = vsub.s32 1, %v3465
          %v3467 = vrot.slane %v3458, %v3466
          %v3470 = vadd.f32 %v3456, %v3463
          %v3471 = vadd.f32 %v3457, %v3467
          %v3472 = vmax.f32 %v3470, 0.0
          %v3473 = vmax.f32 %v3471, 0.0
          %v3474 = vpack.c.bf16 %v3472, %v3472
          %v3475 = vpack.c.bf16 %v3473, %v3473
          %v3476 = vld [vmem:[#allocation14] sm:$0xf]
          %v3477 = vld [vmem:[#allocation14 + $0x4] sm:$0xf]
          %v3478 = vld [vmem:[#allocation14 + $0x8] sm:$0xf]
          %v3479 = vld [vmem:[#allocation14 + $0xc] sm:$0xf]
          %v3480 = vld [vmem:[#allocation14 + $0x10] sm:$0xf]
          %v3481 = vld [vmem:[#allocation14 + $0x14] sm:$0xf]
          %v3482 = vld [vmem:[#allocation14 + $0x18] sm:$0xf]
          %v3483 = vld [vmem:[#allocation14 + $0x1c] sm:$0xf]
          %v3484 = vld [vmem:[#allocation14 + $0x20] sm:$0xf]
          %v3485 = vld [vmem:[#allocation14 + $0x24] sm:$0xf]
          %v3486 = vld [vmem:[#allocation14 + $0x28] sm:$0xf]
          %v3487 = vld [vmem:[#allocation14 + $0x2c] sm:$0xf]
          %v3488 = vld [vmem:[#allocation14 + $0x30] sm:$0xf]
          %v3489 = vld [vmem:[#allocation14 + $0x34] sm:$0xf]
          %v3490 = vld [vmem:[#allocation14 + $0x38] sm:$0xf]
          %v3491 = vld [vmem:[#allocation14 + $0x3c] sm:$0xf]
          %v3492 = vld [vmem:[#allocation14 + $0x40] sm:$0xf]
          %v3493 = vld [vmem:[#allocation14 + $0x44] sm:$0xf]
          %v3494 = vld [vmem:[#allocation14 + $0x48] sm:$0xf]
          %v3495 = vld [vmem:[#allocation14 + $0x4c] sm:$0xf]
          %v3496 = vld [vmem:[#allocation14 + $0x50] sm:$0xf]
          %v3497 = vld [vmem:[#allocation14 + $0x54] sm:$0xf]
          %v3498 = vld [vmem:[#allocation14 + $0x58] sm:$0xf]
          %v3499 = vld [vmem:[#allocation14 + $0x5c] sm:$0xf]
          %v3500 = vld [vmem:[#allocation14 + $0x60] sm:$0xf]
          %v3501 = vld [vmem:[#allocation14 + $0x64] sm:$0xf]
          %v3502 = vld [vmem:[#allocation14 + $0x68] sm:$0xf]
          %v3503 = vld [vmem:[#allocation14 + $0x6c] sm:$0xf]
          %v3504 = vld [vmem:[#allocation14 + $0x70] sm:$0xf]
          %v3505 = vld [vmem:[#allocation14 + $0x74] sm:$0xf]
          %v3506 = vld [vmem:[#allocation14 + $0x78] sm:$0xf]
          %v3507 = vld [vmem:[#allocation14 + $0x7c] sm:$0xf]
          %v3508 = vld [vmem:[%s9] sm:$0x1]
          %v3510 = vlaneseq
          %v3511 = vshrl.u32 %v3510, 7
          %v3512 = vsub.s32 0, %v3511
          %v3513 = vrot.slane %v3508, %v3512
          %v3547 = vunpack.c.l.b16 %v3476
          %v3548 = vunpack.c.l.b16 %v3477
          %v3549 = vunpack.c.l.b16 %v3478
          %v3550 = vunpack.c.l.b16 %v3479
          %v3551 = vunpack.c.l.b16 %v3480
          %v3552 = vunpack.c.l.b16 %v3481
          %v3553 = vunpack.c.l.b16 %v3482
          %v3554 = vunpack.c.l.b16 %v3483
          %v3555 = vunpack.c.l.b16 %v3484
          %v3556 = vunpack.c.l.b16 %v3485
          %v3557 = vunpack.c.l.b16 %v3486
          %v3558 = vunpack.c.l.b16 %v3487
          %v3559 = vunpack.c.l.b16 %v3488
          %v3560 = vunpack.c.l.b16 %v3489
          %v3561 = vunpack.c.l.b16 %v3490
          %v3562 = vunpack.c.l.b16 %v3491
          %v3563 = vunpack.c.l.b16 %v3492
          %v3564 = vunpack.c.l.b16 %v3493
          %v3565 = vunpack.c.l.b16 %v3494
          %v3566 = vunpack.c.l.b16 %v3495
          %v3567 = vunpack.c.l.b16 %v3496
          %v3568 = vunpack.c.l.b16 %v3497
          %v3569 = vunpack.c.l.b16 %v3498
          %v3570 = vunpack.c.l.b16 %v3499
          %v3571 = vunpack.c.l.b16 %v3500
          %v3572 = vunpack.c.l.b16 %v3501
          %v3573 = vunpack.c.l.b16 %v3502
          %v3574 = vunpack.c.l.b16 %v3503
          %v3575 = vunpack.c.l.b16 %v3504
          %v3576 = vunpack.c.l.b16 %v3505
          %v3577 = vunpack.c.l.b16 %v3506
          %v3578 = vunpack.c.l.b16 %v3507
          %v3579 = vpack.c.b16 %v3548, %v3547
          %v3580 = vpack.c.b16 %v3550, %v3549
          %v3581 = vpack.c.b16 %v3552, %v3551
          %v3582 = vpack.c.b16 %v3554, %v3553
          %v3583 = vpack.c.b16 %v3556, %v3555
          %v3584 = vpack.c.b16 %v3558, %v3557
          %v3585 = vpack.c.b16 %v3560, %v3559
          %v3586 = vpack.c.b16 %v3562, %v3561
          %v3587 = vpack.c.b16 %v3564, %v3563
          %v3588 = vpack.c.b16 %v3566, %v3565
          %v3589 = vpack.c.b16 %v3568, %v3567
          %v3590 = vpack.c.b16 %v3570, %v3569
          %v3591 = vpack.c.b16 %v3572, %v3571
          %v3592 = vpack.c.b16 %v3574, %v3573
          %v3593 = vpack.c.b16 %v3576, %v3575
          %v3594 = vpack.c.b16 %v3578, %v3577
          %3611 = vmatprep.subr.bf16.mxu0 0
          %3612 = vmatpush1.bf16.msra.mxu0 %v3579
          %3613 = vmatprep.subr.bf16.mxu0 0
          %3614 = vmatpush1.bf16.msra.mxu0 %v3580
          %3615 = vmatprep.subr.bf16.mxu0 0
          %3616 = vmatpush1.bf16.msra.mxu0 %v3581
          %3617 = vmatprep.subr.bf16.mxu0 0
          %3618 = vmatpush1.bf16.msra.mxu0 %v3582
          %3619 = vmatprep.subr.bf16.mxu0 0
          %3620 = vmatpush1.bf16.msra.mxu0 %v3583
          %3621 = vmatprep.subr.bf16.mxu0 0
          %3622 = vmatpush1.bf16.msra.mxu0 %v3584
          %3623 = vmatprep.subr.bf16.mxu0 0
          %3624 = vmatpush1.bf16.msra.mxu0 %v3585
          %3625 = vmatprep.subr.bf16.mxu0 0
          %3626 = vmatpush1.bf16.msra.mxu0 %v3586
          %3627 = vmatprep.subr.bf16.mxu0 0
          %3628 = vmatpush1.bf16.msra.mxu0 %v3587
          %3629 = vmatprep.subr.bf16.mxu0 0
          %3630 = vmatpush1.bf16.msra.mxu0 %v3588
          %3631 = vmatprep.subr.bf16.mxu0 0
          %3632 = vmatpush1.bf16.msra.mxu0 %v3589
          %3633 = vmatprep.subr.bf16.mxu0 0
          %3634 = vmatpush1.bf16.msra.mxu0 %v3590
          %3635 = vmatprep.subr.bf16.mxu0 0
          %3636 = vmatpush1.bf16.msra.mxu0 %v3591
          %3637 = vmatprep.subr.bf16.mxu0 0
          %3638 = vmatpush1.bf16.msra.mxu0 %v3592
          %3639 = vmatprep.subr.bf16.mxu0 0
          %3640 = vmatpush1.bf16.msra.mxu0 %v3593
          %3641 = vmatprep.subr.bf16.mxu0 0
          %3642 = vmatpush1.bf16.msra.mxu0 %v3594
          %3643 = vmatprep.mubr.bf16.mxu0 %v3475
          %3644 = vmatmul.mubr.bf16.gmra.mrb[0].mxu0 %v3474
          %v3645 = vpop.f32.mrb[0].mxu0
          %v3646 = vadd.f32 %v3513, %v3645
          %v3647 = vpop.f32.mrb[0].mxu0
          %v3648 = vpop.f32.mrb[0].mxu0
          %v3649 = vpop.f32.mrb[0].mxu0
          %3650 = vdwg.mxu0
          %3651 = vst [vmem:[#allocation15] sm:$0xff] %v3646
        $region96: #{tpu_custom_call.1} parent=59 // pred_fallthru
          _
        // Predicated region
        $region97: #{tpu_custom_call.1} parent=59 // pred_check
          %p3652 = pneg %p263
        $region98: #{tpu_custom_call.1} parent=59 // pred_check_branch
          %3654 = sbr.rel (%p3652) target = $region100
        $region99: #{tpu_custom_call.1} parent=59 // pred_region
          %s3656 = ssub.s32 128, 128
          %3657 = vsyncadd [#allocation5], %s3656
          %s3659 = sshll.u32 [#allocation15], 4
          %s3660 = int_to_ptr.vmem [resolvable:$true] %s3659
          %3662 = dma.vmem_to_hbm [thread:$0]  %s3660, 128, %s10, [#allocation5]
        $region100: #{tpu_custom_call.1} parent=59 // pred_fallthru
          _
        // Predicated region
        $region101: #{tpu_custom_call.1} parent=59 // pred_check
          %p3663 = pneg %p263
        $region102: #{tpu_custom_call.1} parent=59 // pred_check_branch
          %3665 = sbr.rel (%p3663) target = $region104
        $region103: #{tpu_custom_call.1} parent=59 // pred_region
          %3666 = dma.done [#allocation5], 128
        $region104: #{tpu_custom_call.1} parent=59 // pred_fallthru
          _
      $region60: #{tpu_custom_call.1} parent=5 // pred_fallthru
        _
      %p3667 = scmp.le.s32.totalorder 2, %s25
      // Predicated region
      $region105: #{tpu_custom_call.1} parent=5 // pred_check
        %p3668 = pneg %p3667
      $region106: #{tpu_custom_call.1} parent=5 // pred_check_branch
        %3670 = sbr.rel (%p3668) target = $region108
      $region107: #{tpu_custom_call.1} parent=5 // pred_region
        %s3671 = ssub.s32 %s25, 2
      $region108: #{tpu_custom_call.1} parent=5 // pred_fallthru
        _
    $region6: #{tpu_custom_call.1} parent=1 // loop_footer
      %s29 = sadd.s32 1, %s25
    $region7: #{tpu_custom_call.1} parent=1 // loop_footer_branch
      %24 = sbr.rel target = $region3
    $region8: #{tpu_custom_call.1} parent=1 // loop_exit
      _
    %3672 = vsyncpa [#allocation4], 1
    %s3673 = scalar_lea.sflag [#allocation4], 1
    %3674 = vsyncpa %s3673, 1
    %3675 = vsyncpa [#allocation7], 1
    %s3676 = scalar_lea.sflag [#allocation7], 1
    %3677 = vsyncpa %s3676, 1
    %3678 = vsyncpa [#allocation10], 1
    %3679 = vsyncpa [#allocation13], 1
    %3680 = vsyncpa [#allocation5], 1
    %s3681 = scalar_lea.sflag [#allocation5], 1
    %3682 = vsyncpa %s3681, 1

</llo_original>
